<compile_context>
chip_gen: v7x
topology: tpu7x:2x2x1
jax: 0.10.0
libtpu: 0.0.40
codegen_flags: <defaults>
</compile_context>

<pallas_src>
import functools

import numpy as np
import jax
import jax.numpy as jnp
from jax.experimental import pallas as pl
from jax.experimental.pallas import tpu as pltpu


def _round_up(x, m):
    return (x + m - 1) // m * m


def _pick_tk(cin, requested=None):
    """Cin tile size: must divide Cin and be a multiple of 128 lanes (or == Cin)."""
    if (requested is not None and cin % requested == 0
            and (requested == cin or requested % 128 == 0)):
        return requested
    for cand in (512, 384, 256, 128):
        if cin % cand == 0:
            return cand
    # TODO(synk): for Cin not divisible by 128 (e.g. the real 7338), pad the
    # channel axis once at init so the Cin axis can still be pipelined; this
    # fallback uses a single full-Cin block (correct, just not pipelined).
    return cin


# ----------------------------- Pallas kernel --------------------------------
def _convt_silu_kernel(b_ref, w_ref, x_ref, o_ref, z_ref, zc_ref, *,
                       kH, kW, H, W, p, Hout, Wout):
    # b_ref : (1,) f32, SMEM                -- bias scalar
    # w_ref : (KTp, tk) f32                 -- weight tile, taps (kh*kW+kw) on rows
    # x_ref : (tk, S) f32                   -- input tile, unpadded flat spatial on lanes
    # o_ref : (Hout, Wout) f32              -- output tile for this batch element
    # z_ref : (KTp, S) f32 scratch          -- per-tap contraction, accumulated over Cin tiles
    # zc_ref: (KTp, Hp, Wp) f32 scratch     -- zero-bordered canvas (built at last k step)
    k = pl.program_id(1)

    @pl.when(k == 0)
    def _init():
        z_ref[...] = jnp.zeros_like(z_ref)

    # MXU: (taps, tk) @ (tk, S), f32 accumulation across the Cin grid axis.
    z_ref[...] += jnp.dot(w_ref[...], x_ref[...],
                          preferred_element_type=jnp.float32)

    @pl.when(k == pl.num_programs(1) - 1)
    def _epilogue():
        # Scatter the per-tap sums onto a zero-bordered (Hp, Wp) canvas: the
        # border zeros implement the conv-transpose boundary conditions, so no
        # output position ever reads wrapped or stale data.
        zc_ref[...] = jnp.zeros_like(zc_ref)
        for ih in range(H):
            zc_ref[:, p + ih, p:p + W] = z_ref[:, ih * W:(ih + 1) * W]

        # 49-tap reduce on (Hout, Wout) tiles: 7 independent per-kh chains,
        # then a pairwise tree (shallow VPU dependence chain).
        per_kh = []
        for kh in range(kH):
            dh = kH - 1 - kh
            acc = None
            for kw in range(kW):
                j = kh * kW + kw
                dw = kW - 1 - kw
                tap = zc_ref[j, dh:dh + Hout, dw:dw + Wout]     # (Hout, Wout)
                acc = tap if acc is None else acc + tap
            per_kh.append(acc)
        while len(per_kh) > 1:
            nxt = [per_kh[i] + per_kh[i + 1] for i in range(0, len(per_kh) - 1, 2)]
            if len(per_kh) % 2:
                nxt.append(per_kh[-1])
            per_kh = nxt

        v1 = per_kh[0] + b_ref[0]                               # bias
        sig = 1.0 / (1.0 + jnp.exp(-v1))                        # exp -> EUP
        o_ref[...] = (v1 * sig).astype(o_ref.dtype)             # SiLU


# ------------------------------- wrappers ------------------------------------
def prepare_weight(w):
    """One-time parameter re-layout: (Cin, 1, kH, kW) -> (round_up(kH*kW, 8), Cin).

    Done once at init (amortized), so the per-call kernel sees the weight in
    its MXU-friendly (taps, Cin) layout with no per-call HBM prep. No spatial
    flip is required (the kernel epilogue uses direct tap indexing).
    """
    Cin, Cout, kH, kW = w.shape
    assert Cout == 1
    KT = kH * kW
    KTp = _round_up(KT, 8)
    wt = jnp.transpose(w[:, 0, :, :].reshape(Cin, KT), (1, 0))   # (KT, Cin)
    wt = jnp.pad(wt, ((0, KTp - KT), (0, 0)))                    # pad taps to x8 sublanes
    return wt.astype(jnp.float32)


def conv_transpose_silu(x, wt, b, *, kH=7, kW=7, padding=1, tk=None):
    """ConvTranspose2d(stride=1, Cout=1) + x*sigmoid(x); hot path in Pallas."""
    N, Cin, H, W = x.shape
    KTp, Cin_w = wt.shape
    assert Cin_w == Cin and KTp == _round_up(kH * kW, 8)
    p = kH - 1 - padding
    assert p >= 0, "kernel assumes padding <= kernel_size - 1"
    Hout = H - 1 + kH - 2 * padding
    Wout = W - 1 + kW - 2 * padding
    assert Hout > 0 and Wout > 0
    S = H * W
    Hp, Wp = H + 2 * p, W + 2 * p

    tk = _pick_tk(Cin, tk)
    num_k = Cin // tk

    x3 = x.reshape(N, Cin, S)                       # free reshape, no HBM copy
    b1 = b.reshape(1).astype(jnp.float32)

    kernel = functools.partial(_convt_silu_kernel, kH=kH, kW=kW, H=H, W=W,
                               p=p, Hout=Hout, Wout=Wout)

    out = pl.pallas_call(
        kernel,
        out_shape=jax.ShapeDtypeStruct((N, Hout, Wout), jnp.float32),
        grid=(N, num_k),
        in_specs=[
            pl.BlockSpec(memory_space=pltpu.MemorySpace.SMEM),        # bias scalar
            pl.BlockSpec((KTp, tk), lambda n, k: (0, k)),             # weight Cin tile
            pl.BlockSpec((None, tk, S), lambda n, k: (n, k, 0)),      # input Cin tile (batch squeezed)
        ],
        out_specs=pl.BlockSpec((None, Hout, Wout), lambda n, k: (n, 0, 0)),
        scratch_shapes=[
            pltpu.VMEM((KTp, S), jnp.float32),        # z accumulator over Cin tiles
            pltpu.VMEM((KTp, Hp, Wp), jnp.float32),   # zero-bordered canvas
        ],
        compiler_params=pltpu.CompilerParams(
            dimension_semantics=("parallel", "arbitrary")),
    )(b1, wt, x3)

    # TODO(synk): if H*W grows past a few hundred positions, add a lane-blocked
    # spatial grid axis ("parallel") so v7x's second TensorCore shares the HBM
    # reads, and widen the epilogue/output to lane-dense (>=128) stores.
    return out[:, None, :, :]                        # (N, 1, Hout, Wout)


# ----------------------------- numpy reference -------------------------------
def ref_forward(x, w, b, padding=1):
    x = np.asarray(x, np.float64)
    w = np.asarray(w, np.float64)
    b = np.asarray(b, np.float64)
    N, Cin, H, W = x.shape
    _, Cout, kH, kW = w.shape
    Hout = H - 1 + kH - 2 * padding
    Wout = W - 1 + kW - 2 * padding
    t = np.einsum('ncij,coab->noabij', x, w)         # per-tap contributions
    y = np.zeros((N, Cout, Hout, Wout), np.float64)
    for a in range(kH):
        ih0 = max(0, padding - a)
        ih1 = min(H, Hout + padding - a)
        if ih1 <= ih0:
            continue
        oh0, oh1 = ih0 + a - padding, ih1 + a - padding
        for bb in range(kW):
            iw0 = max(0, padding - bb)
            iw1 = min(W, Wout + padding - bb)
            if iw1 <= iw0:
                continue
            ow0, ow1 = iw0 + bb - padding, iw1 + bb - padding
            y[:, :, oh0:oh1, ow0:ow1] += t[:, :, a, bb, ih0:ih1, iw0:iw1]
    y = y + b.reshape(1, Cout, 1, 1)
    return y * (1.0 / (1.0 + np.exp(-y)))


# --------------------------------- main --------------------------------------
if __name__ == "__main__":
    # Small shapes consistent with the module (original Cin=7338 scaled down;
    # Cin=512 with tk=128 exercises the pipelined Cin accumulation).
    N, Cin, H, W = 2, 512, 4, 6
    Cout, kH, kW, padding = 1, 7, 7, 1

    key = jax.random.PRNGKey(0)
    kx, kw_, kb = jax.random.split(key, 3)
    x = jax.random.normal(kx, (N, Cin, H, W), dtype=jnp.float32)

    bound = 1.0 / np.sqrt(Cin * kH * kW)
    weight = jax.random.uniform(kw_, (Cin, Cout, kH, kW), jnp.float32,
                                minval=-bound, maxval=bound)
    bias = jax.random.uniform(kb, (Cout,), jnp.float32,
                              minval=-bound, maxval=bound)

    wt = prepare_weight(weight)                      # one-time parameter re-layout
    fwd = jax.jit(functools.partial(conv_transpose_silu,
                                    kH=kH, kW=kW, padding=padding, tk=128))
    y = jax.block_until_ready(fwd(x, wt, bias))

    y_ref = ref_forward(x, weight, bias, padding=padding)
    # MXU may evaluate f32 dots with bf16 passes at default precision -> loose-ish tol.
    np.testing.assert_allclose(np.asarray(y), y_ref, rtol=2e-2, atol=2e-2)

    print("KERNEL_OK")
</pallas_src>

<mosaic_0001>
module attributes {stable_mosaic.version = 11 : i64} {
  func.func @_convt_silu_kernel(%arg0: i32, %arg1: i32, %arg2: memref<1xf32, #tpu.memory_space<smem>>, %arg3: memref<56x128xf32, #tpu.memory_space<vmem>>, %arg4: memref<1x128x24xf32, #tpu.memory_space<vmem>>, %arg5: memref<1x8x10xf32, #tpu.memory_space<vmem>>, %arg6: memref<56x24xf32, #tpu.memory_space<vmem>>, %arg7: memref<56x14x16xf32, #tpu.memory_space<vmem>>) attributes {dimension_semantics = [#tpu.dimension_semantics<parallel>, #tpu.dimension_semantics<arbitrary>], iteration_bounds = array<i64: 2, 4>, scalar_prefetch = 0 : i64, scratch_operands = 2 : i64, tpu.core_type = #tpu.core_type<tc>, window_params = [{transform_indices = @transform_0, window_bounds = array<i64: 1>}, {transform_indices = @transform_1, window_bounds = array<i64: 56, 128>}, {transform_indices = @transform_2, window_bounds = array<i64: 1, 128, 24>}, {transform_indices = @transform_3, window_bounds = array<i64: 1, 8, 10>}]} {
    %c0_i32 = arith.constant 0 : i32
    %0 = arith.cmpi eq, %arg1, %c0_i32 : i32
    %1 = arith.extui %0 : i1 to i32
    %c0_i32_0 = arith.constant 0 : i32
    %2 = arith.cmpi ne, %1, %c0_i32_0 : i32
    scf.if %2 {
      %cst_10 = arith.constant 0.000000e+00 : f32
      %13 = vector.broadcast %cst_10 : f32 to vector<56x24xf32>
      %c0_11 = arith.constant 0 : index
      %c0_12 = arith.constant 0 : index
      %14 = vector.load %arg6[%c0_11, %c0_12] : memref<56x24xf32, #tpu.memory_space<vmem>>, vector<56x24xf32>
      tpu.vector_store %arg6[%c0_11, %c0_12], %13 {strides = array<i32>} : memref<56x24xf32, #tpu.memory_space<vmem>>, vector<56x24xf32>,
    } else {
    }
    %c0 = arith.constant 0 : index
    %c0_1 = arith.constant 0 : index
    %3 = vector.load %arg6[%c0, %c0_1] : memref<56x24xf32, #tpu.memory_space<vmem>>, vector<56x24xf32>
    %c0_2 = arith.constant 0 : index
    %c0_3 = arith.constant 0 : index
    %4 = vector.load %arg3[%c0_2, %c0_3] : memref<56x128xf32, #tpu.memory_space<vmem>>, vector<56x128xf32>
    %c0_4 = arith.constant 0 : index
    %c0_5 = arith.constant 0 : index
    %c0_6 = arith.constant 0 : index
    %5 = vector.load %arg4[%c0_4, %c0_5, %c0_6] : memref<1x128x24xf32, #tpu.memory_space<vmem>>, vector<1x128x24xf32>
    %6 = vector.shape_cast %5 : vector<1x128x24xf32> to vector<128x24xf32>
    %cst = arith.constant dense<0.000000e+00> : vector<56x24xf32>
    %7 = tpu.matmul %4, %6, %cst {dimension_numbers = #tpu.dot_dimension_numbers<[1], [0], [0], [1], [0, 0, 1, 1], [], []>} : vector<56x128xf32>, vector<128x24xf32>, vector<56x24xf32> -> vector<56x24xf32>
    %8 = arith.addf %3, %7 : vector<56x24xf32>
    %c0_7 = arith.constant 0 : index
    %c0_8 = arith.constant 0 : index
    %9 = vector.load %arg6[%c0_7, %c0_8] : memref<56x24xf32, #tpu.memory_space<vmem>>, vector<56x24xf32>
    tpu.vector_store %arg6[%c0_7, %c0_8], %8 {strides = array<i32>} : memref<56x24xf32, #tpu.memory_space<vmem>>, vector<56x24xf32>,
    %c3_i32 = arith.constant 3 : i32
    %10 = arith.cmpi eq, %arg1, %c3_i32 : i32
    %11 = arith.extui %10 : i1 to i32
    %c0_i32_9 = arith.constant 0 : i32
    %12 = arith.cmpi ne, %11, %c0_i32_9 : i32
    scf.if %12 {
      %cst_10 = arith.constant 0.000000e+00 : f32
      %13 = vector.broadcast %cst_10 : f32 to vector<56x14x16xf32>
      %c0_11 = arith.constant 0 : index
      %c0_12 = arith.constant 0 : index
      %c0_13 = arith.constant 0 : index
      %14 = vector.load %arg7[%c0_11, %c0_12, %c0_13] : memref<56x14x16xf32, #tpu.memory_space<vmem>>, vector<56x14x16xf32>
      tpu.vector_store %arg7[%c0_11, %c0_12, %c0_13], %13 {strides = array<i32>} : memref<56x14x16xf32, #tpu.memory_space<vmem>>, vector<56x14x16xf32>,
      %c0_14 = arith.constant 0 : index
      %c0_15 = arith.constant 0 : index
      %15 = vector.load %arg6[%c0_14, %c0_15] : memref<56x24xf32, #tpu.memory_space<vmem>>, vector<56x6xf32>
      %c0_16 = arith.constant 0 : index
      %c5 = arith.constant 5 : index
      %c5_17 = arith.constant 5 : index
      %16 = vector.load %arg7[%c0_16, %c5, %c5_17] : memref<56x14x16xf32, #tpu.memory_space<vmem>>, vector<56x1x6xf32>
      %17 = vector.shape_cast %16 : vector<56x1x6xf32> to vector<56x6xf32>
      %18 = vector.shape_cast %15 : vector<56x6xf32> to vector<56x1x6xf32>
      tpu.vector_store %arg7[%c0_16, %c5, %c5_17], %18 {strides = array<i32>} : memref<56x14x16xf32, #tpu.memory_space<vmem>>, vector<56x1x6xf32>,
      %c0_18 = arith.constant 0 : index
      %c6 = arith.constant 6 : index
      %19 = vector.load %arg6[%c0_18, %c6] : memref<56x24xf32, #tpu.memory_space<vmem>>, vector<56x6xf32>
      %c0_19 = arith.constant 0 : index
      %c6_20 = arith.constant 6 : index
      %c5_21 = arith.constant 5 : index
      %20 = vector.load %arg7[%c0_19, %c6_20, %c5_21] : memref<56x14x16xf32, #tpu.memory_space<vmem>>, vector<56x1x6xf32>
      %21 = vector.shape_cast %20 : vector<56x1x6xf32> to vector<56x6xf32>
      %22 = vector.shape_cast %19 : vector<56x6xf32> to vector<56x1x6xf32>
      tpu.vector_store %arg7[%c0_19, %c6_20, %c5_21], %22 {strides = array<i32>} : memref<56x14x16xf32, #tpu.memory_space<vmem>>, vector<56x1x6xf32>,
      %c0_22 = arith.constant 0 : index
      %c12 = arith.constant 12 : index
      %23 = vector.load %arg6[%c0_22, %c12] : memref<56x24xf32, #tpu.memory_space<vmem>>, vector<56x6xf32>
      %c0_23 = arith.constant 0 : index
      %c7 = arith.constant 7 : index
      %c5_24 = arith.constant 5 : index
      %24 = vector.load %arg7[%c0_23, %c7, %c5_24] : memref<56x14x16xf32, #tpu.memory_space<vmem>>, vector<56x1x6xf32>
      %25 = vector.shape_cast %24 : vector<56x1x6xf32> to vector<56x6xf32>
      %26 = vector.shape_cast %23 : vector<56x6xf32> to vector<56x1x6xf32>
      tpu.vector_store %arg7[%c0_23, %c7, %c5_24], %26 {strides = array<i32>} : memref<56x14x16xf32, #tpu.memory_space<vmem>>, vector<56x1x6xf32>,
      %c0_25 = arith.constant 0 : index
      %c18 = arith.constant 18 : index
      %27 = vector.load %arg6[%c0_25, %c18] : memref<56x24xf32, #tpu.memory_space<vmem>>, vector<56x6xf32>
      %c0_26 = arith.constant 0 : index
      %c8 = arith.constant 8 : index
      %c5_27 = arith.constant 5 : index
      %28 = vector.load %arg7[%c0_26, %c8, %c5_27] : memref<56x14x16xf32, #tpu.memory_space<vmem>>, vector<56x1x6xf32>
      %29 = vector.shape_cast %28 : vector<56x1x6xf32> to vector<56x6xf32>
      %30 = vector.shape_cast %27 : vector<56x6xf32> to vector<56x1x6xf32>
      tpu.vector_store %arg7[%c0_26, %c8, %c5_27], %30 {strides = array<i32>} : memref<56x14x16xf32, #tpu.memory_space<vmem>>, vector<56x1x6xf32>,
      %c0_28 = arith.constant 0 : index
      %c6_29 = arith.constant 6 : index
      %c6_30 = arith.constant 6 : index
      %31 = vector.load %arg7[%c0_28, %c6_29, %c6_30] : memref<56x14x16xf32, #tpu.memory_space<vmem>>, vector<1x8x10xf32>
      %32 = vector.shape_cast %31 : vector<1x8x10xf32> to vector<8x10xf32>
      %c1 = arith.constant 1 : index
      %c6_31 = arith.constant 6 : index
      %c5_32 = arith.constant 5 : index
      %33 = vector.load %arg7[%c1, %c6_31, %c5_32] : memref<56x14x16xf32, #tpu.memory_space<vmem>>, vector<1x8x10xf32>
      %34 = vector.shape_cast %33 : vector<1x8x10xf32> to vector<8x10xf32>
      %35 = arith.addf %32, %34 : vector<8x10xf32>
      %c2 = arith.constant 2 : index
      %c6_33 = arith.constant 6 : index
      %c4 = arith.constant 4 : index
      %36 = vector.load %arg7[%c2, %c6_33, %c4] : memref<56x14x16xf32, #tpu.memory_space<vmem>>, vector<1x8x10xf32>
      %37 = vector.shape_cast %36 : vector<1x8x10xf32> to vector<8x10xf32>
      %38 = arith.addf %35, %37 : vector<8x10xf32>
      %c3 = arith.constant 3 : index
      %c6_34 = arith.constant 6 : index
      %c3_35 = arith.constant 3 : index
      %39 = vector.load %arg7[%c3, %c6_34, %c3_35] : memref<56x14x16xf32, #tpu.memory_space<vmem>>, vector<1x8x10xf32>
      %40 = vector.shape_cast %39 : vector<1x8x10xf32> to vector<8x10xf32>
      %41 = arith.addf %38, %40 : vector<8x10xf32>
      %c4_36 = arith.constant 4 : index
      %c6_37 = arith.constant 6 : index
      %c2_38 = arith.constant 2 : index
      %42 = vector.load %arg7[%c4_36, %c6_37, %c2_38] : memref<56x14x16xf32, #tpu.memory_space<vmem>>, vector<1x8x10xf32>
      %43 = vector.shape_cast %42 : vector<1x8x10xf32> to vector<8x10xf32>
      %44 = arith.addf %41, %43 : vector<8x10xf32>
      %c5_39 = arith.constant 5 : index
      %c6_40 = arith.constant 6 : index
      %c1_41 = arith.constant 1 : index
      %45 = vector.load %arg7[%c5_39, %c6_40, %c1_41] : memref<56x14x16xf32, #tpu.memory_space<vmem>>, vector<1x8x10xf32>
      %46 = vector.shape_cast %45 : vector<1x8x10xf32> to vector<8x10xf32>
      %47 = arith.addf %44, %46 : vector<8x10xf32>
      %c6_42 = arith.constant 6 : index
      %c6_43 = arith.constant 6 : index
      %c0_44 = arith.constant 0 : index
      %48 = vector.load %arg7[%c6_42, %c6_43, %c0_44] : memref<56x14x16xf32, #tpu.memory_space<vmem>>, vector<1x8x10xf32>
      %49 = vector.shape_cast %48 : vector<1x8x10xf32> to vector<8x10xf32>
      %50 = arith.addf %47, %49 : vector<8x10xf32>
      %c7_45 = arith.constant 7 : index
      %c5_46 = arith.constant 5 : index
      %c6_47 = arith.constant 6 : index
      %51 = vector.load %arg7[%c7_45, %c5_46, %c6_47] : memref<56x14x16xf32, #tpu.memory_space<vmem>>, vector<1x8x10xf32>
      %52 = vector.shape_cast %51 : vector<1x8x10xf32> to vector<8x10xf32>
      %c8_48 = arith.constant 8 : index
      %c5_49 = arith.constant 5 : index
      %c5_50 = arith.constant 5 : index
      %53 = vector.load %arg7[%c8_48, %c5_49, %c5_50] : memref<56x14x16xf32, #tpu.memory_space<vmem>>, vector<1x8x10xf32>
      %54 = vector.shape_cast %53 : vector<1x8x10xf32> to vector<8x10xf32>
      %55 = arith.addf %52, %54 : vector<8x10xf32>
      %c9 = arith.constant 9 : index
      %c5_51 = arith.constant 5 : index
      %c4_52 = arith.constant 4 : index
      %56 = vector.load %arg7[%c9, %c5_51, %c4_52] : memref<56x14x16xf32, #tpu.memory_space<vmem>>, vector<1x8x10xf32>
      %57 = vector.shape_cast %56 : vector<1x8x10xf32> to vector<8x10xf32>
      %58 = arith.addf %55, %57 : vector<8x10xf32>
      %c10 = arith.constant 10 : index
      %c5_53 = arith.constant 5 : index
      %c3_54 = arith.constant 3 : index
      %59 = vector.load %arg7[%c10, %c5_53, %c3_54] : memref<56x14x16xf32, #tpu.memory_space<vmem>>, vector<1x8x10xf32>
      %60 = vector.shape_cast %59 : vector<1x8x10xf32> to vector<8x10xf32>
      %61 = arith.addf %58, %60 : vector<8x10xf32>
      %c11 = arith.constant 11 : index
      %c5_55 = arith.constant 5 : index
      %c2_56 = arith.constant 2 : index
      %62 = vector.load %arg7[%c11, %c5_55, %c2_56] : memref<56x14x16xf32, #tpu.memory_space<vmem>>, vector<1x8x10xf32>
      %63 = vector.shape_cast %62 : vector<1x8x10xf32> to vector<8x10xf32>
      %64 = arith.addf %61, %63 : vector<8x10xf32>
      %c12_57 = arith.constant 12 : index
      %c5_58 = arith.constant 5 : index
      %c1_59 = arith.constant 1 : index
      %65 = vector.load %arg7[%c12_57, %c5_58, %c1_59] : memref<56x14x16xf32, #tpu.memory_space<vmem>>, vector<1x8x10xf32>
      %66 = vector.shape_cast %65 : vector<1x8x10xf32> to vector<8x10xf32>
      %67 = arith.addf %64, %66 : vector<8x10xf32>
      %c13 = arith.constant 13 : index
      %c5_60 = arith.constant 5 : index
      %c0_61 = arith.constant 0 : index
      %68 = vector.load %arg7[%c13, %c5_60, %c0_61] : memref<56x14x16xf32, #tpu.memory_space<vmem>>, vector<1x8x10xf32>
      %69 = vector.shape_cast %68 : vector<1x8x10xf32> to vector<8x10xf32>
      %70 = arith.addf %67, %69 : vector<8x10xf32>
      %c14 = arith.constant 14 : index
      %c4_62 = arith.constant 4 : index
      %c6_63 = arith.constant 6 : index
      %71 = vector.load %arg7[%c14, %c4_62, %c6_63] : memref<56x14x16xf32, #tpu.memory_space<vmem>>, vector<1x8x10xf32>
      %72 = vector.shape_cast %71 : vector<1x8x10xf32> to vector<8x10xf32>
      %c15 = arith.constant 15 : index
      %c4_64 = arith.constant 4 : index
      %c5_65 = arith.constant 5 : index
      %73 = vector.load %arg7[%c15, %c4_64, %c5_65] : memref<56x14x16xf32, #tpu.memory_space<vmem>>, vector<1x8x10xf32>
      %74 = vector.shape_cast %73 : vector<1x8x10xf32> to vector<8x10xf32>
      %75 = arith.addf %72, %74 : vector<8x10xf32>
      %c16 = arith.constant 16 : index
      %c4_66 = arith.constant 4 : index
      %c4_67 = arith.constant 4 : index
      %76 = vector.load %arg7[%c16, %c4_66, %c4_67] : memref<56x14x16xf32, #tpu.memory_space<vmem>>, vector<1x8x10xf32>
      %77 = vector.shape_cast %76 : vector<1x8x10xf32> to vector<8x10xf32>
      %78 = arith.addf %75, %77 : vector<8x10xf32>
      %c17 = arith.constant 17 : index
      %c4_68 = arith.constant 4 : index
      %c3_69 = arith.constant 3 : index
      %79 = vector.load %arg7[%c17, %c4_68, %c3_69] : memref<56x14x16xf32, #tpu.memory_space<vmem>>, vector<1x8x10xf32>
      %80 = vector.shape_cast %79 : vector<1x8x10xf32> to vector<8x10xf32>
      %81 = arith.addf %78, %80 : vector<8x10xf32>
      %c18_70 = arith.constant 18 : index
      %c4_71 = arith.constant 4 : index
      %c2_72 = arith.constant 2 : index
      %82 = vector.load %arg7[%c18_70, %c4_71, %c2_72] : memref<56x14x16xf32, #tpu.memory_space<vmem>>, vector<1x8x10xf32>
      %83 = vector.shape_cast %82 : vector<1x8x10xf32> to vector<8x10xf32>
      %84 = arith.addf %81, %83 : vector<8x10xf32>
      %c19 = arith.constant 19 : index
      %c4_73 = arith.constant 4 : index
      %c1_74 = arith.constant 1 : index
      %85 = vector.load %arg7[%c19, %c4_73, %c1_74] : memref<56x14x16xf32, #tpu.memory_space<vmem>>, vector<1x8x10xf32>
      %86 = vector.shape_cast %85 : vector<1x8x10xf32> to vector<8x10xf32>
      %87 = arith.addf %84, %86 : vector<8x10xf32>
      %c20 = arith.constant 20 : index
      %c4_75 = arith.constant 4 : index
      %c0_76 = arith.constant 0 : index
      %88 = vector.load %arg7[%c20, %c4_75, %c0_76] : memref<56x14x16xf32, #tpu.memory_space<vmem>>, vector<1x8x10xf32>
      %89 = vector.shape_cast %88 : vector<1x8x10xf32> to vector<8x10xf32>
      %90 = arith.addf %87, %89 : vector<8x10xf32>
      %c21 = arith.constant 21 : index
      %c3_77 = arith.constant 3 : index
      %c6_78 = arith.constant 6 : index
      %91 = vector.load %arg7[%c21, %c3_77, %c6_78] : memref<56x14x16xf32, #tpu.memory_space<vmem>>, vector<1x8x10xf32>
      %92 = vector.shape_cast %91 : vector<1x8x10xf32> to vector<8x10xf32>
      %c22 = arith.constant 22 : index
      %c3_79 = arith.constant 3 : index
      %c5_80 = arith.constant 5 : index
      %93 = vector.load %arg7[%c22, %c3_79, %c5_80] : memref<56x14x16xf32, #tpu.memory_space<vmem>>, vector<1x8x10xf32>
      %94 = vector.shape_cast %93 : vector<1x8x10xf32> to vector<8x10xf32>
      %95 = arith.addf %92, %94 : vector<8x10xf32>
      %c23 = arith.constant 23 : index
      %c3_81 = arith.constant 3 : index
      %c4_82 = arith.constant 4 : index
      %96 = vector.load %arg7[%c23, %c3_81, %c4_82] : memref<56x14x16xf32, #tpu.memory_space<vmem>>, vector<1x8x10xf32>
      %97 = vector.shape_cast %96 : vector<1x8x10xf32> to vector<8x10xf32>
      %98 = arith.addf %95, %97 : vector<8x10xf32>
      %c24 = arith.constant 24 : index
      %c3_83 = arith.constant 3 : index
      %c3_84 = arith.constant 3 : index
      %99 = vector.load %arg7[%c24, %c3_83, %c3_84] : memref<56x14x16xf32, #tpu.memory_space<vmem>>, vector<1x8x10xf32>
      %100 = vector.shape_cast %99 : vector<1x8x10xf32> to vector<8x10xf32>
      %101 = arith.addf %98, %100 : vector<8x10xf32>
      %c25 = arith.constant 25 : index
      %c3_85 = arith.constant 3 : index
      %c2_86 = arith.constant 2 : index
      %102 = vector.load %arg7[%c25, %c3_85, %c2_86] : memref<56x14x16xf32, #tpu.memory_space<vmem>>, vector<1x8x10xf32>
      %103 = vector.shape_cast %102 : vector<1x8x10xf32> to vector<8x10xf32>
      %104 = arith.addf %101, %103 : vector<8x10xf32>
      %c26 = arith.constant 26 : index
      %c3_87 = arith.constant 3 : index
      %c1_88 = arith.constant 1 : index
      %105 = vector.load %arg7[%c26, %c3_87, %c1_88] : memref<56x14x16xf32, #tpu.memory_space<vmem>>, vector<1x8x10xf32>
      %106 = vector.shape_cast %105 : vector<1x8x10xf32> to vector<8x10xf32>
      %107 = arith.addf %104, %106 : vector<8x10xf32>
      %c27 = arith.constant 27 : index
      %c3_89 = arith.constant 3 : index
      %c0_90 = arith.constant 0 : index
      %108 = vector.load %arg7[%c27, %c3_89, %c0_90] : memref<56x14x16xf32, #tpu.memory_space<vmem>>, vector<1x8x10xf32>
      %109 = vector.shape_cast %108 : vector<1x8x10xf32> to vector<8x10xf32>
      %110 = arith.addf %107, %109 : vector<8x10xf32>
      %c28 = arith.constant 28 : index
      %c2_91 = arith.constant 2 : index
      %c6_92 = arith.constant 6 : index
      %111 = vector.load %arg7[%c28, %c2_91, %c6_92] : memref<56x14x16xf32, #tpu.memory_space<vmem>>, vector<1x8x10xf32>
      %112 = vector.shape_cast %111 : vector<1x8x10xf32> to vector<8x10xf32>
      %c29 = arith.constant 29 : index
      %c2_93 = arith.constant 2 : index
      %c5_94 = arith.constant 5 : index
      %113 = vector.load %arg7[%c29, %c2_93, %c5_94] : memref<56x14x16xf32, #tpu.memory_space<vmem>>, vector<1x8x10xf32>
      %114 = vector.shape_cast %113 : vector<1x8x10xf32> to vector<8x10xf32>
      %115 = arith.addf %112, %114 : vector<8x10xf32>
      %c30 = arith.constant 30 : index
      %c2_95 = arith.constant 2 : index
      %c4_96 = arith.constant 4 : index
      %116 = vector.load %arg7[%c30, %c2_95, %c4_96] : memref<56x14x16xf32, #tpu.memory_space<vmem>>, vector<1x8x10xf32>
      %117 = vector.shape_cast %116 : vector<1x8x10xf32> to vector<8x10xf32>
      %118 = arith.addf %115, %117 : vector<8x10xf32>
      %c31 = arith.constant 31 : index
      %c2_97 = arith.constant 2 : index
      %c3_98 = arith.constant 3 : index
      %119 = vector.load %arg7[%c31, %c2_97, %c3_98] : memref<56x14x16xf32, #tpu.memory_space<vmem>>, vector<1x8x10xf32>
      %120 = vector.shape_cast %119 : vector<1x8x10xf32> to vector<8x10xf32>
      %121 = arith.addf %118, %120 : vector<8x10xf32>
      %c32 = arith.constant 32 : index
      %c2_99 = arith.constant 2 : index
      %c2_100 = arith.constant 2 : index
      %122 = vector.load %arg7[%c32, %c2_99, %c2_100] : memref<56x14x16xf32, #tpu.memory_space<vmem>>, vector<1x8x10xf32>
      %123 = vector.shape_cast %122 : vector<1x8x10xf32> to vector<8x10xf32>
      %124 = arith.addf %121, %123 : vector<8x10xf32>
      %c33 = arith.constant 33 : index
      %c2_101 = arith.constant 2 : index
      %c1_102 = arith.constant 1 : index
      %125 = vector.load %arg7[%c33, %c2_101, %c1_102] : memref<56x14x16xf32, #tpu.memory_space<vmem>>, vector<1x8x10xf32>
      %126 = vector.shape_cast %125 : vector<1x8x10xf32> to vector<8x10xf32>
      %127 = arith.addf %124, %126 : vector<8x10xf32>
      %c34 = arith.constant 34 : index
      %c2_103 = arith.constant 2 : index
      %c0_104 = arith.constant 0 : index
      %128 = vector.load %arg7[%c34, %c2_103, %c0_104] : memref<56x14x16xf32, #tpu.memory_space<vmem>>, vector<1x8x10xf32>
      %129 = vector.shape_cast %128 : vector<1x8x10xf32> to vector<8x10xf32>
      %130 = arith.addf %127, %129 : vector<8x10xf32>
      %c35 = arith.constant 35 : index
      %c1_105 = arith.constant 1 : index
      %c6_106 = arith.constant 6 : index
      %131 = vector.load %arg7[%c35, %c1_105, %c6_106] : memref<56x14x16xf32, #tpu.memory_space<vmem>>, vector<1x8x10xf32>
      %132 = vector.shape_cast %131 : vector<1x8x10xf32> to vector<8x10xf32>
      %c36 = arith.constant 36 : index
      %c1_107 = arith.constant 1 : index
      %c5_108 = arith.constant 5 : index
      %133 = vector.load %arg7[%c36, %c1_107, %c5_108] : memref<56x14x16xf32, #tpu.memory_space<vmem>>, vector<1x8x10xf32>
      %134 = vector.shape_cast %133 : vector<1x8x10xf32> to vector<8x10xf32>
      %135 = arith.addf %132, %134 : vector<8x10xf32>
      %c37 = arith.constant 37 : index
      %c1_109 = arith.constant 1 : index
      %c4_110 = arith.constant 4 : index
      %136 = vector.load %arg7[%c37, %c1_109, %c4_110] : memref<56x14x16xf32, #tpu.memory_space<vmem>>, vector<1x8x10xf32>
      %137 = vector.shape_cast %136 : vector<1x8x10xf32> to vector<8x10xf32>
      %138 = arith.addf %135, %137 : vector<8x10xf32>
      %c38 = arith.constant 38 : index
      %c1_111 = arith.constant 1 : index
      %c3_112 = arith.constant 3 : index
      %139 = vector.load %arg7[%c38, %c1_111, %c3_112] : memref<56x14x16xf32, #tpu.memory_space<vmem>>, vector<1x8x10xf32>
      %140 = vector.shape_cast %139 : vector<1x8x10xf32> to vector<8x10xf32>
      %141 = arith.addf %138, %140 : vector<8x10xf32>
      %c39 = arith.constant 39 : index
      %c1_113 = arith.constant 1 : index
      %c2_114 = arith.constant 2 : index
      %142 = vector.load %arg7[%c39, %c1_113, %c2_114] : memref<56x14x16xf32, #tpu.memory_space<vmem>>, vector<1x8x10xf32>
      %143 = vector.shape_cast %142 : vector<1x8x10xf32> to vector<8x10xf32>
      %144 = arith.addf %141, %143 : vector<8x10xf32>
      %c40 = arith.constant 40 : index
      %c1_115 = arith.constant 1 : index
      %c1_116 = arith.constant 1 : index
      %145 = vector.load %arg7[%c40, %c1_115, %c1_116] : memref<56x14x16xf32, #tpu.memory_space<vmem>>, vector<1x8x10xf32>
      %146 = vector.shape_cast %145 : vector<1x8x10xf32> to vector<8x10xf32>
      %147 = arith.addf %144, %146 : vector<8x10xf32>
      %c41 = arith.constant 41 : index
      %c1_117 = arith.constant 1 : index
      %c0_118 = arith.constant 0 : index
      %148 = vector.load %arg7[%c41, %c1_117, %c0_118] : memref<56x14x16xf32, #tpu.memory_space<vmem>>, vector<1x8x10xf32>
      %149 = vector.shape_cast %148 : vector<1x8x10xf32> to vector<8x10xf32>
      %150 = arith.addf %147, %149 : vector<8x10xf32>
      %c42 = arith.constant 42 : index
      %c0_119 = arith.constant 0 : index
      %c6_120 = arith.constant 6 : index
      %151 = vector.load %arg7[%c42, %c0_119, %c6_120] : memref<56x14x16xf32, #tpu.memory_space<vmem>>, vector<1x8x10xf32>
      %152 = vector.shape_cast %151 : vector<1x8x10xf32> to vector<8x10xf32>
      %c43 = arith.constant 43 : index
      %c0_121 = arith.constant 0 : index
      %c5_122 = arith.constant 5 : index
      %153 = vector.load %arg7[%c43, %c0_121, %c5_122] : memref<56x14x16xf32, #tpu.memory_space<vmem>>, vector<1x8x10xf32>
      %154 = vector.shape_cast %153 : vector<1x8x10xf32> to vector<8x10xf32>
      %155 = arith.addf %152, %154 : vector<8x10xf32>
      %c44 = arith.constant 44 : index
      %c0_123 = arith.constant 0 : index
      %c4_124 = arith.constant 4 : index
      %156 = vector.load %arg7[%c44, %c0_123, %c4_124] : memref<56x14x16xf32, #tpu.memory_space<vmem>>, vector<1x8x10xf32>
      %157 = vector.shape_cast %156 : vector<1x8x10xf32> to vector<8x10xf32>
      %158 = arith.addf %155, %157 : vector<8x10xf32>
      %c45 = arith.constant 45 : index
      %c0_125 = arith.constant 0 : index
      %c3_126 = arith.constant 3 : index
      %159 = vector.load %arg7[%c45, %c0_125, %c3_126] : memref<56x14x16xf32, #tpu.memory_space<vmem>>, vector<1x8x10xf32>
      %160 = vector.shape_cast %159 : vector<1x8x10xf32> to vector<8x10xf32>
      %161 = arith.addf %158, %160 : vector<8x10xf32>
      %c46 = arith.constant 46 : index
      %c0_127 = arith.constant 0 : index
      %c2_128 = arith.constant 2 : index
      %162 = vector.load %arg7[%c46, %c0_127, %c2_128] : memref<56x14x16xf32, #tpu.memory_space<vmem>>, vector<1x8x10xf32>
      %163 = vector.shape_cast %162 : vector<1x8x10xf32> to vector<8x10xf32>
      %164 = arith.addf %161, %163 : vector<8x10xf32>
      %c47 = arith.constant 47 : index
      %c0_129 = arith.constant 0 : index
      %c1_130 = arith.constant 1 : index
      %165 = vector.load %arg7[%c47, %c0_129, %c1_130] : memref<56x14x16xf32, #tpu.memory_space<vmem>>, vector<1x8x10xf32>
      %166 = vector.shape_cast %165 : vector<1x8x10xf32> to vector<8x10xf32>
      %167 = arith.addf %164, %166 : vector<8x10xf32>
      %c48 = arith.constant 48 : index
      %c0_131 = arith.constant 0 : index
      %c0_132 = arith.constant 0 : index
      %168 = vector.load %arg7[%c48, %c0_131, %c0_132] : memref<56x14x16xf32, #tpu.memory_space<vmem>>, vector<1x8x10xf32>
      %169 = vector.shape_cast %168 : vector<1x8x10xf32> to vector<8x10xf32>
      %170 = arith.addf %167, %169 : vector<8x10xf32>
      %171 = arith.addf %50, %70 : vector<8x10xf32>
      %172 = arith.addf %90, %110 : vector<8x10xf32>
      %173 = arith.addf %130, %150 : vector<8x10xf32>
      %174 = arith.addf %171, %172 : vector<8x10xf32>
      %175 = arith.addf %173, %170 : vector<8x10xf32>
      %176 = arith.addf %174, %175 : vector<8x10xf32>
      %c0_133 = arith.constant 0 : index
      %177 = memref.load %arg2[%c0_133] : memref<1xf32, #tpu.memory_space<smem>>
      %178 = vector.broadcast %177 : f32 to vector<8x10xf32>
      %179 = arith.addf %176, %178 : vector<8x10xf32>
      %cst_134 = arith.constant 0.000000e+00 : f32
      %180 = vector.broadcast %cst_134 : f32 to vector<8x10xf32>
      %181 = arith.subf %180, %179 : vector<8x10xf32>
      %182 = math.exp %181 : vector<8x10xf32>
      %cst_135 = arith.constant 1.000000e+00 : f32
      %183 = vector.broadcast %cst_135 : f32 to vector<8x10xf32>
      %184 = arith.addf %183, %182 : vector<8x10xf32>
      %cst_136 = arith.constant 1.000000e+00 : f32
      %185 = vector.broadcast %cst_136 : f32 to vector<8x10xf32>
      %186 = arith.divf %185, %184 : vector<8x10xf32>
      %187 = arith.mulf %179, %186 : vector<8x10xf32>
      %c0_137 = arith.constant 0 : index
      %c0_138 = arith.constant 0 : index
      %c0_139 = arith.constant 0 : index
      %188 = vector.load %arg5[%c0_137, %c0_138, %c0_139] : memref<1x8x10xf32, #tpu.memory_space<vmem>>, vector<1x8x10xf32>
      %189 = vector.shape_cast %188 : vector<1x8x10xf32> to vector<8x10xf32>
      %190 = vector.shape_cast %187 : vector<8x10xf32> to vector<1x8x10xf32>
      tpu.vector_store %arg5[%c0_137, %c0_138, %c0_139], %190 {strides = array<i32>} : memref<1x8x10xf32, #tpu.memory_space<vmem>>, vector<1x8x10xf32>,
    } else {
    }
    return
  }
  func.func @transform_0(%arg0: i32, %arg1: i32) -> i32 {
    %c0_i32 = arith.constant 0 : i32
    %c0_i32_0 = arith.constant 0 : i32
    return %c0_i32 : i32
  }
  func.func @transform_1(%arg0: i32, %arg1: i32) -> (i32, i32) {
    %c0_i32 = arith.constant 0 : i32
    %c0_i32_0 = arith.constant 0 : i32
    return %c0_i32, %arg1 : i32, i32
  }
  func.func @transform_2(%arg0: i32, %arg1: i32) -> (i32, i32, i32) {
    %c0_i32 = arith.constant 0 : i32
    %c0_i32_0 = arith.constant 0 : i32
    return %arg0, %arg1, %c0_i32 : i32, i32, i32
  }
  func.func @transform_3(%arg0: i32, %arg1: i32) -> (i32, i32, i32) {
    %c0_i32 = arith.constant 0 : i32
    %c0_i32_0 = arith.constant 0 : i32
    %c0_i32_1 = arith.constant 0 : i32
    return %arg0, %c0_i32, %c0_i32_0 : i32, i32, i32
  }
}

</mosaic_0001>

<llo_original>
// kernel: conv_transpose_silu.1
$region0: #{conv_transpose_silu.1}
  #allocation0 [shape = 'u32[]', space=smem, size = 0x4, offset = 0x4, fixed_abs, tag = 'smem constant byte address 0x4 - core index']
  #allocation1 [shape = 'u32[144,128]{1,0:T(1,128)}', space=vmem, size = 0x12000, scoped, tag = 'internal scratch']
  #allocation2 [shape = 'f32[56,24]{1,0:T(8,128)}', space=vmem, size = 0x7000, scoped, tag = 'scratch operand']
  #allocation3 [shape = 'f32[56,14,16]{2,1,0:T(8,128)}', space=vmem, size = 0x70000, scoped, tag = 'scratch operand']
  #allocation4 [shape = 'f32[1]{0:T(128)S(6)}', space=smem, size = 0x200, scoped, tag = 'scoped memory for conv_transpose_silu.1']
  %s0 = inlined_call_operand.<no memory space> [shape: f32[1], index: 0, kind: input, shape index: {}]
  %s1 = inlined_call_operand.vmem [shape: f32[56,512], index: 1, kind: input, shape index: {}]
  %s2 = inlined_call_operand.vmem [shape: f32[2,512,24], index: 2, kind: input, shape index: {}]
  %s3 = inlined_call_operand.hbm [shape: f32[2,8,10], index: 3, kind: output, shape index: {}]
  %s4 = sld [smem:[#allocation0]]
  $region91: #{conv_transpose_silu.1} parent=0
    _
  %s6 = ssub.s32 1, %s4
  %s7 = scalar_select 0, %s6, %s4
  %8 = sst [smem:[#allocation4]] %s0
  $region1: #{conv_transpose_silu.1} parent=0
    #allocation5 [shape = 'u8[57344]{0}', space=vmem, size = 0xe000, scoped, tag = 'input window, operand 1']
    #allocation6 [shape = 'u8[8192]{0}', space=vmem, size = 0x2000, scoped, tag = 'output window, operand 0']
    #allocation7 [shape = 's32[2]{0}', space=sflag, size = 0x8, scoped, tag = 'scoped memory for conv_transpose_silu.1']
    %9 = vsyncpa [#allocation7], 0
    %s10 = scalar_lea.sflag [#allocation7], 1
    %11 = vsyncpa %s10, 0
    loop: start=0, step=1, limit=10
    $region2: #{conv_transpose_silu.1} parent=1 // loop_pre_header
      _
    $region3: #{conv_transpose_silu.1} parent=1 // loop_header
      %s13 = sphi 0, %s17
      %p14 = scmp.ge.s32.totalorder %s13, 10
      %s20 = sphi 0, %s32
      %s21 = sphi 0, %s28
      %s22 = sphi 0, %s20
      %s23 = sphi 0, %s21
      %s24 = sphi 0, %s22
      %s25 = sphi 0, %s23
      %s33 = sphi 0, %s33
      %s35 = sphi 0, %s33
      %s36 = sphi 0, %s35
      %s50 = sphi 0, %s36
      %s56 = sphi 0, %s58
      %s59 = sphi 0, %s56
      %s60 = sphi 0, %s59
      %s76 = sphi 0, %s60
      %s84 = sphi 0, %s86
      %s87 = sphi 0, %s84
      %s88 = sphi 0, %s87
      %s104 = sphi 0, %s88
      %s110 = sphi 0, %s112
      %s113 = sphi 0, %s110
      %s114 = sphi 0, %s113
      %s130 = sphi 0, %s114
    $region4: #{conv_transpose_silu.1} parent=1 // loop_header_branch
      %16 = sbr.rel (%p14) target = $region8
    $region5: #{conv_transpose_silu.1} parent=1 // loop_body
      %s18 = ssub.s32 %s13, 1
      %s19 = ssub.s32 %s13, 2
      %s26 = sadd.s32 1, %s21
      %p27 = scmp.ge.s32.totalorder %s26, 4
      %s28 = scalar_select %p27, 0, %s26
      %s29 = sadd.s32 1, %s20
      %s30 = scalar_select %p27, %s29, %s20
      %p31 = scmp.ge.s32.totalorder %s30, 2
      %s32 = scalar_select %p31, 0, %s30
      %s34 = sadd.s32 %s33, 1
      %p37 = scmp.eq.s32.totalorder %s13, 7
      %p38 = scmp.ne.s32.totalorder %s33, %s35
      %p39 = scmp.eq.s32.totalorder %s13, 0
      %p40 = por %p38, %p39
      %p41 = scmp.ne.s32.totalorder %s33, %s35
      %p42 = scmp.eq.s32.totalorder %s18, 7
      %p43 = por %p41, %p42
      %p44 = scmp.ne.s32.totalorder %s35, %s36
      %p45 = scmp.eq.s32.totalorder %s18, 0
      %p46 = por %p44, %p45
      %p47 = scmp.ne.s32.totalorder %s35, %s36
      %p48 = scmp.eq.s32.totalorder %s19, 7
      %p49 = por %p47, %p48
      %p51 = scmp.ne.s32.totalorder %s36, %s50
      %p52 = scmp.eq.s32.totalorder %s19, 0
      %p53 = por %p51, %p52
      %s54 = ssub.s32 %s21, %s28
      %p55 = scmp.eq.s32.totalorder %s54, 0
      %s57 = sadd.s32 %s56, 1
      %s58 = scalar_select %p55, %s56, %s57
      %p61 = pneg %p55
      %p62 = scmp.eq.s32.totalorder %s13, 7
      %p63 = por %p61, %p62
      %p64 = scmp.ne.s32.totalorder %s56, %s59
      %p65 = scmp.eq.s32.totalorder %s13, 0
      %p66 = por %p64, %p65
      %p67 = scmp.ne.s32.totalorder %s56, %s59
      %p68 = scmp.eq.s32.totalorder %s18, 7
      %p69 = por %p67, %p68
      %p70 = scmp.ne.s32.totalorder %s59, %s60
      %p71 = scmp.eq.s32.totalorder %s18, 0
      %p72 = por %p70, %p71
      %p73 = scmp.ne.s32.totalorder %s59, %s60
      %p74 = scmp.eq.s32.totalorder %s19, 7
      %p75 = por %p73, %p74
      %p77 = scmp.ne.s32.totalorder %s60, %s76
      %p78 = scmp.eq.s32.totalorder %s19, 0
      %p79 = por %p77, %p78
      %s80 = ssub.s32 %s20, %s32
      %s81 = ssub.s32 %s21, %s28
      %s82 = sor.u32 %s80, %s81
      %p83 = scmp.eq.s32.totalorder %s82, 0
      %s85 = sadd.s32 %s84, 1
      %s86 = scalar_select %p83, %s84, %s85
      %p89 = pneg %p83
      %p90 = scmp.eq.s32.totalorder %s13, 7
      %p91 = por %p89, %p90
      %p92 = scmp.ne.s32.totalorder %s84, %s87
      %p93 = scmp.eq.s32.totalorder %s13, 0
      %p94 = por %p92, %p93
      %p95 = scmp.ne.s32.totalorder %s84, %s87
      %p96 = scmp.eq.s32.totalorder %s18, 7
      %p97 = por %p95, %p96
      %p98 = scmp.ne.s32.totalorder %s87, %s88
      %p99 = scmp.eq.s32.totalorder %s18, 0
      %p100 = por %p98, %p99
      %p101 = scmp.ne.s32.totalorder %s87, %s88
      %p102 = scmp.eq.s32.totalorder %s19, 7
      %p103 = por %p101, %p102
      %p105 = scmp.ne.s32.totalorder %s88, %s104
      %p106 = scmp.eq.s32.totalorder %s19, 0
      %p107 = por %p105, %p106
      %s108 = ssub.s32 %s20, %s32
      %p109 = scmp.eq.s32.totalorder %s108, 0
      %s111 = sadd.s32 %s110, 1
      %s112 = scalar_select %p109, %s110, %s111
      %p115 = pneg %p109
      %p116 = scmp.eq.s32.totalorder %s13, 7
      %p117 = por %p115, %p116
      %p118 = scmp.ne.s32.totalorder %s110, %s113
      %p119 = scmp.eq.s32.totalorder %s13, 0
      %p120 = por %p118, %p119
      %p121 = scmp.ne.s32.totalorder %s110, %s113
      %p122 = scmp.eq.s32.totalorder %s18, 7
      %p123 = por %p121, %p122
      %p124 = scmp.ne.s32.totalorder %s113, %s114
      %p125 = scmp.eq.s32.totalorder %s18, 0
      %p126 = por %p124, %p125
      %p127 = scmp.ne.s32.totalorder %s113, %s114
      %p128 = scmp.eq.s32.totalorder %s19, 7
      %p129 = por %p127, %p128
      %p131 = scmp.ne.s32.totalorder %s114, %s130
      %p132 = scmp.eq.s32.totalorder %s19, 0
      %p133 = por %p131, %p132
      %p134 = scmp.le.s32.totalorder 1, %s13
      %p135 = scmp.lt.s32.totalorder %s13, 9
      %p136 = pnand %p134, %p135
      %p137 = pneg %p136
      // Predicated region
      $region9: #{conv_transpose_silu.1} parent=5 // pred_check
        _
      $region10: #{conv_transpose_silu.1} parent=5 // pred_check_branch
        %139 = sbr.rel (%p136) target = $region12
      $region11: #{conv_transpose_silu.1} parent=5 // pred_region
        %s140 = ssub.s32 %s13, 1
        // Predicated region
        $region13: #{conv_transpose_silu.1} parent=11 // pred_check
          %p141 = pneg %p46
        $region14: #{conv_transpose_silu.1} parent=11 // pred_check_branch
          %143 = sbr.rel (%p141) target = $region16
        $region15: #{conv_transpose_silu.1} parent=11 // pred_region
          _
        $region16: #{conv_transpose_silu.1} parent=11 // pred_fallthru
          _
      $region12: #{conv_transpose_silu.1} parent=5 // pred_fallthru
        _
      %p144 = scmp.lt.s32.totalorder %s13, 8
      // Predicated region
      $region17: #{conv_transpose_silu.1} parent=5 // pred_check
        %p145 = pneg %p144
      $region18: #{conv_transpose_silu.1} parent=5 // pred_check_branch
        %147 = sbr.rel (%p145) target = $region20
      $region19: #{conv_transpose_silu.1} parent=5 // pred_region
        // Predicated region
        $region21: #{conv_transpose_silu.1} parent=19 // pred_check
          %p148 = pneg %p66
        $region22: #{conv_transpose_silu.1} parent=19 // pred_check_branch
          %150 = sbr.rel (%p148) target = $region24
        $region23: #{conv_transpose_silu.1} parent=19 // pred_region
          %s151 = sand.u32 %s56, 1
          %s152 = sand.u32 %s56, 1
          %s153 = smul.addr %s152, 56
          %s154 = scalar_lea.vmem [#allocation5], %s153
          %s155 = smul.addr %s21, 8
          %s156 = scalar_lea.vmem %s1, %s155
          // Predicated region
          $region25: #{conv_transpose_silu.1} parent=23 // pred_check
            _
          $region26: #{conv_transpose_silu.1} parent=23 // pred_check_branch
            %158 = sbr.rel (0) target = $region28
          $region27: #{conv_transpose_silu.1} parent=23 // pred_region
            // Predicated region
            $region29: #{conv_transpose_silu.1} parent=27 // pred_check
              _
            $region30: #{conv_transpose_silu.1} parent=27 // pred_check_branch
              %160 = sbr.rel (0) target = $region32
            $region31: #{conv_transpose_silu.1} parent=27 // pred_region
              // Predicated region
              $region44: #{conv_transpose_silu.1} parent=31 // pred_check
                _
              $region45: #{conv_transpose_silu.1} parent=31 // pred_check_branch
                %187 = sbr.rel (0) target = $region47
              $region46: #{conv_transpose_silu.1} parent=31 // pred_region
                loop: start=0, step=1, limit=1
                $region48: #{conv_transpose_silu.1} parent=46 // loop_pre_header
                  _
                $region49: #{conv_transpose_silu.1} parent=46 // loop_header
                  %s189 = sphi 0, %s193
                  %p190 = scmp.ge.s32.totalorder %s189, 1
                  %s194 = sphi %s156, %s156
                  %s195 = sphi %s154, %s154
                $region50: #{conv_transpose_silu.1} parent=46 // loop_header_branch
                  %192 = sbr.rel (%p190) target = $region54
                $region51: #{conv_transpose_silu.1} parent=46 // loop_body
                  %v196 = vld [vmem:[%s194] sm:$0xff]
                  %197 = vst [vmem:[%s195] sm:$0xff] %v196
                  %v198 = vld [vmem:[%s194 + $0x20] sm:$0xff]
                  %199 = vst [vmem:[%s195 + $0x8] sm:$0xff] %v198
                  %v200 = vld [vmem:[%s194 + $0x40] sm:$0xff]
                  %201 = vst [vmem:[%s195 + $0x10] sm:$0xff] %v200
                  %v202 = vld [vmem:[%s194 + $0x60] sm:$0xff]
                  %203 = vst [vmem:[%s195 + $0x18] sm:$0xff] %v202
                  %v204 = vld [vmem:[%s194 + $0x80] sm:$0xff]
                  %205 = vst [vmem:[%s195 + $0x20] sm:$0xff] %v204
                  %v206 = vld [vmem:[%s194 + $0xa0] sm:$0xff]
                  %207 = vst [vmem:[%s195 + $0x28] sm:$0xff] %v206
                  %v208 = vld [vmem:[%s194 + $0xc0] sm:$0xff]
                  %209 = vst [vmem:[%s195 + $0x30] sm:$0xff] %v208
                $region52: #{conv_transpose_silu.1} parent=46 // loop_footer
                  %s193 = sadd.s32 1, %s189
                $region53: #{conv_transpose_silu.1} parent=46 // loop_footer_branch
                  %188 = sbr.rel target = $region49
                $region54: #{conv_transpose_silu.1} parent=46 // loop_exit
                  _
              $region47: #{conv_transpose_silu.1} parent=31 // pred_fallthru
                _
              // Predicated region
              $region55: #{conv_transpose_silu.1} parent=31 // pred_check
                _
              $region56: #{conv_transpose_silu.1} parent=31 // pred_check_branch
                %211 = sbr.rel target = $region58
              $region57: #{conv_transpose_silu.1} parent=31 // pred_region
                _
              $region58: #{conv_transpose_silu.1} parent=31 // pred_fallthru
                _
            $region32: #{conv_transpose_silu.1} parent=27 // pred_fallthru
              _
            // Predicated region
            $region33: #{conv_transpose_silu.1} parent=27 // pred_check
              _
            $region34: #{conv_transpose_silu.1} parent=27 // pred_check_branch
              %162 = sbr.rel target = $region36
            $region35: #{conv_transpose_silu.1} parent=27 // pred_region
              loop: start=0, step=1, limit=1
              $region37: #{conv_transpose_silu.1} parent=35 // loop_pre_header
                _
              $region38: #{conv_transpose_silu.1} parent=35 // loop_header
                %s165 = sphi 0, %s169
                %p166 = scmp.ge.s32.totalorder %s165, 1
                %s170 = sphi %s156, %s156
                %s171 = sphi %s154, %s154
              $region39: #{conv_transpose_silu.1} parent=35 // loop_header_branch
                %168 = sbr.rel (%p166) target = $region43
              $region40: #{conv_transpose_silu.1} parent=35 // loop_body
                %v172 = vld [vmem:[%s170] sm:$0xff]
                %173 = vst [vmem:[%s171] sm:$0xff] %v172
                %v174 = vld [vmem:[%s170 + $0x20] sm:$0xff]
                %175 = vst [vmem:[%s171 + $0x8] sm:$0xff] %v174
                %v176 = vld [vmem:[%s170 + $0x40] sm:$0xff]
                %177 = vst [vmem:[%s171 + $0x10] sm:$0xff] %v176
                %v178 = vld [vmem:[%s170 + $0x60] sm:$0xff]
                %179 = vst [vmem:[%s171 + $0x18] sm:$0xff] %v178
                %v180 = vld [vmem:[%s170 + $0x80] sm:$0xff]
                %181 = vst [vmem:[%s171 + $0x20] sm:$0xff] %v180
                %v182 = vld [vmem:[%s170 + $0xa0] sm:$0xff]
                %183 = vst [vmem:[%s171 + $0x28] sm:$0xff] %v182
                %v184 = vld [vmem:[%s170 + $0xc0] sm:$0xff]
                %185 = vst [vmem:[%s171 + $0x30] sm:$0xff] %v184
              $region41: #{conv_transpose_silu.1} parent=35 // loop_footer
                %s169 = sadd.s32 1, %s165
              $region42: #{conv_transpose_silu.1} parent=35 // loop_footer_branch
                %164 = sbr.rel target = $region38
              $region43: #{conv_transpose_silu.1} parent=35 // loop_exit
                _
            $region36: #{conv_transpose_silu.1} parent=27 // pred_fallthru
              _
          $region28: #{conv_transpose_silu.1} parent=23 // pred_fallthru
            _
          %212 = vnop
        $region24: #{conv_transpose_silu.1} parent=19 // pred_fallthru
          _
        // Predicated region
        $region59: #{conv_transpose_silu.1} parent=19 // pred_check
          %p213 = pneg %p94
        $region60: #{conv_transpose_silu.1} parent=19 // pred_check_branch
          %215 = sbr.rel (%p213) target = $region62
        $region61: #{conv_transpose_silu.1} parent=19 // pred_region
          %s216 = smul.u32 16, %s21
          %p217 = scmp.lt.s32.totalorder %s20, 1
          %s218 = scalar_select %p217, %s20, 1
          %p219 = scmp.lt.s32.totalorder %s216, 63
          %s220 = scalar_select %p219, %s216, 63
          %s221 = smul.addr %s218, 64
          %s222 = sadd.s32 %s220, %s221
          %s223 = smul.addr %s222, 8
          %s224 = scalar_lea.vmem %s2, %s223
          %s225 = smul.u32 16, %s21
        $region62: #{conv_transpose_silu.1} parent=19 // pred_fallthru
          _
      $region20: #{conv_transpose_silu.1} parent=5 // pred_fallthru
        _
      %p226 = scmp.le.s32.totalorder 1, %s13
      %p227 = scmp.lt.s32.totalorder %s13, 9
      %p228 = pnand %p226, %p227
      %p229 = pneg %p228
      // Predicated region
      $region63: #{conv_transpose_silu.1} parent=5 // pred_check
        _
      $region64: #{conv_transpose_silu.1} parent=5 // pred_check_branch
        %231 = sbr.rel (%p228) target = $region66
      $region65: #{conv_transpose_silu.1} parent=5 // pred_region
        %s232 = ssub.s32 %s13, 1
        %s233 = sand.u32 %s59, 1
        %s234 = sand.u32 %s59, 1
        %s235 = smul.addr %s234, 56
        %s236 = scalar_lea.vmem [#allocation5], %s235
        // Predicated region
        $region67: #{conv_transpose_silu.1} parent=65 // pred_check
          %p237 = pneg %p72
        $region68: #{conv_transpose_silu.1} parent=65 // pred_check_branch
          %239 = sbr.rel (%p237) target = $region70
        $region69: #{conv_transpose_silu.1} parent=65 // pred_region
          _
        $region70: #{conv_transpose_silu.1} parent=65 // pred_fallthru
          _
        %p240 = pneg %p46
        %p241 = pneg %p43
        %s242 = sand.u32 %s59, 1
        %s243 = sand.u32 %s59, 1
        %s244 = smul.addr %s243, 56
        %s245 = scalar_lea.vmem [#allocation5], %s244
        %p246 = pneg %p72
        %p247 = pneg %p69
        %s248 = smul.u32 16, %s23
        %p249 = scmp.lt.s32.totalorder %s22, 1
        %s250 = scalar_select %p249, %s22, 1
        %p251 = scmp.lt.s32.totalorder %s248, 63
        %s252 = scalar_select %p251, %s248, 63
        %s253 = smul.addr %s250, 64
        %s254 = sadd.s32 %s252, %s253
        %s255 = smul.addr %s254, 8
        %s256 = scalar_lea.vmem %s2, %s255
        %p257 = pneg %p100
        %p258 = pneg %p97
        %p259 = pneg %p126
        %p260 = pneg %p123
        %s261 = sand.u32 %s113, 1
        %s262 = scalar_lea.sflag [#allocation7], %s261
        %s263 = sand.u32 %s113, 1
        %s264 = smul.addr %s263, 8
        %s265 = scalar_lea.vmem [#allocation6], %s264
        %s266 = smul.u32 16, %s23
        %p267 = scmp.lt.s32.totalorder %s22, 1
        %s268 = scalar_select %p267, %s22, 1
        %p269 = scmp.lt.s32.totalorder %s266, 63
        %s270 = scalar_select %p269, %s266, 63
        %s271 = smul.addr %s268, 64
        %s272 = sadd.s32 %s270, %s271
        %s273 = smul.addr %s272, 8
        %s274 = scalar_lea.vmem %s2, %s273
        %s275 = smul.u32 16, %s23
        %p276 = scmp.eq.s32.totalorder %s23, 0
        // Predicated region
        $region71: #{conv_transpose_silu.1} parent=65 // pred_check
          %p277 = pneg %p276
        $region72: #{conv_transpose_silu.1} parent=65 // pred_check_branch
          %279 = sbr.rel (%p277) target = $region74
        $region73: #{conv_transpose_silu.1} parent=65 // pred_region
          %vm280 = vcmask 195584
          %281 = vst.msk [vmem:[#allocation2] sm:$0xff] %vm280, 0.0
          %282 = vst.msk [vmem:[#allocation2 + $0x8] sm:$0xff] %vm280, 0.0
          %283 = vst.msk [vmem:[#allocation2 + $0x10] sm:$0xff] %vm280, 0.0
          %284 = vst.msk [vmem:[#allocation2 + $0x18] sm:$0xff] %vm280, 0.0
          %285 = vst.msk [vmem:[#allocation2 + $0x20] sm:$0xff] %vm280, 0.0
          %286 = vst.msk [vmem:[#allocation2 + $0x28] sm:$0xff] %vm280, 0.0
          %287 = vst.msk [vmem:[#allocation2 + $0x30] sm:$0xff] %vm280, 0.0
        $region74: #{conv_transpose_silu.1} parent=65 // pred_fallthru
          _
        %v288 = vld [vmem:[#allocation2] sm:$0xff]
        %v289 = vld [vmem:[#allocation2 + $0x8] sm:$0xff]
        %v290 = vld [vmem:[#allocation2 + $0x10] sm:$0xff]
        %v291 = vld [vmem:[#allocation2 + $0x18] sm:$0xff]
        %v292 = vld [vmem:[#allocation2 + $0x20] sm:$0xff]
        %v293 = vld [vmem:[#allocation2 + $0x28] sm:$0xff]
        %v294 = vld [vmem:[#allocation2 + $0x30] sm:$0xff]
        %v295 = vld [vmem:[%s236] sm:$0xff]
        %v296 = vld [vmem:[%s236 + $0x8] sm:$0xff]
        %v297 = vld [vmem:[%s236 + $0x10] sm:$0xff]
        %v298 = vld [vmem:[%s236 + $0x18] sm:$0xff]
        %v299 = vld [vmem:[%s236 + $0x20] sm:$0xff]
        %v300 = vld [vmem:[%s236 + $0x28] sm:$0xff]
        %v301 = vld [vmem:[%s236 + $0x30] sm:$0xff]
        %v302 = vld [vmem:[%s274] sm:$0xff]
        %v303 = vld [vmem:[%s274 + $0x8] sm:$0xff]
        %v304 = vld [vmem:[%s274 + $0x10] sm:$0xff]
        %v305 = vld [vmem:[%s274 + $0x18] sm:$0xff]
        %v306 = vld [vmem:[%s274 + $0x20] sm:$0xff]
        %v307 = vld [vmem:[%s274 + $0x28] sm:$0xff]
        %v308 = vld [vmem:[%s274 + $0x30] sm:$0xff]
        %v309 = vld [vmem:[%s274 + $0x38] sm:$0xff]
        %v310 = vld [vmem:[%s274 + $0x40] sm:$0xff]
        %v311 = vld [vmem:[%s274 + $0x48] sm:$0xff]
        %v312 = vld [vmem:[%s274 + $0x50] sm:$0xff]
        %v313 = vld [vmem:[%s274 + $0x58] sm:$0xff]
        %v314 = vld [vmem:[%s274 + $0x60] sm:$0xff]
        %v315 = vld [vmem:[%s274 + $0x68] sm:$0xff]
        %v316 = vld [vmem:[%s274 + $0x70] sm:$0xff]
        %v317 = vld [vmem:[%s274 + $0x78] sm:$0xff]
        %318 = vmatprep.subr.mxu0 0.0
        %319 = vmatpush1.msra.mxu0 %v302
        %320 = vmatprep.subr.mxu0 0.0
        %321 = vmatpush1.msra.mxu0 %v303
        %322 = vmatprep.subr.mxu0 0.0
        %323 = vmatpush1.msra.mxu0 %v304
        %324 = vmatprep.subr.mxu0 0.0
        %325 = vmatpush1.msra.mxu0 %v305
        %326 = vmatprep.subr.mxu0 0.0
        %327 = vmatpush1.msra.mxu0 %v306
        %328 = vmatprep.subr.mxu0 0.0
        %329 = vmatpush1.msra.mxu0 %v307
        %330 = vmatprep.subr.mxu0 0.0
        %331 = vmatpush1.msra.mxu0 %v308
        %332 = vmatprep.subr.mxu0 0.0
        %333 = vmatpush1.msra.mxu0 %v309
        %334 = vmatprep.subr.mxu0 0.0
        %335 = vmatpush1.msra.mxu0 %v310
        %336 = vmatprep.subr.mxu0 0.0
        %337 = vmatpush1.msra.mxu0 %v311
        %338 = vmatprep.subr.mxu0 0.0
        %339 = vmatpush1.msra.mxu0 %v312
        %340 = vmatprep.subr.mxu0 0.0
        %341 = vmatpush1.msra.mxu0 %v313
        %342 = vmatprep.subr.mxu0 0.0
        %343 = vmatpush1.msra.mxu0 %v314
        %344 = vmatprep.subr.mxu0 0.0
        %345 = vmatpush1.msra.mxu0 %v315
        %346 = vmatprep.subr.mxu0 0.0
        %347 = vmatpush1.msra.mxu0 %v316
        %348 = vmatprep.subr.mxu0 0.0
        %349 = vmatpush1.msra.mxu0 %v317
        %350 = vmatprep.subr.mxu0 0.0
        %351 = vmatpush1.msra.mxu0 0.0
        %352 = vmatprep.subr.mxu0 0.0
        %353 = vmatpush1.msra.mxu0 0.0
        %354 = vmatprep.subr.mxu0 0.0
        %355 = vmatpush1.msra.mxu0 0.0
        %356 = vmatprep.subr.mxu0 0.0
        %357 = vmatpush1.msra.mxu0 0.0
        %358 = vmatprep.subr.mxu0 0.0
        %359 = vmatpush1.msra.mxu0 0.0
        %360 = vmatprep.subr.mxu0 0.0
        %361 = vmatpush1.msra.mxu0 0.0
        %362 = vmatprep.subr.mxu0 0.0
        %363 = vmatpush1.msra.mxu0 0.0
        %364 = vmatprep.subr.mxu0 0.0
        %365 = vmatpush1.msra.mxu0 0.0
        %366 = vmatprep.subr.mxu0 0.0
        %367 = vmatpush1.msra.mxu0 0.0
        %368 = vmatprep.subr.mxu0 0.0
        %369 = vmatpush1.msra.mxu0 0.0
        %370 = vmatprep.subr.mxu0 0.0
        %371 = vmatpush1.msra.mxu0 0.0
        %372 = vmatprep.subr.mxu0 0.0
        %373 = vmatpush1.msra.mxu0 0.0
        %374 = vmatprep.subr.mxu0 0.0
        %375 = vmatpush1.msra.mxu0 0.0
        %376 = vmatprep.subr.mxu0 0.0
        %377 = vmatpush1.msra.mxu0 0.0
        %378 = vmatprep.subr.mxu0 0.0
        %379 = vmatpush1.msra.mxu0 0.0
        %380 = vmatprep.subr.mxu0 0.0
        %381 = vmatpush1.msra.mxu0 0.0
        %382 = vmatprep.mubr.f32.mxu0 0.0
        %383 = vmatmul.mubr.f32.gmra.mrb[0].mxu0 %v295
        %v384 = vpop.f32.mrb[0].mxu0
        %v385 = vadd.f32 0.0, %v384
        %v386 = vpop.f32.mrb[0].mxu0
        %387 = vmatprep.mubr.f32.mxu0 0.0
        %388 = vmatmul.mubr.f32.gmra.mrb[0].mxu0 %v296
        %v389 = vpop.f32.mrb[0].mxu0
        %v390 = vadd.f32 0.0, %v389
        %v391 = vpop.f32.mrb[0].mxu0
        %392 = vmatprep.mubr.f32.mxu0 0.0
        %393 = vmatmul.mubr.f32.gmra.mrb[0].mxu0 %v297
        %v394 = vpop.f32.mrb[0].mxu0
        %v395 = vadd.f32 0.0, %v394
        %v396 = vpop.f32.mrb[0].mxu0
        %397 = vmatprep.mubr.f32.mxu0 0.0
        %398 = vmatmul.mubr.f32.gmra.mrb[0].mxu0 %v298
        %v399 = vpop.f32.mrb[0].mxu0
        %v400 = vadd.f32 0.0, %v399
        %v401 = vpop.f32.mrb[0].mxu0
        %402 = vmatprep.mubr.f32.mxu0 0.0
        %403 = vmatmul.mubr.f32.gmra.mrb[0].mxu0 %v299
        %v404 = vpop.f32.mrb[0].mxu0
        %v405 = vadd.f32 0.0, %v404
        %v406 = vpop.f32.mrb[0].mxu0
        %407 = vmatprep.mubr.f32.mxu0 0.0
        %408 = vmatmul.mubr.f32.gmra.mrb[0].mxu0 %v300
        %v409 = vpop.f32.mrb[0].mxu0
        %v410 = vadd.f32 0.0, %v409
        %v411 = vpop.f32.mrb[0].mxu0
        %412 = vmatprep.mubr.f32.mxu0 0.0
        %413 = vmatmul.mubr.f32.gmra.mrb[0].mxu0 %v301
        %v414 = vpop.f32.mrb[0].mxu0
        %v415 = vadd.f32 0.0, %v414
        %v416 = vpop.f32.mrb[0].mxu0
        %417 = vdwg.mxu0
        %v418 = vadd.f32 %v288, %v385
        %v419 = vadd.f32 %v289, %v390
        %v420 = vadd.f32 %v290, %v395
        %v421 = vadd.f32 %v291, %v400
        %v422 = vadd.f32 %v292, %v405
        %v423 = vadd.f32 %v293, %v410
        %v424 = vadd.f32 %v294, %v415
        %vm425 = vcmask 195584
        %426 = vst.msk [vmem:[#allocation2] sm:$0xff] %vm425, %v418
        %427 = vst.msk [vmem:[#allocation2 + $0x8] sm:$0xff] %vm425, %v419
        %428 = vst.msk [vmem:[#allocation2 + $0x10] sm:$0xff] %vm425, %v420
        %429 = vst.msk [vmem:[#allocation2 + $0x18] sm:$0xff] %vm425, %v421
        %430 = vst.msk [vmem:[#allocation2 + $0x20] sm:$0xff] %vm425, %v422
        %431 = vst.msk [vmem:[#allocation2 + $0x28] sm:$0xff] %vm425, %v423
        %432 = vst.msk [vmem:[#allocation2 + $0x30] sm:$0xff] %vm425, %v424
        %p433 = scmp.eq.s32.totalorder %s23, 3
        // Predicated region
        $region75: #{conv_transpose_silu.1} parent=65 // pred_check
          %p434 = pneg %p433
        $region76: #{conv_transpose_silu.1} parent=65 // pred_check_branch
          %436 = sbr.rel (%p434) target = $region78
        $region77: #{conv_transpose_silu.1} parent=65 // pred_region
          %vm437 = vcmask 130048
          %438 = vst.msk [vmem:[#allocation3] sm:$0xff] %vm437, 0.0
          %vm439 = vcmask 128000
          %440 = vst.msk [vmem:[#allocation3 + $0x8] sm:$0x3f] %vm439, 0.0
          %441 = vst.msk [vmem:[#allocation3 + $0x10] sm:$0xff] %vm437, 0.0
          %442 = vst.msk [vmem:[#allocation3 + $0x18] sm:$0x3f] %vm439, 0.0
          %443 = vst.msk [vmem:[#allocation3 + $0x20] sm:$0xff] %vm437, 0.0
          %444 = vst.msk [vmem:[#allocation3 + $0x28] sm:$0x3f] %vm439, 0.0
          %445 = vst.msk [vmem:[#allocation3 + $0x30] sm:$0xff] %vm437, 0.0
          %446 = vst.msk [vmem:[#allocation3 + $0x38] sm:$0x3f] %vm439, 0.0
          %447 = vst.msk [vmem:[#allocation3 + $0x40] sm:$0xff] %vm437, 0.0
          %448 = vst.msk [vmem:[#allocation3 + $0x48] sm:$0x3f] %vm439, 0.0
          %449 = vst.msk [vmem:[#allocation3 + $0x50] sm:$0xff] %vm437, 0.0
          %450 = vst.msk [vmem:[#allocation3 + $0x58] sm:$0x3f] %vm439, 0.0
          %451 = vst.msk [vmem:[#allocation3 + $0x60] sm:$0xff] %vm437, 0.0
          %452 = vst.msk [vmem:[#allocation3 + $0x68] sm:$0x3f] %vm439, 0.0
          %453 = vst.msk [vmem:[#allocation3 + $0x70] sm:$0xff] %vm437, 0.0
          %454 = vst.msk [vmem:[#allocation3 + $0x78] sm:$0x3f] %vm439, 0.0
          %455 = vst.msk [vmem:[#allocation3 + $0x80] sm:$0xff] %vm437, 0.0
          %456 = vst.msk [vmem:[#allocation3 + $0x88] sm:$0x3f] %vm439, 0.0
          %457 = vst.msk [vmem:[#allocation3 + $0x90] sm:$0xff] %vm437, 0.0
          %458 = vst.msk [vmem:[#allocation3 + $0x98] sm:$0x3f] %vm439, 0.0
          %459 = vst.msk [vmem:[#allocation3 + $0xa0] sm:$0xff] %vm437, 0.0
          %460 = vst.msk [vmem:[#allocation3 + $0xa8] sm:$0x3f] %vm439, 0.0
          %461 = vst.msk [vmem:[#allocation3 + $0xb0] sm:$0xff] %vm437, 0.0
          %462 = vst.msk [vmem:[#allocation3 + $0xb8] sm:$0x3f] %vm439, 0.0
          %463 = vst.msk [vmem:[#allocation3 + $0xc0] sm:$0xff] %vm437, 0.0
          %464 = vst.msk [vmem:[#allocation3 + $0xc8] sm:$0x3f] %vm439, 0.0
          %465 = vst.msk [vmem:[#allocation3 + $0xd0] sm:$0xff] %vm437, 0.0
          %466 = vst.msk [vmem:[#allocation3 + $0xd8] sm:$0x3f] %vm439, 0.0
          %467 = vst.msk [vmem:[#allocation3 + $0xe0] sm:$0xff] %vm437, 0.0
          %468 = vst.msk [vmem:[#allocation3 + $0xe8] sm:$0x3f] %vm439, 0.0
          %469 = vst.msk [vmem:[#allocation3 + $0xf0] sm:$0xff] %vm437, 0.0
          %470 = vst.msk [vmem:[#allocation3 + $0xf8] sm:$0x3f] %vm439, 0.0
          %471 = vst.msk [vmem:[#allocation3 + $0x100] sm:$0xff] %vm437, 0.0
          %472 = vst.msk [vmem:[#allocation3 + $0x108] sm:$0x3f] %vm439, 0.0
          %473 = vst.msk [vmem:[#allocation3 + $0x110] sm:$0xff] %vm437, 0.0
          %474 = vst.msk [vmem:[#allocation3 + $0x118] sm:$0x3f] %vm439, 0.0
          %475 = vst.msk [vmem:[#allocation3 + $0x120] sm:$0xff] %vm437, 0.0
          %476 = vst.msk [vmem:[#allocation3 + $0x128] sm:$0x3f] %vm439, 0.0
          %477 = vst.msk [vmem:[#allocation3 + $0x130] sm:$0xff] %vm437, 0.0
          %478 = vst.msk [vmem:[#allocation3 + $0x138] sm:$0x3f] %vm439, 0.0
          %479 = vst.msk [vmem:[#allocation3 + $0x140] sm:$0xff] %vm437, 0.0
          %480 = vst.msk [vmem:[#allocation3 + $0x148] sm:$0x3f] %vm439, 0.0
          %481 = vst.msk [vmem:[#allocation3 + $0x150] sm:$0xff] %vm437, 0.0
          %482 = vst.msk [vmem:[#allocation3 + $0x158] sm:$0x3f] %vm439, 0.0
          %483 = vst.msk [vmem:[#allocation3 + $0x160] sm:$0xff] %vm437, 0.0
          %484 = vst.msk [vmem:[#allocation3 + $0x168] sm:$0x3f] %vm439, 0.0
          %485 = vst.msk [vmem:[#allocation3 + $0x170] sm:$0xff] %vm437, 0.0
          %486 = vst.msk [vmem:[#allocation3 + $0x178] sm:$0x3f] %vm439, 0.0
          %487 = vst.msk [vmem:[#allocation3 + $0x180] sm:$0xff] %vm437, 0.0
          %488 = vst.msk [vmem:[#allocation3 + $0x188] sm:$0x3f] %vm439, 0.0
          %489 = vst.msk [vmem:[#allocation3 + $0x190] sm:$0xff] %vm437, 0.0
          %490 = vst.msk [vmem:[#allocation3 + $0x198] sm:$0x3f] %vm439, 0.0
          %491 = vst.msk [vmem:[#allocation3 + $0x1a0] sm:$0xff] %vm437, 0.0
          %492 = vst.msk [vmem:[#allocation3 + $0x1a8] sm:$0x3f] %vm439, 0.0
          %493 = vst.msk [vmem:[#allocation3 + $0x1b0] sm:$0xff] %vm437, 0.0
          %494 = vst.msk [vmem:[#allocation3 + $0x1b8] sm:$0x3f] %vm439, 0.0
          %495 = vst.msk [vmem:[#allocation3 + $0x1c0] sm:$0xff] %vm437, 0.0
          %496 = vst.msk [vmem:[#allocation3 + $0x1c8] sm:$0x3f] %vm439, 0.0
          %497 = vst.msk [vmem:[#allocation3 + $0x1d0] sm:$0xff] %vm437, 0.0
          %498 = vst.msk [vmem:[#allocation3 + $0x1d8] sm:$0x3f] %vm439, 0.0
          %499 = vst.msk [vmem:[#allocation3 + $0x1e0] sm:$0xff] %vm437, 0.0
          %500 = vst.msk [vmem:[#allocation3 + $0x1e8] sm:$0x3f] %vm439, 0.0
          %501 = vst.msk [vmem:[#allocation3 + $0x1f0] sm:$0xff] %vm437, 0.0
          %502 = vst.msk [vmem:[#allocation3 + $0x1f8] sm:$0x3f] %vm439, 0.0
          %503 = vst.msk [vmem:[#allocation3 + $0x200] sm:$0xff] %vm437, 0.0
          %504 = vst.msk [vmem:[#allocation3 + $0x208] sm:$0x3f] %vm439, 0.0
          %505 = vst.msk [vmem:[#allocation3 + $0x210] sm:$0xff] %vm437, 0.0
          %506 = vst.msk [vmem:[#allocation3 + $0x218] sm:$0x3f] %vm439, 0.0
          %507 = vst.msk [vmem:[#allocation3 + $0x220] sm:$0xff] %vm437, 0.0
          %508 = vst.msk [vmem:[#allocation3 + $0x228] sm:$0x3f] %vm439, 0.0
          %509 = vst.msk [vmem:[#allocation3 + $0x230] sm:$0xff] %vm437, 0.0
          %510 = vst.msk [vmem:[#allocation3 + $0x238] sm:$0x3f] %vm439, 0.0
          %511 = vst.msk [vmem:[#allocation3 + $0x240] sm:$0xff] %vm437, 0.0
          %512 = vst.msk [vmem:[#allocation3 + $0x248] sm:$0x3f] %vm439, 0.0
          %513 = vst.msk [vmem:[#allocation3 + $0x250] sm:$0xff] %vm437, 0.0
          %514 = vst.msk [vmem:[#allocation3 + $0x258] sm:$0x3f] %vm439, 0.0
          %515 = vst.msk [vmem:[#allocation3 + $0x260] sm:$0xff] %vm437, 0.0
          %516 = vst.msk [vmem:[#allocation3 + $0x268] sm:$0x3f] %vm439, 0.0
          %517 = vst.msk [vmem:[#allocation3 + $0x270] sm:$0xff] %vm437, 0.0
          %518 = vst.msk [vmem:[#allocation3 + $0x278] sm:$0x3f] %vm439, 0.0
          %519 = vst.msk [vmem:[#allocation3 + $0x280] sm:$0xff] %vm437, 0.0
          %520 = vst.msk [vmem:[#allocation3 + $0x288] sm:$0x3f] %vm439, 0.0
          %521 = vst.msk [vmem:[#allocation3 + $0x290] sm:$0xff] %vm437, 0.0
          %522 = vst.msk [vmem:[#allocation3 + $0x298] sm:$0x3f] %vm439, 0.0
          %523 = vst.msk [vmem:[#allocation3 + $0x2a0] sm:$0xff] %vm437, 0.0
          %524 = vst.msk [vmem:[#allocation3 + $0x2a8] sm:$0x3f] %vm439, 0.0
          %525 = vst.msk [vmem:[#allocation3 + $0x2b0] sm:$0xff] %vm437, 0.0
          %526 = vst.msk [vmem:[#allocation3 + $0x2b8] sm:$0x3f] %vm439, 0.0
          %527 = vst.msk [vmem:[#allocation3 + $0x2c0] sm:$0xff] %vm437, 0.0
          %528 = vst.msk [vmem:[#allocation3 + $0x2c8] sm:$0x3f] %vm439, 0.0
          %529 = vst.msk [vmem:[#allocation3 + $0x2d0] sm:$0xff] %vm437, 0.0
          %530 = vst.msk [vmem:[#allocation3 + $0x2d8] sm:$0x3f] %vm439, 0.0
          %531 = vst.msk [vmem:[#allocation3 + $0x2e0] sm:$0xff] %vm437, 0.0
          %532 = vst.msk [vmem:[#allocation3 + $0x2e8] sm:$0x3f] %vm439, 0.0
          %533 = vst.msk [vmem:[#allocation3 + $0x2f0] sm:$0xff] %vm437, 0.0
          %534 = vst.msk [vmem:[#allocation3 + $0x2f8] sm:$0x3f] %vm439, 0.0
          %535 = vst.msk [vmem:[#allocation3 + $0x300] sm:$0xff] %vm437, 0.0
          %536 = vst.msk [vmem:[#allocation3 + $0x308] sm:$0x3f] %vm439, 0.0
          %537 = vst.msk [vmem:[#allocation3 + $0x310] sm:$0xff] %vm437, 0.0
          %538 = vst.msk [vmem:[#allocation3 + $0x318] sm:$0x3f] %vm439, 0.0
          %539 = vst.msk [vmem:[#allocation3 + $0x320] sm:$0xff] %vm437, 0.0
          %540 = vst.msk [vmem:[#allocation3 + $0x328] sm:$0x3f] %vm439, 0.0
          %541 = vst.msk [vmem:[#allocation3 + $0x330] sm:$0xff] %vm437, 0.0
          %542 = vst.msk [vmem:[#allocation3 + $0x338] sm:$0x3f] %vm439, 0.0
          %543 = vst.msk [vmem:[#allocation3 + $0x340] sm:$0xff] %vm437, 0.0
          %544 = vst.msk [vmem:[#allocation3 + $0x348] sm:$0x3f] %vm439, 0.0
          %545 = vst.msk [vmem:[#allocation3 + $0x350] sm:$0xff] %vm437, 0.0
          %546 = vst.msk [vmem:[#allocation3 + $0x358] sm:$0x3f] %vm439, 0.0
          %547 = vst.msk [vmem:[#allocation3 + $0x360] sm:$0xff] %vm437, 0.0
          %548 = vst.msk [vmem:[#allocation3 + $0x368] sm:$0x3f] %vm439, 0.0
          %549 = vst.msk [vmem:[#allocation3 + $0x370] sm:$0xff] %vm437, 0.0
          %550 = vst.msk [vmem:[#allocation3 + $0x378] sm:$0x3f] %vm439, 0.0
          %v551 = vld [vmem:[#allocation2] sm:$0xff]
          %v552 = vld [vmem:[#allocation2 + $0x8] sm:$0xff]
          %v553 = vld [vmem:[#allocation2 + $0x10] sm:$0xff]
          %v554 = vld [vmem:[#allocation2 + $0x18] sm:$0xff]
          %v555 = vld [vmem:[#allocation2 + $0x20] sm:$0xff]
          %v556 = vld [vmem:[#allocation2 + $0x28] sm:$0xff]
          %v557 = vld [vmem:[#allocation2 + $0x30] sm:$0xff]
          %v565 = vcombine.high %v551, %v551
          %v567 = vunpack.c.l.s4 1966171168
          %v568 = vunpack.c.0.s8 %v567
          %v569 = vlaneseq
          %v570 = vshrl.u32 %v569, 7
          %v571 = vsub.s32 %v568, %v570
          %v572 = vrot.slane %v551, %v571
          %v574 = vunpack.c.l.s4 1966171168
          %v575 = vunpack.c.0.s8 %v574
          %v576 = vlaneseq
          %v577 = vshrl.u32 %v576, 7
          %v578 = vsub.s32 %v575, %v577
          %v579 = vrot.slane %v565, %v578
          %v580 = vcombine.high %v572, %v572
          %v581 = vcombine.high %v579, %v579
          %v583 = vunpack.c.l.s4 1966171168
          %v584 = vunpack.c.0.s8 %v583
          %v585 = vlaneseq
          %v586 = vshrl.u32 %v585, 7
          %v587 = vsub.s32 %v584, %v586
          %v588 = vrot.slane %v572, %v587
          %v590 = vunpack.c.l.s4 1966171168
          %v591 = vunpack.c.0.s8 %v590
          %v592 = vlaneseq
          %v593 = vshrl.u32 %v592, 7
          %v594 = vsub.s32 %v591, %v593
          %v595 = vrot.slane %v579, %v594
          %v597 = vunpack.c.l.s4 1966171168
          %v598 = vunpack.c.0.s8 %v597
          %v599 = vlaneseq
          %v600 = vshrl.u32 %v599, 7
          %v601 = vsub.s32 %v598, %v600
          %v602 = vrot.slane %v580, %v601
          %v604 = vunpack.c.l.s4 1966171168
          %v605 = vunpack.c.0.s8 %v604
          %v606 = vlaneseq
          %v607 = vshrl.u32 %v606, 7
          %v608 = vsub.s32 %v605, %v607
          %v609 = vrot.slane %v581, %v608
          %v610 = vcombine.high %v588, %v588
          %v611 = vcombine.high %v595, %v595
          %v612 = vcombine.high %v602, %v602
          %v613 = vcombine.high %v609, %v609
          %v614 = vcombine.high %v552, %v552
          %v616 = vunpack.c.l.s4 1966171168
          %v617 = vunpack.c.0.s8 %v616
          %v618 = vlaneseq
          %v619 = vshrl.u32 %v618, 7
          %v620 = vsub.s32 %v617, %v619
          %v621 = vrot.slane %v552, %v620
          %v623 = vunpack.c.l.s4 1966171168
          %v624 = vunpack.c.0.s8 %v623
          %v625 = vlaneseq
          %v626 = vshrl.u32 %v625, 7
          %v627 = vsub.s32 %v624, %v626
          %v628 = vrot.slane %v614, %v627
          %v629 = vcombine.high %v621, %v621
          %v630 = vcombine.high %v628, %v628
          %v632 = vunpack.c.l.s4 1966171168
          %v633 = vunpack.c.0.s8 %v632
          %v634 = vlaneseq
          %v635 = vshrl.u32 %v634, 7
          %v636 = vsub.s32 %v633, %v635
          %v637 = vrot.slane %v621, %v636
          %v639 = vunpack.c.l.s4 1966171168
          %v640 = vunpack.c.0.s8 %v639
          %v641 = vlaneseq
          %v642 = vshrl.u32 %v641, 7
          %v643 = vsub.s32 %v640, %v642
          %v644 = vrot.slane %v628, %v643
          %v646 = vunpack.c.l.s4 1966171168
          %v647 = vunpack.c.0.s8 %v646
          %v648 = vlaneseq
          %v649 = vshrl.u32 %v648, 7
          %v650 = vsub.s32 %v647, %v649
          %v651 = vrot.slane %v629, %v650
          %v653 = vunpack.c.l.s4 1966171168
          %v654 = vunpack.c.0.s8 %v653
          %v655 = vlaneseq
          %v656 = vshrl.u32 %v655, 7
          %v657 = vsub.s32 %v654, %v656
          %v658 = vrot.slane %v630, %v657
          %v659 = vcombine.high %v637, %v637
          %v660 = vcombine.high %v644, %v644
          %v661 = vcombine.high %v651, %v651
          %v662 = vcombine.high %v658, %v658
          %v663 = vcombine.high %v553, %v553
          %v665 = vunpack.c.l.s4 1966171168
          %v666 = vunpack.c.0.s8 %v665
          %v667 = vlaneseq
          %v668 = vshrl.u32 %v667, 7
          %v669 = vsub.s32 %v666, %v668
          %v670 = vrot.slane %v553, %v669
          %v672 = vunpack.c.l.s4 1966171168
          %v673 = vunpack.c.0.s8 %v672
          %v674 = vlaneseq
          %v675 = vshrl.u32 %v674, 7
          %v676 = vsub.s32 %v673, %v675
          %v677 = vrot.slane %v663, %v676
          %v678 = vcombine.high %v670, %v670
          %v679 = vcombine.high %v677, %v677
          %v681 = vunpack.c.l.s4 1966171168
          %v682 = vunpack.c.0.s8 %v681
          %v683 = vlaneseq
          %v684 = vshrl.u32 %v683, 7
          %v685 = vsub.s32 %v682, %v684
          %v686 = vrot.slane %v670, %v685
          %v688 = vunpack.c.l.s4 1966171168
          %v689 = vunpack.c.0.s8 %v688
          %v690 = vlaneseq
          %v691 = vshrl.u32 %v690, 7
          %v692 = vsub.s32 %v689, %v691
          %v693 = vrot.slane %v677, %v692
          %v695 = vunpack.c.l.s4 1966171168
          %v696 = vunpack.c.0.s8 %v695
          %v697 = vlaneseq
          %v698 = vshrl.u32 %v697, 7
          %v699 = vsub.s32 %v696, %v698
          %v700 = vrot.slane %v678, %v699
          %v702 = vunpack.c.l.s4 1966171168
          %v703 = vunpack.c.0.s8 %v702
          %v704 = vlaneseq
          %v705 = vshrl.u32 %v704, 7
          %v706 = vsub.s32 %v703, %v705
          %v707 = vrot.slane %v679, %v706
          %v708 = vcombine.high %v686, %v686
          %v709 = vcombine.high %v693, %v693
          %v710 = vcombine.high %v700, %v700
          %v711 = vcombine.high %v707, %v707
          %v712 = vcombine.high %v554, %v554
          %v714 = vunpack.c.l.s4 1966171168
          %v715 = vunpack.c.0.s8 %v714
          %v716 = vlaneseq
          %v717 = vshrl.u32 %v716, 7
          %v718 = vsub.s32 %v715, %v717
          %v719 = vrot.slane %v554, %v718
          %v721 = vunpack.c.l.s4 1966171168
          %v722 = vunpack.c.0.s8 %v721
          %v723 = vlaneseq
          %v724 = vshrl.u32 %v723, 7
          %v725 = vsub.s32 %v722, %v724
          %v726 = vrot.slane %v712, %v725
          %v727 = vcombine.high %v719, %v719
          %v728 = vcombine.high %v726, %v726
          %v730 = vunpack.c.l.s4 1966171168
          %v731 = vunpack.c.0.s8 %v730
          %v732 = vlaneseq
          %v733 = vshrl.u32 %v732, 7
          %v734 = vsub.s32 %v731, %v733
          %v735 = vrot.slane %v719, %v734
          %v737 = vunpack.c.l.s4 1966171168
          %v738 = vunpack.c.0.s8 %v737
          %v739 = vlaneseq
          %v740 = vshrl.u32 %v739, 7
          %v741 = vsub.s32 %v738, %v740
          %v742 = vrot.slane %v726, %v741
          %v744 = vunpack.c.l.s4 1966171168
          %v745 = vunpack.c.0.s8 %v744
          %v746 = vlaneseq
          %v747 = vshrl.u32 %v746, 7
          %v748 = vsub.s32 %v745, %v747
          %v749 = vrot.slane %v727, %v748
          %v751 = vunpack.c.l.s4 1966171168
          %v752 = vunpack.c.0.s8 %v751
          %v753 = vlaneseq
          %v754 = vshrl.u32 %v753, 7
          %v755 = vsub.s32 %v752, %v754
          %v756 = vrot.slane %v728, %v755
          %v757 = vcombine.high %v735, %v735
          %v758 = vcombine.high %v742, %v742
          %v759 = vcombine.high %v749, %v749
          %v760 = vcombine.high %v756, %v756
          %v761 = vcombine.high %v555, %v555
          %v763 = vunpack.c.l.s4 1966171168
          %v764 = vunpack.c.0.s8 %v763
          %v765 = vlaneseq
          %v766 = vshrl.u32 %v765, 7
          %v767 = vsub.s32 %v764, %v766
          %v768 = vrot.slane %v555, %v767
          %v770 = vunpack.c.l.s4 1966171168
          %v771 = vunpack.c.0.s8 %v770
          %v772 = vlaneseq
          %v773 = vshrl.u32 %v772, 7
          %v774 = vsub.s32 %v771, %v773
          %v775 = vrot.slane %v761, %v774
          %v776 = vcombine.high %v768, %v768
          %v777 = vcombine.high %v775, %v775
          %v779 = vunpack.c.l.s4 1966171168
          %v780 = vunpack.c.0.s8 %v779
          %v781 = vlaneseq
          %v782 = vshrl.u32 %v781, 7
          %v783 = vsub.s32 %v780, %v782
          %v784 = vrot.slane %v768, %v783
          %v786 = vunpack.c.l.s4 1966171168
          %v787 = vunpack.c.0.s8 %v786
          %v788 = vlaneseq
          %v789 = vshrl.u32 %v788, 7
          %v790 = vsub.s32 %v787, %v789
          %v791 = vrot.slane %v775, %v790
          %v793 = vunpack.c.l.s4 1966171168
          %v794 = vunpack.c.0.s8 %v793
          %v795 = vlaneseq
          %v796 = vshrl.u32 %v795, 7
          %v797 = vsub.s32 %v794, %v796
          %v798 = vrot.slane %v776, %v797
          %v800 = vunpack.c.l.s4 1966171168
          %v801 = vunpack.c.0.s8 %v800
          %v802 = vlaneseq
          %v803 = vshrl.u32 %v802, 7
          %v804 = vsub.s32 %v801, %v803
          %v805 = vrot.slane %v777, %v804
          %v806 = vcombine.high %v784, %v784
          %v807 = vcombine.high %v791, %v791
          %v808 = vcombine.high %v798, %v798
          %v809 = vcombine.high %v805, %v805
          %v810 = vcombine.high %v556, %v556
          %v812 = vunpack.c.l.s4 1966171168
          %v813 = vunpack.c.0.s8 %v812
          %v814 = vlaneseq
          %v815 = vshrl.u32 %v814, 7
          %v816 = vsub.s32 %v813, %v815
          %v817 = vrot.slane %v556, %v816
          %v819 = vunpack.c.l.s4 1966171168
          %v820 = vunpack.c.0.s8 %v819
          %v821 = vlaneseq
          %v822 = vshrl.u32 %v821, 7
          %v823 = vsub.s32 %v820, %v822
          %v824 = vrot.slane %v810, %v823
          %v825 = vcombine.high %v817, %v817
          %v826 = vcombine.high %v824, %v824
          %v828 = vunpack.c.l.s4 1966171168
          %v829 = vunpack.c.0.s8 %v828
          %v830 = vlaneseq
          %v831 = vshrl.u32 %v830, 7
          %v832 = vsub.s32 %v829, %v831
          %v833 = vrot.slane %v817, %v832
          %v835 = vunpack.c.l.s4 1966171168
          %v836 = vunpack.c.0.s8 %v835
          %v837 = vlaneseq
          %v838 = vshrl.u32 %v837, 7
          %v839 = vsub.s32 %v836, %v838
          %v840 = vrot.slane %v824, %v839
          %v842 = vunpack.c.l.s4 1966171168
          %v843 = vunpack.c.0.s8 %v842
          %v844 = vlaneseq
          %v845 = vshrl.u32 %v844, 7
          %v846 = vsub.s32 %v843, %v845
          %v847 = vrot.slane %v825, %v846
          %v849 = vunpack.c.l.s4 1966171168
          %v850 = vunpack.c.0.s8 %v849
          %v851 = vlaneseq
          %v852 = vshrl.u32 %v851, 7
          %v853 = vsub.s32 %v850, %v852
          %v854 = vrot.slane %v826, %v853
          %v855 = vcombine.high %v833, %v833
          %v856 = vcombine.high %v840, %v840
          %v857 = vcombine.high %v847, %v847
          %v858 = vcombine.high %v854, %v854
          %v859 = vcombine.high %v557, %v557
          %v861 = vunpack.c.l.s4 1966171168
          %v862 = vunpack.c.0.s8 %v861
          %v863 = vlaneseq
          %v864 = vshrl.u32 %v863, 7
          %v865 = vsub.s32 %v862, %v864
          %v866 = vrot.slane %v557, %v865
          %v868 = vunpack.c.l.s4 1966171168
          %v869 = vunpack.c.0.s8 %v868
          %v870 = vlaneseq
          %v871 = vshrl.u32 %v870, 7
          %v872 = vsub.s32 %v869, %v871
          %v873 = vrot.slane %v859, %v872
          %v874 = vcombine.high %v866, %v866
          %v875 = vcombine.high %v873, %v873
          %v877 = vunpack.c.l.s4 1966171168
          %v878 = vunpack.c.0.s8 %v877
          %v879 = vlaneseq
          %v880 = vshrl.u32 %v879, 7
          %v881 = vsub.s32 %v878, %v880
          %v882 = vrot.slane %v866, %v881
          %v884 = vunpack.c.l.s4 1966171168
          %v885 = vunpack.c.0.s8 %v884
          %v886 = vlaneseq
          %v887 = vshrl.u32 %v886, 7
          %v888 = vsub.s32 %v885, %v887
          %v889 = vrot.slane %v873, %v888
          %v891 = vunpack.c.l.s4 1966171168
          %v892 = vunpack.c.0.s8 %v891
          %v893 = vlaneseq
          %v894 = vshrl.u32 %v893, 7
          %v895 = vsub.s32 %v892, %v894
          %v896 = vrot.slane %v874, %v895
          %v898 = vunpack.c.l.s4 1966171168
          %v899 = vunpack.c.0.s8 %v898
          %v900 = vlaneseq
          %v901 = vshrl.u32 %v900, 7
          %v902 = vsub.s32 %v899, %v901
          %v903 = vrot.slane %v875, %v902
          %v904 = vcombine.high %v882, %v882
          %v905 = vcombine.high %v889, %v889
          %v906 = vcombine.high %v896, %v896
          %v907 = vcombine.high %v903, %v903
          %v908 = vlaneseq
          %v909 = vshrl.u32 %v908, 7
          %v910 = vsub.s32 0, %v909
          %v911 = vrot.slane %v588, %v910
          %v912 = vlaneseq
          %v913 = vshrl.u32 %v912, 7
          %v914 = vsub.s32 0, %v913
          %v915 = vrot.slane %v602, %v914
          %v916 = vlaneseq
          %v917 = vshrl.u32 %v916, 7
          %v918 = vsub.s32 0, %v917
          %v919 = vrot.slane %v610, %v918
          %v920 = vlaneseq
          %v921 = vshrl.u32 %v920, 7
          %v922 = vsub.s32 0, %v921
          %v923 = vrot.slane %v612, %v922
          %v924 = vlaneseq
          %v925 = vshrl.u32 %v924, 7
          %v926 = vsub.s32 0, %v925
          %v927 = vrot.slane %v595, %v926
          %v928 = vlaneseq
          %v929 = vshrl.u32 %v928, 7
          %v930 = vsub.s32 0, %v929
          %v931 = vrot.slane %v609, %v930
          %v932 = vlaneseq
          %v933 = vshrl.u32 %v932, 7
          %v934 = vsub.s32 0, %v933
          %v935 = vrot.slane %v611, %v934
          %v936 = vlaneseq
          %v937 = vshrl.u32 %v936, 7
          %v938 = vsub.s32 0, %v937
          %v939 = vrot.slane %v613, %v938
          %v940 = vlaneseq
          %v941 = vshrl.u32 %v940, 7
          %v942 = vsub.s32 0, %v941
          %v943 = vrot.slane %v637, %v942
          %v944 = vlaneseq
          %v945 = vshrl.u32 %v944, 7
          %v946 = vsub.s32 0, %v945
          %v947 = vrot.slane %v651, %v946
          %v948 = vlaneseq
          %v949 = vshrl.u32 %v948, 7
          %v950 = vsub.s32 0, %v949
          %v951 = vrot.slane %v659, %v950
          %v952 = vlaneseq
          %v953 = vshrl.u32 %v952, 7
          %v954 = vsub.s32 0, %v953
          %v955 = vrot.slane %v661, %v954
          %v956 = vlaneseq
          %v957 = vshrl.u32 %v956, 7
          %v958 = vsub.s32 0, %v957
          %v959 = vrot.slane %v644, %v958
          %v960 = vlaneseq
          %v961 = vshrl.u32 %v960, 7
          %v962 = vsub.s32 0, %v961
          %v963 = vrot.slane %v658, %v962
          %v964 = vlaneseq
          %v965 = vshrl.u32 %v964, 7
          %v966 = vsub.s32 0, %v965
          %v967 = vrot.slane %v660, %v966
          %v968 = vlaneseq
          %v969 = vshrl.u32 %v968, 7
          %v970 = vsub.s32 0, %v969
          %v971 = vrot.slane %v662, %v970
          %v972 = vlaneseq
          %v973 = vshrl.u32 %v972, 7
          %v974 = vsub.s32 0, %v973
          %v975 = vrot.slane %v686, %v974
          %v976 = vlaneseq
          %v977 = vshrl.u32 %v976, 7
          %v978 = vsub.s32 0, %v977
          %v979 = vrot.slane %v700, %v978
          %v980 = vlaneseq
          %v981 = vshrl.u32 %v980, 7
          %v982 = vsub.s32 0, %v981
          %v983 = vrot.slane %v708, %v982
          %v984 = vlaneseq
          %v985 = vshrl.u32 %v984, 7
          %v986 = vsub.s32 0, %v985
          %v987 = vrot.slane %v710, %v986
          %v988 = vlaneseq
          %v989 = vshrl.u32 %v988, 7
          %v990 = vsub.s32 0, %v989
          %v991 = vrot.slane %v693, %v990
          %v992 = vlaneseq
          %v993 = vshrl.u32 %v992, 7
          %v994 = vsub.s32 0, %v993
          %v995 = vrot.slane %v707, %v994
          %v996 = vlaneseq
          %v997 = vshrl.u32 %v996, 7
          %v998 = vsub.s32 0, %v997
          %v999 = vrot.slane %v709, %v998
          %v1000 = vlaneseq
          %v1001 = vshrl.u32 %v1000, 7
          %v1002 = vsub.s32 0, %v1001
          %v1003 = vrot.slane %v711, %v1002
          %v1004 = vlaneseq
          %v1005 = vshrl.u32 %v1004, 7
          %v1006 = vsub.s32 0, %v1005
          %v1007 = vrot.slane %v735, %v1006
          %v1008 = vlaneseq
          %v1009 = vshrl.u32 %v1008, 7
          %v1010 = vsub.s32 0, %v1009
          %v1011 = vrot.slane %v749, %v1010
          %v1012 = vlaneseq
          %v1013 = vshrl.u32 %v1012, 7
          %v1014 = vsub.s32 0, %v1013
          %v1015 = vrot.slane %v757, %v1014
          %v1016 = vlaneseq
          %v1017 = vshrl.u32 %v1016, 7
          %v1018 = vsub.s32 0, %v1017
          %v1019 = vrot.slane %v759, %v1018
          %v1020 = vlaneseq
          %v1021 = vshrl.u32 %v1020, 7
          %v1022 = vsub.s32 0, %v1021
          %v1023 = vrot.slane %v742, %v1022
          %v1024 = vlaneseq
          %v1025 = vshrl.u32 %v1024, 7
          %v1026 = vsub.s32 0, %v1025
          %v1027 = vrot.slane %v756, %v1026
          %v1028 = vlaneseq
          %v1029 = vshrl.u32 %v1028, 7
          %v1030 = vsub.s32 0, %v1029
          %v1031 = vrot.slane %v758, %v1030
          %v1032 = vlaneseq
          %v1033 = vshrl.u32 %v1032, 7
          %v1034 = vsub.s32 0, %v1033
          %v1035 = vrot.slane %v760, %v1034
          %v1036 = vlaneseq
          %v1037 = vshrl.u32 %v1036, 7
          %v1038 = vsub.s32 0, %v1037
          %v1039 = vrot.slane %v784, %v1038
          %v1040 = vlaneseq
          %v1041 = vshrl.u32 %v1040, 7
          %v1042 = vsub.s32 0, %v1041
          %v1043 = vrot.slane %v798, %v1042
          %v1044 = vlaneseq
          %v1045 = vshrl.u32 %v1044, 7
          %v1046 = vsub.s32 0, %v1045
          %v1047 = vrot.slane %v806, %v1046
          %v1048 = vlaneseq
          %v1049 = vshrl.u32 %v1048, 7
          %v1050 = vsub.s32 0, %v1049
          %v1051 = vrot.slane %v808, %v1050
          %v1052 = vlaneseq
          %v1053 = vshrl.u32 %v1052, 7
          %v1054 = vsub.s32 0, %v1053
          %v1055 = vrot.slane %v791, %v1054
          %v1056 = vlaneseq
          %v1057 = vshrl.u32 %v1056, 7
          %v1058 = vsub.s32 0, %v1057
          %v1059 = vrot.slane %v805, %v1058
          %v1060 = vlaneseq
          %v1061 = vshrl.u32 %v1060, 7
          %v1062 = vsub.s32 0, %v1061
          %v1063 = vrot.slane %v807, %v1062
          %v1064 = vlaneseq
          %v1065 = vshrl.u32 %v1064, 7
          %v1066 = vsub.s32 0, %v1065
          %v1067 = vrot.slane %v809, %v1066
          %v1068 = vlaneseq
          %v1069 = vshrl.u32 %v1068, 7
          %v1070 = vsub.s32 0, %v1069
          %v1071 = vrot.slane %v833, %v1070
          %v1072 = vlaneseq
          %v1073 = vshrl.u32 %v1072, 7
          %v1074 = vsub.s32 0, %v1073
          %v1075 = vrot.slane %v847, %v1074
          %v1076 = vlaneseq
          %v1077 = vshrl.u32 %v1076, 7
          %v1078 = vsub.s32 0, %v1077
          %v1079 = vrot.slane %v855, %v1078
          %v1080 = vlaneseq
          %v1081 = vshrl.u32 %v1080, 7
          %v1082 = vsub.s32 0, %v1081
          %v1083 = vrot.slane %v857, %v1082
          %v1084 = vlaneseq
          %v1085 = vshrl.u32 %v1084, 7
          %v1086 = vsub.s32 0, %v1085
          %v1087 = vrot.slane %v840, %v1086
          %v1088 = vlaneseq
          %v1089 = vshrl.u32 %v1088, 7
          %v1090 = vsub.s32 0, %v1089
          %v1091 = vrot.slane %v854, %v1090
          %v1092 = vlaneseq
          %v1093 = vshrl.u32 %v1092, 7
          %v1094 = vsub.s32 0, %v1093
          %v1095 = vrot.slane %v856, %v1094
          %v1096 = vlaneseq
          %v1097 = vshrl.u32 %v1096, 7
          %v1098 = vsub.s32 0, %v1097
          %v1099 = vrot.slane %v858, %v1098
          %v1100 = vlaneseq
          %v1101 = vshrl.u32 %v1100, 7
          %v1102 = vsub.s32 0, %v1101
          %v1103 = vrot.slane %v882, %v1102
          %v1104 = vlaneseq
          %v1105 = vshrl.u32 %v1104, 7
          %v1106 = vsub.s32 0, %v1105
          %v1107 = vrot.slane %v896, %v1106
          %v1108 = vlaneseq
          %v1109 = vshrl.u32 %v1108, 7
          %v1110 = vsub.s32 0, %v1109
          %v1111 = vrot.slane %v904, %v1110
          %v1112 = vlaneseq
          %v1113 = vshrl.u32 %v1112, 7
          %v1114 = vsub.s32 0, %v1113
          %v1115 = vrot.slane %v906, %v1114
          %v1116 = vlaneseq
          %v1117 = vshrl.u32 %v1116, 7
          %v1118 = vsub.s32 0, %v1117
          %v1119 = vrot.slane %v889, %v1118
          %v1120 = vlaneseq
          %v1121 = vshrl.u32 %v1120, 7
          %v1122 = vsub.s32 0, %v1121
          %v1123 = vrot.slane %v903, %v1122
          %v1124 = vlaneseq
          %v1125 = vshrl.u32 %v1124, 7
          %v1126 = vsub.s32 0, %v1125
          %v1127 = vrot.slane %v905, %v1126
          %v1128 = vlaneseq
          %v1129 = vshrl.u32 %v1128, 7
          %v1130 = vsub.s32 0, %v1129
          %v1131 = vrot.slane %v907, %v1130
          %1132 = vrot.lane.b32.xlu0 %v911, 5
          %v1133 = vpop.permute.xlu0 %1132
          %1134 = vrot.lane.b32.xlu0 %v915, 5
          %v1135 = vpop.permute.xlu0 %1134
          %1136 = vrot.lane.b32.xlu0 %v919, 5
          %v1137 = vpop.permute.xlu0 %1136
          %1138 = vrot.lane.b32.xlu0 %v923, 5
          %v1139 = vpop.permute.xlu0 %1138
          %1140 = vrot.lane.b32.xlu0 %v927, 5
          %v1141 = vpop.permute.xlu0 %1140
          %1142 = vrot.lane.b32.xlu0 %v931, 5
          %v1143 = vpop.permute.xlu0 %1142
          %1144 = vrot.lane.b32.xlu0 %v935, 5
          %v1145 = vpop.permute.xlu0 %1144
          %1146 = vrot.lane.b32.xlu0 %v939, 5
          %v1147 = vpop.permute.xlu0 %1146
          %1148 = vrot.lane.b32.xlu0 %v943, 5
          %v1149 = vpop.permute.xlu0 %1148
          %1150 = vrot.lane.b32.xlu0 %v947, 5
          %v1151 = vpop.permute.xlu0 %1150
          %1152 = vrot.lane.b32.xlu0 %v951, 5
          %v1153 = vpop.permute.xlu0 %1152
          %1154 = vrot.lane.b32.xlu0 %v955, 5
          %v1155 = vpop.permute.xlu0 %1154
          %1156 = vrot.lane.b32.xlu0 %v959, 5
          %v1157 = vpop.permute.xlu0 %1156
          %1158 = vrot.lane.b32.xlu0 %v963, 5
          %v1159 = vpop.permute.xlu0 %1158
          %1160 = vrot.lane.b32.xlu0 %v967, 5
          %v1161 = vpop.permute.xlu0 %1160
          %1162 = vrot.lane.b32.xlu0 %v971, 5
          %v1163 = vpop.permute.xlu0 %1162
          %1164 = vrot.lane.b32.xlu0 %v975, 5
          %v1165 = vpop.permute.xlu0 %1164
          %1166 = vrot.lane.b32.xlu0 %v979, 5
          %v1167 = vpop.permute.xlu0 %1166
          %1168 = vrot.lane.b32.xlu0 %v983, 5
          %v1169 = vpop.permute.xlu0 %1168
          %1170 = vrot.lane.b32.xlu0 %v987, 5
          %v1171 = vpop.permute.xlu0 %1170
          %1172 = vrot.lane.b32.xlu0 %v991, 5
          %v1173 = vpop.permute.xlu0 %1172
          %1174 = vrot.lane.b32.xlu0 %v995, 5
          %v1175 = vpop.permute.xlu0 %1174
          %1176 = vrot.lane.b32.xlu0 %v999, 5
          %v1177 = vpop.permute.xlu0 %1176
          %1178 = vrot.lane.b32.xlu0 %v1003, 5
          %v1179 = vpop.permute.xlu0 %1178
          %1180 = vrot.lane.b32.xlu0 %v1007, 5
          %v1181 = vpop.permute.xlu0 %1180
          %1182 = vrot.lane.b32.xlu0 %v1011, 5
          %v1183 = vpop.permute.xlu0 %1182
          %1184 = vrot.lane.b32.xlu0 %v1015, 5
          %v1185 = vpop.permute.xlu0 %1184
          %1186 = vrot.lane.b32.xlu0 %v1019, 5
          %v1187 = vpop.permute.xlu0 %1186
          %1188 = vrot.lane.b32.xlu0 %v1023, 5
          %v1189 = vpop.permute.xlu0 %1188
          %1190 = vrot.lane.b32.xlu0 %v1027, 5
          %v1191 = vpop.permute.xlu0 %1190
          %1192 = vrot.lane.b32.xlu0 %v1031, 5
          %v1193 = vpop.permute.xlu0 %1192
          %1194 = vrot.lane.b32.xlu0 %v1035, 5
          %v1195 = vpop.permute.xlu0 %1194
          %1196 = vrot.lane.b32.xlu0 %v1039, 5
          %v1197 = vpop.permute.xlu0 %1196
          %1198 = vrot.lane.b32.xlu0 %v1043, 5
          %v1199 = vpop.permute.xlu0 %1198
          %1200 = vrot.lane.b32.xlu0 %v1047, 5
          %v1201 = vpop.permute.xlu0 %1200
          %1202 = vrot.lane.b32.xlu0 %v1051, 5
          %v1203 = vpop.permute.xlu0 %1202
          %1204 = vrot.lane.b32.xlu0 %v1055, 5
          %v1205 = vpop.permute.xlu0 %1204
          %1206 = vrot.lane.b32.xlu0 %v1059, 5
          %v1207 = vpop.permute.xlu0 %1206
          %1208 = vrot.lane.b32.xlu0 %v1063, 5
          %v1209 = vpop.permute.xlu0 %1208
          %1210 = vrot.lane.b32.xlu0 %v1067, 5
          %v1211 = vpop.permute.xlu0 %1210
          %1212 = vrot.lane.b32.xlu0 %v1071, 5
          %v1213 = vpop.permute.xlu0 %1212
          %1214 = vrot.lane.b32.xlu0 %v1075, 5
          %v1215 = vpop.permute.xlu0 %1214
          %1216 = vrot.lane.b32.xlu0 %v1079, 5
          %v1217 = vpop.permute.xlu0 %1216
          %1218 = vrot.lane.b32.xlu0 %v1083, 5
          %v1219 = vpop.permute.xlu0 %1218
          %1220 = vrot.lane.b32.xlu0 %v1087, 5
          %v1221 = vpop.permute.xlu0 %1220
          %1222 = vrot.lane.b32.xlu0 %v1091, 5
          %v1223 = vpop.permute.xlu0 %1222
          %1224 = vrot.lane.b32.xlu0 %v1095, 5
          %v1225 = vpop.permute.xlu0 %1224
          %1226 = vrot.lane.b32.xlu0 %v1099, 5
          %v1227 = vpop.permute.xlu0 %1226
          %1228 = vrot.lane.b32.xlu0 %v1103, 5
          %v1229 = vpop.permute.xlu0 %1228
          %1230 = vrot.lane.b32.xlu0 %v1107, 5
          %v1231 = vpop.permute.xlu0 %1230
          %1232 = vrot.lane.b32.xlu0 %v1111, 5
          %v1233 = vpop.permute.xlu0 %1232
          %1234 = vrot.lane.b32.xlu0 %v1115, 5
          %v1235 = vpop.permute.xlu0 %1234
          %1236 = vrot.lane.b32.xlu0 %v1119, 5
          %v1237 = vpop.permute.xlu0 %1236
          %1238 = vrot.lane.b32.xlu0 %v1123, 5
          %v1239 = vpop.permute.xlu0 %1238
          %1240 = vrot.lane.b32.xlu0 %v1127, 5
          %v1241 = vpop.permute.xlu0 %1240
          %1242 = vrot.lane.b32.xlu0 %v1131, 5
          %v1243 = vpop.permute.xlu0 %1242
          %vm1300 = vcmask 81960
          %1301 = vst.msk [vmem:[#allocation3 + $0x5] sm:$0x1] %vm1300, %v1133
          %1302 = vst.msk [vmem:[#allocation3 + $0x15] sm:$0x1] %vm1300, %v1135
          %1303 = vst.msk [vmem:[#allocation3 + $0x25] sm:$0x1] %vm1300, %v1137
          %1304 = vst.msk [vmem:[#allocation3 + $0x35] sm:$0x1] %vm1300, %v1139
          %1305 = vst.msk [vmem:[#allocation3 + $0x45] sm:$0x1] %vm1300, %v1141
          %1306 = vst.msk [vmem:[#allocation3 + $0x55] sm:$0x1] %vm1300, %v1143
          %1307 = vst.msk [vmem:[#allocation3 + $0x65] sm:$0x1] %vm1300, %v1145
          %1308 = vst.msk [vmem:[#allocation3 + $0x75] sm:$0x1] %vm1300, %v1147
          %1309 = vst.msk [vmem:[#allocation3 + $0x85] sm:$0x1] %vm1300, %v1149
          %1310 = vst.msk [vmem:[#allocation3 + $0x95] sm:$0x1] %vm1300, %v1151
          %1311 = vst.msk [vmem:[#allocation3 + $0xa5] sm:$0x1] %vm1300, %v1153
          %1312 = vst.msk [vmem:[#allocation3 + $0xb5] sm:$0x1] %vm1300, %v1155
          %1313 = vst.msk [vmem:[#allocation3 + $0xc5] sm:$0x1] %vm1300, %v1157
          %1314 = vst.msk [vmem:[#allocation3 + $0xd5] sm:$0x1] %vm1300, %v1159
          %1315 = vst.msk [vmem:[#allocation3 + $0xe5] sm:$0x1] %vm1300, %v1161
          %1316 = vst.msk [vmem:[#allocation3 + $0xf5] sm:$0x1] %vm1300, %v1163
          %1317 = vst.msk [vmem:[#allocation3 + $0x105] sm:$0x1] %vm1300, %v1165
          %1318 = vst.msk [vmem:[#allocation3 + $0x115] sm:$0x1] %vm1300, %v1167
          %1319 = vst.msk [vmem:[#allocation3 + $0x125] sm:$0x1] %vm1300, %v1169
          %1320 = vst.msk [vmem:[#allocation3 + $0x135] sm:$0x1] %vm1300, %v1171
          %1321 = vst.msk [vmem:[#allocation3 + $0x145] sm:$0x1] %vm1300, %v1173
          %1322 = vst.msk [vmem:[#allocation3 + $0x155] sm:$0x1] %vm1300, %v1175
          %1323 = vst.msk [vmem:[#allocation3 + $0x165] sm:$0x1] %vm1300, %v1177
          %1324 = vst.msk [vmem:[#allocation3 + $0x175] sm:$0x1] %vm1300, %v1179
          %1325 = vst.msk [vmem:[#allocation3 + $0x185] sm:$0x1] %vm1300, %v1181
          %1326 = vst.msk [vmem:[#allocation3 + $0x195] sm:$0x1] %vm1300, %v1183
          %1327 = vst.msk [vmem:[#allocation3 + $0x1a5] sm:$0x1] %vm1300, %v1185
          %1328 = vst.msk [vmem:[#allocation3 + $0x1b5] sm:$0x1] %vm1300, %v1187
          %1329 = vst.msk [vmem:[#allocation3 + $0x1c5] sm:$0x1] %vm1300, %v1189
          %1330 = vst.msk [vmem:[#allocation3 + $0x1d5] sm:$0x1] %vm1300, %v1191
          %1331 = vst.msk [vmem:[#allocation3 + $0x1e5] sm:$0x1] %vm1300, %v1193
          %1332 = vst.msk [vmem:[#allocation3 + $0x1f5] sm:$0x1] %vm1300, %v1195
          %1333 = vst.msk [vmem:[#allocation3 + $0x205] sm:$0x1] %vm1300, %v1197
          %1334 = vst.msk [vmem:[#allocation3 + $0x215] sm:$0x1] %vm1300, %v1199
          %1335 = vst.msk [vmem:[#allocation3 + $0x225] sm:$0x1] %vm1300, %v1201
          %1336 = vst.msk [vmem:[#allocation3 + $0x235] sm:$0x1] %vm1300, %v1203
          %1337 = vst.msk [vmem:[#allocation3 + $0x245] sm:$0x1] %vm1300, %v1205
          %1338 = vst.msk [vmem:[#allocation3 + $0x255] sm:$0x1] %vm1300, %v1207
          %1339 = vst.msk [vmem:[#allocation3 + $0x265] sm:$0x1] %vm1300, %v1209
          %1340 = vst.msk [vmem:[#allocation3 + $0x275] sm:$0x1] %vm1300, %v1211
          %1341 = vst.msk [vmem:[#allocation3 + $0x285] sm:$0x1] %vm1300, %v1213
          %1342 = vst.msk [vmem:[#allocation3 + $0x295] sm:$0x1] %vm1300, %v1215
          %1343 = vst.msk [vmem:[#allocation3 + $0x2a5] sm:$0x1] %vm1300, %v1217
          %1344 = vst.msk [vmem:[#allocation3 + $0x2b5] sm:$0x1] %vm1300, %v1219
          %1345 = vst.msk [vmem:[#allocation3 + $0x2c5] sm:$0x1] %vm1300, %v1221
          %1346 = vst.msk [vmem:[#allocation3 + $0x2d5] sm:$0x1] %vm1300, %v1223
          %1347 = vst.msk [vmem:[#allocation3 + $0x2e5] sm:$0x1] %vm1300, %v1225
          %1348 = vst.msk [vmem:[#allocation3 + $0x2f5] sm:$0x1] %vm1300, %v1227
          %1349 = vst.msk [vmem:[#allocation3 + $0x305] sm:$0x1] %vm1300, %v1229
          %1350 = vst.msk [vmem:[#allocation3 + $0x315] sm:$0x1] %vm1300, %v1231
          %1351 = vst.msk [vmem:[#allocation3 + $0x325] sm:$0x1] %vm1300, %v1233
          %1352 = vst.msk [vmem:[#allocation3 + $0x335] sm:$0x1] %vm1300, %v1235
          %1353 = vst.msk [vmem:[#allocation3 + $0x345] sm:$0x1] %vm1300, %v1237
          %1354 = vst.msk [vmem:[#allocation3 + $0x355] sm:$0x1] %vm1300, %v1239
          %1355 = vst.msk [vmem:[#allocation3 + $0x365] sm:$0x1] %vm1300, %v1241
          %1356 = vst.msk [vmem:[#allocation3 + $0x375] sm:$0x1] %vm1300, %v1243
          %v1357 = vld [vmem:[#allocation2] sm:$0xff]
          %v1358 = vld [vmem:[#allocation2 + $0x8] sm:$0xff]
          %v1359 = vld [vmem:[#allocation2 + $0x10] sm:$0xff]
          %v1360 = vld [vmem:[#allocation2 + $0x18] sm:$0xff]
          %v1361 = vld [vmem:[#allocation2 + $0x20] sm:$0xff]
          %v1362 = vld [vmem:[#allocation2 + $0x28] sm:$0xff]
          %v1363 = vld [vmem:[#allocation2 + $0x30] sm:$0xff]
          %v1371 = vcombine.high %v1357, %v1357
          %v1373 = vunpack.c.l.s4 1966171168
          %v1374 = vunpack.c.0.s8 %v1373
          %v1375 = vlaneseq
          %v1376 = vshrl.u32 %v1375, 7
          %v1377 = vsub.s32 %v1374, %v1376
          %v1378 = vrot.slane %v1357, %v1377
          %v1380 = vunpack.c.l.s4 1966171168
          %v1381 = vunpack.c.0.s8 %v1380
          %v1382 = vlaneseq
          %v1383 = vshrl.u32 %v1382, 7
          %v1384 = vsub.s32 %v1381, %v1383
          %v1385 = vrot.slane %v1371, %v1384
          %v1386 = vcombine.high %v1378, %v1378
          %v1387 = vcombine.high %v1385, %v1385
          %v1389 = vunpack.c.l.s4 1966171168
          %v1390 = vunpack.c.0.s8 %v1389
          %v1391 = vlaneseq
          %v1392 = vshrl.u32 %v1391, 7
          %v1393 = vsub.s32 %v1390, %v1392
          %v1394 = vrot.slane %v1378, %v1393
          %v1396 = vunpack.c.l.s4 1966171168
          %v1397 = vunpack.c.0.s8 %v1396
          %v1398 = vlaneseq
          %v1399 = vshrl.u32 %v1398, 7
          %v1400 = vsub.s32 %v1397, %v1399
          %v1401 = vrot.slane %v1385, %v1400
          %v1403 = vunpack.c.l.s4 1966171168
          %v1404 = vunpack.c.0.s8 %v1403
          %v1405 = vlaneseq
          %v1406 = vshrl.u32 %v1405, 7
          %v1407 = vsub.s32 %v1404, %v1406
          %v1408 = vrot.slane %v1386, %v1407
          %v1410 = vunpack.c.l.s4 1966171168
          %v1411 = vunpack.c.0.s8 %v1410
          %v1412 = vlaneseq
          %v1413 = vshrl.u32 %v1412, 7
          %v1414 = vsub.s32 %v1411, %v1413
          %v1415 = vrot.slane %v1387, %v1414
          %v1416 = vcombine.high %v1394, %v1394
          %v1417 = vcombine.high %v1401, %v1401
          %v1418 = vcombine.high %v1408, %v1408
          %v1419 = vcombine.high %v1415, %v1415
          %v1420 = vcombine.high %v1358, %v1358
          %v1422 = vunpack.c.l.s4 1966171168
          %v1423 = vunpack.c.0.s8 %v1422
          %v1424 = vlaneseq
          %v1425 = vshrl.u32 %v1424, 7
          %v1426 = vsub.s32 %v1423, %v1425
          %v1427 = vrot.slane %v1358, %v1426
          %v1429 = vunpack.c.l.s4 1966171168
          %v1430 = vunpack.c.0.s8 %v1429
          %v1431 = vlaneseq
          %v1432 = vshrl.u32 %v1431, 7
          %v1433 = vsub.s32 %v1430, %v1432
          %v1434 = vrot.slane %v1420, %v1433
          %v1435 = vcombine.high %v1427, %v1427
          %v1436 = vcombine.high %v1434, %v1434
          %v1438 = vunpack.c.l.s4 1966171168
          %v1439 = vunpack.c.0.s8 %v1438
          %v1440 = vlaneseq
          %v1441 = vshrl.u32 %v1440, 7
          %v1442 = vsub.s32 %v1439, %v1441
          %v1443 = vrot.slane %v1427, %v1442
          %v1445 = vunpack.c.l.s4 1966171168
          %v1446 = vunpack.c.0.s8 %v1445
          %v1447 = vlaneseq
          %v1448 = vshrl.u32 %v1447, 7
          %v1449 = vsub.s32 %v1446, %v1448
          %v1450 = vrot.slane %v1434, %v1449
          %v1452 = vunpack.c.l.s4 1966171168
          %v1453 = vunpack.c.0.s8 %v1452
          %v1454 = vlaneseq
          %v1455 = vshrl.u32 %v1454, 7
          %v1456 = vsub.s32 %v1453, %v1455
          %v1457 = vrot.slane %v1435, %v1456
          %v1459 = vunpack.c.l.s4 1966171168
          %v1460 = vunpack.c.0.s8 %v1459
          %v1461 = vlaneseq
          %v1462 = vshrl.u32 %v1461, 7
          %v1463 = vsub.s32 %v1460, %v1462
          %v1464 = vrot.slane %v1436, %v1463
          %v1465 = vcombine.high %v1443, %v1443
          %v1466 = vcombine.high %v1450, %v1450
          %v1467 = vcombine.high %v1457, %v1457
          %v1468 = vcombine.high %v1464, %v1464
          %v1469 = vcombine.high %v1359, %v1359
          %v1471 = vunpack.c.l.s4 1966171168
          %v1472 = vunpack.c.0.s8 %v1471
          %v1473 = vlaneseq
          %v1474 = vshrl.u32 %v1473, 7
          %v1475 = vsub.s32 %v1472, %v1474
          %v1476 = vrot.slane %v1359, %v1475
          %v1478 = vunpack.c.l.s4 1966171168
          %v1479 = vunpack.c.0.s8 %v1478
          %v1480 = vlaneseq
          %v1481 = vshrl.u32 %v1480, 7
          %v1482 = vsub.s32 %v1479, %v1481
          %v1483 = vrot.slane %v1469, %v1482
          %v1484 = vcombine.high %v1476, %v1476
          %v1485 = vcombine.high %v1483, %v1483
          %v1487 = vunpack.c.l.s4 1966171168
          %v1488 = vunpack.c.0.s8 %v1487
          %v1489 = vlaneseq
          %v1490 = vshrl.u32 %v1489, 7
          %v1491 = vsub.s32 %v1488, %v1490
          %v1492 = vrot.slane %v1476, %v1491
          %v1494 = vunpack.c.l.s4 1966171168
          %v1495 = vunpack.c.0.s8 %v1494
          %v1496 = vlaneseq
          %v1497 = vshrl.u32 %v1496, 7
          %v1498 = vsub.s32 %v1495, %v1497
          %v1499 = vrot.slane %v1483, %v1498
          %v1501 = vunpack.c.l.s4 1966171168
          %v1502 = vunpack.c.0.s8 %v1501
          %v1503 = vlaneseq
          %v1504 = vshrl.u32 %v1503, 7
          %v1505 = vsub.s32 %v1502, %v1504
          %v1506 = vrot.slane %v1484, %v1505
          %v1508 = vunpack.c.l.s4 1966171168
          %v1509 = vunpack.c.0.s8 %v1508
          %v1510 = vlaneseq
          %v1511 = vshrl.u32 %v1510, 7
          %v1512 = vsub.s32 %v1509, %v1511
          %v1513 = vrot.slane %v1485, %v1512
          %v1514 = vcombine.high %v1492, %v1492
          %v1515 = vcombine.high %v1499, %v1499
          %v1516 = vcombine.high %v1506, %v1506
          %v1517 = vcombine.high %v1513, %v1513
          %v1518 = vcombine.high %v1360, %v1360
          %v1520 = vunpack.c.l.s4 1966171168
          %v1521 = vunpack.c.0.s8 %v1520
          %v1522 = vlaneseq
          %v1523 = vshrl.u32 %v1522, 7
          %v1524 = vsub.s32 %v1521, %v1523
          %v1525 = vrot.slane %v1360, %v1524
          %v1527 = vunpack.c.l.s4 1966171168
          %v1528 = vunpack.c.0.s8 %v1527
          %v1529 = vlaneseq
          %v1530 = vshrl.u32 %v1529, 7
          %v1531 = vsub.s32 %v1528, %v1530
          %v1532 = vrot.slane %v1518, %v1531
          %v1533 = vcombine.high %v1525, %v1525
          %v1534 = vcombine.high %v1532, %v1532
          %v1536 = vunpack.c.l.s4 1966171168
          %v1537 = vunpack.c.0.s8 %v1536
          %v1538 = vlaneseq
          %v1539 = vshrl.u32 %v1538, 7
          %v1540 = vsub.s32 %v1537, %v1539
          %v1541 = vrot.slane %v1525, %v1540
          %v1543 = vunpack.c.l.s4 1966171168
          %v1544 = vunpack.c.0.s8 %v1543
          %v1545 = vlaneseq
          %v1546 = vshrl.u32 %v1545, 7
          %v1547 = vsub.s32 %v1544, %v1546
          %v1548 = vrot.slane %v1532, %v1547
          %v1550 = vunpack.c.l.s4 1966171168
          %v1551 = vunpack.c.0.s8 %v1550
          %v1552 = vlaneseq
          %v1553 = vshrl.u32 %v1552, 7
          %v1554 = vsub.s32 %v1551, %v1553
          %v1555 = vrot.slane %v1533, %v1554
          %v1557 = vunpack.c.l.s4 1966171168
          %v1558 = vunpack.c.0.s8 %v1557
          %v1559 = vlaneseq
          %v1560 = vshrl.u32 %v1559, 7
          %v1561 = vsub.s32 %v1558, %v1560
          %v1562 = vrot.slane %v1534, %v1561
          %v1563 = vcombine.high %v1541, %v1541
          %v1564 = vcombine.high %v1548, %v1548
          %v1565 = vcombine.high %v1555, %v1555
          %v1566 = vcombine.high %v1562, %v1562
          %v1567 = vcombine.high %v1361, %v1361
          %v1569 = vunpack.c.l.s4 1966171168
          %v1570 = vunpack.c.0.s8 %v1569
          %v1571 = vlaneseq
          %v1572 = vshrl.u32 %v1571, 7
          %v1573 = vsub.s32 %v1570, %v1572
          %v1574 = vrot.slane %v1361, %v1573
          %v1576 = vunpack.c.l.s4 1966171168
          %v1577 = vunpack.c.0.s8 %v1576
          %v1578 = vlaneseq
          %v1579 = vshrl.u32 %v1578, 7
          %v1580 = vsub.s32 %v1577, %v1579
          %v1581 = vrot.slane %v1567, %v1580
          %v1582 = vcombine.high %v1574, %v1574
          %v1583 = vcombine.high %v1581, %v1581
          %v1585 = vunpack.c.l.s4 1966171168
          %v1586 = vunpack.c.0.s8 %v1585
          %v1587 = vlaneseq
          %v1588 = vshrl.u32 %v1587, 7
          %v1589 = vsub.s32 %v1586, %v1588
          %v1590 = vrot.slane %v1574, %v1589
          %v1592 = vunpack.c.l.s4 1966171168
          %v1593 = vunpack.c.0.s8 %v1592
          %v1594 = vlaneseq
          %v1595 = vshrl.u32 %v1594, 7
          %v1596 = vsub.s32 %v1593, %v1595
          %v1597 = vrot.slane %v1581, %v1596
          %v1599 = vunpack.c.l.s4 1966171168
          %v1600 = vunpack.c.0.s8 %v1599
          %v1601 = vlaneseq
          %v1602 = vshrl.u32 %v1601, 7
          %v1603 = vsub.s32 %v1600, %v1602
          %v1604 = vrot.slane %v1582, %v1603
          %v1606 = vunpack.c.l.s4 1966171168
          %v1607 = vunpack.c.0.s8 %v1606
          %v1608 = vlaneseq
          %v1609 = vshrl.u32 %v1608, 7
          %v1610 = vsub.s32 %v1607, %v1609
          %v1611 = vrot.slane %v1583, %v1610
          %v1612 = vcombine.high %v1590, %v1590
          %v1613 = vcombine.high %v1597, %v1597
          %v1614 = vcombine.high %v1604, %v1604
          %v1615 = vcombine.high %v1611, %v1611
          %v1616 = vcombine.high %v1362, %v1362
          %v1618 = vunpack.c.l.s4 1966171168
          %v1619 = vunpack.c.0.s8 %v1618
          %v1620 = vlaneseq
          %v1621 = vshrl.u32 %v1620, 7
          %v1622 = vsub.s32 %v1619, %v1621
          %v1623 = vrot.slane %v1362, %v1622
          %v1625 = vunpack.c.l.s4 1966171168
          %v1626 = vunpack.c.0.s8 %v1625
          %v1627 = vlaneseq
          %v1628 = vshrl.u32 %v1627, 7
          %v1629 = vsub.s32 %v1626, %v1628
          %v1630 = vrot.slane %v1616, %v1629
          %v1631 = vcombine.high %v1623, %v1623
          %v1632 = vcombine.high %v1630, %v1630
          %v1634 = vunpack.c.l.s4 1966171168
          %v1635 = vunpack.c.0.s8 %v1634
          %v1636 = vlaneseq
          %v1637 = vshrl.u32 %v1636, 7
          %v1638 = vsub.s32 %v1635, %v1637
          %v1639 = vrot.slane %v1623, %v1638
          %v1641 = vunpack.c.l.s4 1966171168
          %v1642 = vunpack.c.0.s8 %v1641
          %v1643 = vlaneseq
          %v1644 = vshrl.u32 %v1643, 7
          %v1645 = vsub.s32 %v1642, %v1644
          %v1646 = vrot.slane %v1630, %v1645
          %v1648 = vunpack.c.l.s4 1966171168
          %v1649 = vunpack.c.0.s8 %v1648
          %v1650 = vlaneseq
          %v1651 = vshrl.u32 %v1650, 7
          %v1652 = vsub.s32 %v1649, %v1651
          %v1653 = vrot.slane %v1631, %v1652
          %v1655 = vunpack.c.l.s4 1966171168
          %v1656 = vunpack.c.0.s8 %v1655
          %v1657 = vlaneseq
          %v1658 = vshrl.u32 %v1657, 7
          %v1659 = vsub.s32 %v1656, %v1658
          %v1660 = vrot.slane %v1632, %v1659
          %v1661 = vcombine.high %v1639, %v1639
          %v1662 = vcombine.high %v1646, %v1646
          %v1663 = vcombine.high %v1653, %v1653
          %v1664 = vcombine.high %v1660, %v1660
          %v1665 = vcombine.high %v1363, %v1363
          %v1667 = vunpack.c.l.s4 1966171168
          %v1668 = vunpack.c.0.s8 %v1667
          %v1669 = vlaneseq
          %v1670 = vshrl.u32 %v1669, 7
          %v1671 = vsub.s32 %v1668, %v1670
          %v1672 = vrot.slane %v1363, %v1671
          %v1674 = vunpack.c.l.s4 1966171168
          %v1675 = vunpack.c.0.s8 %v1674
          %v1676 = vlaneseq
          %v1677 = vshrl.u32 %v1676, 7
          %v1678 = vsub.s32 %v1675, %v1677
          %v1679 = vrot.slane %v1665, %v1678
          %v1680 = vcombine.high %v1672, %v1672
          %v1681 = vcombine.high %v1679, %v1679
          %v1683 = vunpack.c.l.s4 1966171168
          %v1684 = vunpack.c.0.s8 %v1683
          %v1685 = vlaneseq
          %v1686 = vshrl.u32 %v1685, 7
          %v1687 = vsub.s32 %v1684, %v1686
          %v1688 = vrot.slane %v1672, %v1687
          %v1690 = vunpack.c.l.s4 1966171168
          %v1691 = vunpack.c.0.s8 %v1690
          %v1692 = vlaneseq
          %v1693 = vshrl.u32 %v1692, 7
          %v1694 = vsub.s32 %v1691, %v1693
          %v1695 = vrot.slane %v1679, %v1694
          %v1697 = vunpack.c.l.s4 1966171168
          %v1698 = vunpack.c.0.s8 %v1697
          %v1699 = vlaneseq
          %v1700 = vshrl.u32 %v1699, 7
          %v1701 = vsub.s32 %v1698, %v1700
          %v1702 = vrot.slane %v1680, %v1701
          %v1704 = vunpack.c.l.s4 1966171168
          %v1705 = vunpack.c.0.s8 %v1704
          %v1706 = vlaneseq
          %v1707 = vshrl.u32 %v1706, 7
          %v1708 = vsub.s32 %v1705, %v1707
          %v1709 = vrot.slane %v1681, %v1708
          %v1710 = vcombine.high %v1688, %v1688
          %v1711 = vcombine.high %v1695, %v1695
          %v1712 = vcombine.high %v1702, %v1702
          %v1713 = vcombine.high %v1709, %v1709
          %v1714 = vlaneseq
          %v1715 = vshrl.u32 %v1714, 7
          %v1716 = vsub.s32 0, %v1715
          %v1717 = vrot.slane %v1394, %v1716
          %v1718 = vlaneseq
          %v1719 = vshrl.u32 %v1718, 7
          %v1720 = vsub.s32 0, %v1719
          %v1721 = vrot.slane %v1408, %v1720
          %v1722 = vlaneseq
          %v1723 = vshrl.u32 %v1722, 7
          %v1724 = vsub.s32 0, %v1723
          %v1725 = vrot.slane %v1416, %v1724
          %v1726 = vlaneseq
          %v1727 = vshrl.u32 %v1726, 7
          %v1728 = vsub.s32 0, %v1727
          %v1729 = vrot.slane %v1418, %v1728
          %v1730 = vlaneseq
          %v1731 = vshrl.u32 %v1730, 7
          %v1732 = vsub.s32 0, %v1731
          %v1733 = vrot.slane %v1401, %v1732
          %v1734 = vlaneseq
          %v1735 = vshrl.u32 %v1734, 7
          %v1736 = vsub.s32 0, %v1735
          %v1737 = vrot.slane %v1415, %v1736
          %v1738 = vlaneseq
          %v1739 = vshrl.u32 %v1738, 7
          %v1740 = vsub.s32 0, %v1739
          %v1741 = vrot.slane %v1417, %v1740
          %v1742 = vlaneseq
          %v1743 = vshrl.u32 %v1742, 7
          %v1744 = vsub.s32 0, %v1743
          %v1745 = vrot.slane %v1419, %v1744
          %v1746 = vlaneseq
          %v1747 = vshrl.u32 %v1746, 7
          %v1748 = vsub.s32 0, %v1747
          %v1749 = vrot.slane %v1443, %v1748
          %v1750 = vlaneseq
          %v1751 = vshrl.u32 %v1750, 7
          %v1752 = vsub.s32 0, %v1751
          %v1753 = vrot.slane %v1457, %v1752
          %v1754 = vlaneseq
          %v1755 = vshrl.u32 %v1754, 7
          %v1756 = vsub.s32 0, %v1755
          %v1757 = vrot.slane %v1465, %v1756
          %v1758 = vlaneseq
          %v1759 = vshrl.u32 %v1758, 7
          %v1760 = vsub.s32 0, %v1759
          %v1761 = vrot.slane %v1467, %v1760
          %v1762 = vlaneseq
          %v1763 = vshrl.u32 %v1762, 7
          %v1764 = vsub.s32 0, %v1763
          %v1765 = vrot.slane %v1450, %v1764
          %v1766 = vlaneseq
          %v1767 = vshrl.u32 %v1766, 7
          %v1768 = vsub.s32 0, %v1767
          %v1769 = vrot.slane %v1464, %v1768
          %v1770 = vlaneseq
          %v1771 = vshrl.u32 %v1770, 7
          %v1772 = vsub.s32 0, %v1771
          %v1773 = vrot.slane %v1466, %v1772
          %v1774 = vlaneseq
          %v1775 = vshrl.u32 %v1774, 7
          %v1776 = vsub.s32 0, %v1775
          %v1777 = vrot.slane %v1468, %v1776
          %v1778 = vlaneseq
          %v1779 = vshrl.u32 %v1778, 7
          %v1780 = vsub.s32 0, %v1779
          %v1781 = vrot.slane %v1492, %v1780
          %v1782 = vlaneseq
          %v1783 = vshrl.u32 %v1782, 7
          %v1784 = vsub.s32 0, %v1783
          %v1785 = vrot.slane %v1506, %v1784
          %v1786 = vlaneseq
          %v1787 = vshrl.u32 %v1786, 7
          %v1788 = vsub.s32 0, %v1787
          %v1789 = vrot.slane %v1514, %v1788
          %v1790 = vlaneseq
          %v1791 = vshrl.u32 %v1790, 7
          %v1792 = vsub.s32 0, %v1791
          %v1793 = vrot.slane %v1516, %v1792
          %v1794 = vlaneseq
          %v1795 = vshrl.u32 %v1794, 7
          %v1796 = vsub.s32 0, %v1795
          %v1797 = vrot.slane %v1499, %v1796
          %v1798 = vlaneseq
          %v1799 = vshrl.u32 %v1798, 7
          %v1800 = vsub.s32 0, %v1799
          %v1801 = vrot.slane %v1513, %v1800
          %v1802 = vlaneseq
          %v1803 = vshrl.u32 %v1802, 7
          %v1804 = vsub.s32 0, %v1803
          %v1805 = vrot.slane %v1515, %v1804
          %v1806 = vlaneseq
          %v1807 = vshrl.u32 %v1806, 7
          %v1808 = vsub.s32 0, %v1807
          %v1809 = vrot.slane %v1517, %v1808
          %v1810 = vlaneseq
          %v1811 = vshrl.u32 %v1810, 7
          %v1812 = vsub.s32 0, %v1811
          %v1813 = vrot.slane %v1541, %v1812
          %v1814 = vlaneseq
          %v1815 = vshrl.u32 %v1814, 7
          %v1816 = vsub.s32 0, %v1815
          %v1817 = vrot.slane %v1555, %v1816
          %v1818 = vlaneseq
          %v1819 = vshrl.u32 %v1818, 7
          %v1820 = vsub.s32 0, %v1819
          %v1821 = vrot.slane %v1563, %v1820
          %v1822 = vlaneseq
          %v1823 = vshrl.u32 %v1822, 7
          %v1824 = vsub.s32 0, %v1823
          %v1825 = vrot.slane %v1565, %v1824
          %v1826 = vlaneseq
          %v1827 = vshrl.u32 %v1826, 7
          %v1828 = vsub.s32 0, %v1827
          %v1829 = vrot.slane %v1548, %v1828
          %v1830 = vlaneseq
          %v1831 = vshrl.u32 %v1830, 7
          %v1832 = vsub.s32 0, %v1831
          %v1833 = vrot.slane %v1562, %v1832
          %v1834 = vlaneseq
          %v1835 = vshrl.u32 %v1834, 7
          %v1836 = vsub.s32 0, %v1835
          %v1837 = vrot.slane %v1564, %v1836
          %v1838 = vlaneseq
          %v1839 = vshrl.u32 %v1838, 7
          %v1840 = vsub.s32 0, %v1839
          %v1841 = vrot.slane %v1566, %v1840
          %v1842 = vlaneseq
          %v1843 = vshrl.u32 %v1842, 7
          %v1844 = vsub.s32 0, %v1843
          %v1845 = vrot.slane %v1590, %v1844
          %v1846 = vlaneseq
          %v1847 = vshrl.u32 %v1846, 7
          %v1848 = vsub.s32 0, %v1847
          %v1849 = vrot.slane %v1604, %v1848
          %v1850 = vlaneseq
          %v1851 = vshrl.u32 %v1850, 7
          %v1852 = vsub.s32 0, %v1851
          %v1853 = vrot.slane %v1612, %v1852
          %v1854 = vlaneseq
          %v1855 = vshrl.u32 %v1854, 7
          %v1856 = vsub.s32 0, %v1855
          %v1857 = vrot.slane %v1614, %v1856
          %v1858 = vlaneseq
          %v1859 = vshrl.u32 %v1858, 7
          %v1860 = vsub.s32 0, %v1859
          %v1861 = vrot.slane %v1597, %v1860
          %v1862 = vlaneseq
          %v1863 = vshrl.u32 %v1862, 7
          %v1864 = vsub.s32 0, %v1863
          %v1865 = vrot.slane %v1611, %v1864
          %v1866 = vlaneseq
          %v1867 = vshrl.u32 %v1866, 7
          %v1868 = vsub.s32 0, %v1867
          %v1869 = vrot.slane %v1613, %v1868
          %v1870 = vlaneseq
          %v1871 = vshrl.u32 %v1870, 7
          %v1872 = vsub.s32 0, %v1871
          %v1873 = vrot.slane %v1615, %v1872
          %v1874 = vlaneseq
          %v1875 = vshrl.u32 %v1874, 7
          %v1876 = vsub.s32 0, %v1875
          %v1877 = vrot.slane %v1639, %v1876
          %v1878 = vlaneseq
          %v1879 = vshrl.u32 %v1878, 7
          %v1880 = vsub.s32 0, %v1879
          %v1881 = vrot.slane %v1653, %v1880
          %v1882 = vlaneseq
          %v1883 = vshrl.u32 %v1882, 7
          %v1884 = vsub.s32 0, %v1883
          %v1885 = vrot.slane %v1661, %v1884
          %v1886 = vlaneseq
          %v1887 = vshrl.u32 %v1886, 7
          %v1888 = vsub.s32 0, %v1887
          %v1889 = vrot.slane %v1663, %v1888
          %v1890 = vlaneseq
          %v1891 = vshrl.u32 %v1890, 7
          %v1892 = vsub.s32 0, %v1891
          %v1893 = vrot.slane %v1646, %v1892
          %v1894 = vlaneseq
          %v1895 = vshrl.u32 %v1894, 7
          %v1896 = vsub.s32 0, %v1895
          %v1897 = vrot.slane %v1660, %v1896
          %v1898 = vlaneseq
          %v1899 = vshrl.u32 %v1898, 7
          %v1900 = vsub.s32 0, %v1899
          %v1901 = vrot.slane %v1662, %v1900
          %v1902 = vlaneseq
          %v1903 = vshrl.u32 %v1902, 7
          %v1904 = vsub.s32 0, %v1903
          %v1905 = vrot.slane %v1664, %v1904
          %v1906 = vlaneseq
          %v1907 = vshrl.u32 %v1906, 7
          %v1908 = vsub.s32 0, %v1907
          %v1909 = vrot.slane %v1688, %v1908
          %v1910 = vlaneseq
          %v1911 = vshrl.u32 %v1910, 7
          %v1912 = vsub.s32 0, %v1911
          %v1913 = vrot.slane %v1702, %v1912
          %v1914 = vlaneseq
          %v1915 = vshrl.u32 %v1914, 7
          %v1916 = vsub.s32 0, %v1915
          %v1917 = vrot.slane %v1710, %v1916
          %v1918 = vlaneseq
          %v1919 = vshrl.u32 %v1918, 7
          %v1920 = vsub.s32 0, %v1919
          %v1921 = vrot.slane %v1712, %v1920
          %v1922 = vlaneseq
          %v1923 = vshrl.u32 %v1922, 7
          %v1924 = vsub.s32 0, %v1923
          %v1925 = vrot.slane %v1695, %v1924
          %v1926 = vlaneseq
          %v1927 = vshrl.u32 %v1926, 7
          %v1928 = vsub.s32 0, %v1927
          %v1929 = vrot.slane %v1709, %v1928
          %v1930 = vlaneseq
          %v1931 = vshrl.u32 %v1930, 7
          %v1932 = vsub.s32 0, %v1931
          %v1933 = vrot.slane %v1711, %v1932
          %v1934 = vlaneseq
          %v1935 = vshrl.u32 %v1934, 7
          %v1936 = vsub.s32 0, %v1935
          %v1937 = vrot.slane %v1713, %v1936
          %1938 = vrot.lane.b32.xlu0 %v1717, 127
          %v1939 = vpop.permute.xlu0 %1938
          %1940 = vrot.lane.b32.xlu0 %v1721, 127
          %v1941 = vpop.permute.xlu0 %1940
          %1942 = vrot.lane.b32.xlu0 %v1725, 127
          %v1943 = vpop.permute.xlu0 %1942
          %1944 = vrot.lane.b32.xlu0 %v1729, 127
          %v1945 = vpop.permute.xlu0 %1944
          %1946 = vrot.lane.b32.xlu0 %v1733, 127
          %v1947 = vpop.permute.xlu0 %1946
          %1948 = vrot.lane.b32.xlu0 %v1737, 127
          %v1949 = vpop.permute.xlu0 %1948
          %1950 = vrot.lane.b32.xlu0 %v1741, 127
          %v1951 = vpop.permute.xlu0 %1950
          %1952 = vrot.lane.b32.xlu0 %v1745, 127
          %v1953 = vpop.permute.xlu0 %1952
          %1954 = vrot.lane.b32.xlu0 %v1749, 127
          %v1955 = vpop.permute.xlu0 %1954
          %1956 = vrot.lane.b32.xlu0 %v1753, 127
          %v1957 = vpop.permute.xlu0 %1956
          %1958 = vrot.lane.b32.xlu0 %v1757, 127
          %v1959 = vpop.permute.xlu0 %1958
          %1960 = vrot.lane.b32.xlu0 %v1761, 127
          %v1961 = vpop.permute.xlu0 %1960
          %1962 = vrot.lane.b32.xlu0 %v1765, 127
          %v1963 = vpop.permute.xlu0 %1962
          %1964 = vrot.lane.b32.xlu0 %v1769, 127
          %v1965 = vpop.permute.xlu0 %1964
          %1966 = vrot.lane.b32.xlu0 %v1773, 127
          %v1967 = vpop.permute.xlu0 %1966
          %1968 = vrot.lane.b32.xlu0 %v1777, 127
          %v1969 = vpop.permute.xlu0 %1968
          %1970 = vrot.lane.b32.xlu0 %v1781, 127
          %v1971 = vpop.permute.xlu0 %1970
          %1972 = vrot.lane.b32.xlu0 %v1785, 127
          %v1973 = vpop.permute.xlu0 %1972
          %1974 = vrot.lane.b32.xlu0 %v1789, 127
          %v1975 = vpop.permute.xlu0 %1974
          %1976 = vrot.lane.b32.xlu0 %v1793, 127
          %v1977 = vpop.permute.xlu0 %1976
          %1978 = vrot.lane.b32.xlu0 %v1797, 127
          %v1979 = vpop.permute.xlu0 %1978
          %1980 = vrot.lane.b32.xlu0 %v1801, 127
          %v1981 = vpop.permute.xlu0 %1980
          %1982 = vrot.lane.b32.xlu0 %v1805, 127
          %v1983 = vpop.permute.xlu0 %1982
          %1984 = vrot.lane.b32.xlu0 %v1809, 127
          %v1985 = vpop.permute.xlu0 %1984
          %1986 = vrot.lane.b32.xlu0 %v1813, 127
          %v1987 = vpop.permute.xlu0 %1986
          %1988 = vrot.lane.b32.xlu0 %v1817, 127
          %v1989 = vpop.permute.xlu0 %1988
          %1990 = vrot.lane.b32.xlu0 %v1821, 127
          %v1991 = vpop.permute.xlu0 %1990
          %1992 = vrot.lane.b32.xlu0 %v1825, 127
          %v1993 = vpop.permute.xlu0 %1992
          %1994 = vrot.lane.b32.xlu0 %v1829, 127
          %v1995 = vpop.permute.xlu0 %1994
          %1996 = vrot.lane.b32.xlu0 %v1833, 127
          %v1997 = vpop.permute.xlu0 %1996
          %1998 = vrot.lane.b32.xlu0 %v1837, 127
          %v1999 = vpop.permute.xlu0 %1998
          %2000 = vrot.lane.b32.xlu0 %v1841, 127
          %v2001 = vpop.permute.xlu0 %2000
          %2002 = vrot.lane.b32.xlu0 %v1845, 127
          %v2003 = vpop.permute.xlu0 %2002
          %2004 = vrot.lane.b32.xlu0 %v1849, 127
          %v2005 = vpop.permute.xlu0 %2004
          %2006 = vrot.lane.b32.xlu0 %v1853, 127
          %v2007 = vpop.permute.xlu0 %2006
          %2008 = vrot.lane.b32.xlu0 %v1857, 127
          %v2009 = vpop.permute.xlu0 %2008
          %2010 = vrot.lane.b32.xlu0 %v1861, 127
          %v2011 = vpop.permute.xlu0 %2010
          %2012 = vrot.lane.b32.xlu0 %v1865, 127
          %v2013 = vpop.permute.xlu0 %2012
          %2014 = vrot.lane.b32.xlu0 %v1869, 127
          %v2015 = vpop.permute.xlu0 %2014
          %2016 = vrot.lane.b32.xlu0 %v1873, 127
          %v2017 = vpop.permute.xlu0 %2016
          %2018 = vrot.lane.b32.xlu0 %v1877, 127
          %v2019 = vpop.permute.xlu0 %2018
          %2020 = vrot.lane.b32.xlu0 %v1881, 127
          %v2021 = vpop.permute.xlu0 %2020
          %2022 = vrot.lane.b32.xlu0 %v1885, 127
          %v2023 = vpop.permute.xlu0 %2022
          %2024 = vrot.lane.b32.xlu0 %v1889, 127
          %v2025 = vpop.permute.xlu0 %2024
          %2026 = vrot.lane.b32.xlu0 %v1893, 127
          %v2027 = vpop.permute.xlu0 %2026
          %2028 = vrot.lane.b32.xlu0 %v1897, 127
          %v2029 = vpop.permute.xlu0 %2028
          %2030 = vrot.lane.b32.xlu0 %v1901, 127
          %v2031 = vpop.permute.xlu0 %2030
          %2032 = vrot.lane.b32.xlu0 %v1905, 127
          %v2033 = vpop.permute.xlu0 %2032
          %2034 = vrot.lane.b32.xlu0 %v1909, 127
          %v2035 = vpop.permute.xlu0 %2034
          %2036 = vrot.lane.b32.xlu0 %v1913, 127
          %v2037 = vpop.permute.xlu0 %2036
          %2038 = vrot.lane.b32.xlu0 %v1917, 127
          %v2039 = vpop.permute.xlu0 %2038
          %2040 = vrot.lane.b32.xlu0 %v1921, 127
          %v2041 = vpop.permute.xlu0 %2040
          %2042 = vrot.lane.b32.xlu0 %v1925, 127
          %v2043 = vpop.permute.xlu0 %2042
          %2044 = vrot.lane.b32.xlu0 %v1929, 127
          %v2045 = vpop.permute.xlu0 %2044
          %2046 = vrot.lane.b32.xlu0 %v1933, 127
          %v2047 = vpop.permute.xlu0 %2046
          %2048 = vrot.lane.b32.xlu0 %v1937, 127
          %v2049 = vpop.permute.xlu0 %2048
          %2106 = vst.msk [vmem:[#allocation3 + $0x6] sm:$0x1] %vm1300, %v1939
          %2107 = vst.msk [vmem:[#allocation3 + $0x16] sm:$0x1] %vm1300, %v1941
          %2108 = vst.msk [vmem:[#allocation3 + $0x26] sm:$0x1] %vm1300, %v1943
          %2109 = vst.msk [vmem:[#allocation3 + $0x36] sm:$0x1] %vm1300, %v1945
          %2110 = vst.msk [vmem:[#allocation3 + $0x46] sm:$0x1] %vm1300, %v1947
          %2111 = vst.msk [vmem:[#allocation3 + $0x56] sm:$0x1] %vm1300, %v1949
          %2112 = vst.msk [vmem:[#allocation3 + $0x66] sm:$0x1] %vm1300, %v1951
          %2113 = vst.msk [vmem:[#allocation3 + $0x76] sm:$0x1] %vm1300, %v1953
          %2114 = vst.msk [vmem:[#allocation3 + $0x86] sm:$0x1] %vm1300, %v1955
          %2115 = vst.msk [vmem:[#allocation3 + $0x96] sm:$0x1] %vm1300, %v1957
          %2116 = vst.msk [vmem:[#allocation3 + $0xa6] sm:$0x1] %vm1300, %v1959
          %2117 = vst.msk [vmem:[#allocation3 + $0xb6] sm:$0x1] %vm1300, %v1961
          %2118 = vst.msk [vmem:[#allocation3 + $0xc6] sm:$0x1] %vm1300, %v1963
          %2119 = vst.msk [vmem:[#allocation3 + $0xd6] sm:$0x1] %vm1300, %v1965
          %2120 = vst.msk [vmem:[#allocation3 + $0xe6] sm:$0x1] %vm1300, %v1967
          %2121 = vst.msk [vmem:[#allocation3 + $0xf6] sm:$0x1] %vm1300, %v1969
          %2122 = vst.msk [vmem:[#allocation3 + $0x106] sm:$0x1] %vm1300, %v1971
          %2123 = vst.msk [vmem:[#allocation3 + $0x116] sm:$0x1] %vm1300, %v1973
          %2124 = vst.msk [vmem:[#allocation3 + $0x126] sm:$0x1] %vm1300, %v1975
          %2125 = vst.msk [vmem:[#allocation3 + $0x136] sm:$0x1] %vm1300, %v1977
          %2126 = vst.msk [vmem:[#allocation3 + $0x146] sm:$0x1] %vm1300, %v1979
          %2127 = vst.msk [vmem:[#allocation3 + $0x156] sm:$0x1] %vm1300, %v1981
          %2128 = vst.msk [vmem:[#allocation3 + $0x166] sm:$0x1] %vm1300, %v1983
          %2129 = vst.msk [vmem:[#allocation3 + $0x176] sm:$0x1] %vm1300, %v1985
          %2130 = vst.msk [vmem:[#allocation3 + $0x186] sm:$0x1] %vm1300, %v1987
          %2131 = vst.msk [vmem:[#allocation3 + $0x196] sm:$0x1] %vm1300, %v1989
          %2132 = vst.msk [vmem:[#allocation3 + $0x1a6] sm:$0x1] %vm1300, %v1991
          %2133 = vst.msk [vmem:[#allocation3 + $0x1b6] sm:$0x1] %vm1300, %v1993
          %2134 = vst.msk [vmem:[#allocation3 + $0x1c6] sm:$0x1] %vm1300, %v1995
          %2135 = vst.msk [vmem:[#allocation3 + $0x1d6] sm:$0x1] %vm1300, %v1997
          %2136 = vst.msk [vmem:[#allocation3 + $0x1e6] sm:$0x1] %vm1300, %v1999
          %2137 = vst.msk [vmem:[#allocation3 + $0x1f6] sm:$0x1] %vm1300, %v2001
          %2138 = vst.msk [vmem:[#allocation3 + $0x206] sm:$0x1] %vm1300, %v2003
          %2139 = vst.msk [vmem:[#allocation3 + $0x216] sm:$0x1] %vm1300, %v2005
          %2140 = vst.msk [vmem:[#allocation3 + $0x226] sm:$0x1] %vm1300, %v2007
          %2141 = vst.msk [vmem:[#allocation3 + $0x236] sm:$0x1] %vm1300, %v2009
          %2142 = vst.msk [vmem:[#allocation3 + $0x246] sm:$0x1] %vm1300, %v2011
          %2143 = vst.msk [vmem:[#allocation3 + $0x256] sm:$0x1] %vm1300, %v2013
          %2144 = vst.msk [vmem:[#allocation3 + $0x266] sm:$0x1] %vm1300, %v2015
          %2145 = vst.msk [vmem:[#allocation3 + $0x276] sm:$0x1] %vm1300, %v2017
          %2146 = vst.msk [vmem:[#allocation3 + $0x286] sm:$0x1] %vm1300, %v2019
          %2147 = vst.msk [vmem:[#allocation3 + $0x296] sm:$0x1] %vm1300, %v2021
          %2148 = vst.msk [vmem:[#allocation3 + $0x2a6] sm:$0x1] %vm1300, %v2023
          %2149 = vst.msk [vmem:[#allocation3 + $0x2b6] sm:$0x1] %vm1300, %v2025
          %2150 = vst.msk [vmem:[#allocation3 + $0x2c6] sm:$0x1] %vm1300, %v2027
          %2151 = vst.msk [vmem:[#allocation3 + $0x2d6] sm:$0x1] %vm1300, %v2029
          %2152 = vst.msk [vmem:[#allocation3 + $0x2e6] sm:$0x1] %vm1300, %v2031
          %2153 = vst.msk [vmem:[#allocation3 + $0x2f6] sm:$0x1] %vm1300, %v2033
          %2154 = vst.msk [vmem:[#allocation3 + $0x306] sm:$0x1] %vm1300, %v2035
          %2155 = vst.msk [vmem:[#allocation3 + $0x316] sm:$0x1] %vm1300, %v2037
          %2156 = vst.msk [vmem:[#allocation3 + $0x326] sm:$0x1] %vm1300, %v2039
          %2157 = vst.msk [vmem:[#allocation3 + $0x336] sm:$0x1] %vm1300, %v2041
          %2158 = vst.msk [vmem:[#allocation3 + $0x346] sm:$0x1] %vm1300, %v2043
          %2159 = vst.msk [vmem:[#allocation3 + $0x356] sm:$0x1] %vm1300, %v2045
          %2160 = vst.msk [vmem:[#allocation3 + $0x366] sm:$0x1] %vm1300, %v2047
          %2161 = vst.msk [vmem:[#allocation3 + $0x376] sm:$0x1] %vm1300, %v2049
          %v2162 = vld [vmem:[#allocation2] sm:$0xff]
          %v2163 = vld [vmem:[#allocation2 + $0x8] sm:$0xff]
          %v2164 = vld [vmem:[#allocation2 + $0x10] sm:$0xff]
          %v2165 = vld [vmem:[#allocation2 + $0x18] sm:$0xff]
          %v2166 = vld [vmem:[#allocation2 + $0x20] sm:$0xff]
          %v2167 = vld [vmem:[#allocation2 + $0x28] sm:$0xff]
          %v2168 = vld [vmem:[#allocation2 + $0x30] sm:$0xff]
          %v2176 = vcombine.high %v2162, %v2162
          %v2178 = vunpack.c.l.s4 1966171168
          %v2179 = vunpack.c.0.s8 %v2178
          %v2180 = vlaneseq
          %v2181 = vshrl.u32 %v2180, 7
          %v2182 = vsub.s32 %v2179, %v2181
          %v2183 = vrot.slane %v2162, %v2182
          %v2185 = vunpack.c.l.s4 1966171168
          %v2186 = vunpack.c.0.s8 %v2185
          %v2187 = vlaneseq
          %v2188 = vshrl.u32 %v2187, 7
          %v2189 = vsub.s32 %v2186, %v2188
          %v2190 = vrot.slane %v2176, %v2189
          %v2191 = vcombine.high %v2183, %v2183
          %v2192 = vcombine.high %v2190, %v2190
          %v2194 = vunpack.c.l.s4 1966171168
          %v2195 = vunpack.c.0.s8 %v2194
          %v2196 = vlaneseq
          %v2197 = vshrl.u32 %v2196, 7
          %v2198 = vsub.s32 %v2195, %v2197
          %v2199 = vrot.slane %v2183, %v2198
          %v2201 = vunpack.c.l.s4 1966171168
          %v2202 = vunpack.c.0.s8 %v2201
          %v2203 = vlaneseq
          %v2204 = vshrl.u32 %v2203, 7
          %v2205 = vsub.s32 %v2202, %v2204
          %v2206 = vrot.slane %v2190, %v2205
          %v2208 = vunpack.c.l.s4 1966171168
          %v2209 = vunpack.c.0.s8 %v2208
          %v2210 = vlaneseq
          %v2211 = vshrl.u32 %v2210, 7
          %v2212 = vsub.s32 %v2209, %v2211
          %v2213 = vrot.slane %v2191, %v2212
          %v2215 = vunpack.c.l.s4 1966171168
          %v2216 = vunpack.c.0.s8 %v2215
          %v2217 = vlaneseq
          %v2218 = vshrl.u32 %v2217, 7
          %v2219 = vsub.s32 %v2216, %v2218
          %v2220 = vrot.slane %v2192, %v2219
          %v2221 = vcombine.high %v2199, %v2199
          %v2222 = vcombine.high %v2206, %v2206
          %v2223 = vcombine.high %v2213, %v2213
          %v2224 = vcombine.high %v2220, %v2220
          %v2225 = vcombine.high %v2163, %v2163
          %v2227 = vunpack.c.l.s4 1966171168
          %v2228 = vunpack.c.0.s8 %v2227
          %v2229 = vlaneseq
          %v2230 = vshrl.u32 %v2229, 7
          %v2231 = vsub.s32 %v2228, %v2230
          %v2232 = vrot.slane %v2163, %v2231
          %v2234 = vunpack.c.l.s4 1966171168
          %v2235 = vunpack.c.0.s8 %v2234
          %v2236 = vlaneseq
          %v2237 = vshrl.u32 %v2236, 7
          %v2238 = vsub.s32 %v2235, %v2237
          %v2239 = vrot.slane %v2225, %v2238
          %v2240 = vcombine.high %v2232, %v2232
          %v2241 = vcombine.high %v2239, %v2239
          %v2243 = vunpack.c.l.s4 1966171168
          %v2244 = vunpack.c.0.s8 %v2243
          %v2245 = vlaneseq
          %v2246 = vshrl.u32 %v2245, 7
          %v2247 = vsub.s32 %v2244, %v2246
          %v2248 = vrot.slane %v2232, %v2247
          %v2250 = vunpack.c.l.s4 1966171168
          %v2251 = vunpack.c.0.s8 %v2250
          %v2252 = vlaneseq
          %v2253 = vshrl.u32 %v2252, 7
          %v2254 = vsub.s32 %v2251, %v2253
          %v2255 = vrot.slane %v2239, %v2254
          %v2257 = vunpack.c.l.s4 1966171168
          %v2258 = vunpack.c.0.s8 %v2257
          %v2259 = vlaneseq
          %v2260 = vshrl.u32 %v2259, 7
          %v2261 = vsub.s32 %v2258, %v2260
          %v2262 = vrot.slane %v2240, %v2261
          %v2264 = vunpack.c.l.s4 1966171168
          %v2265 = vunpack.c.0.s8 %v2264
          %v2266 = vlaneseq
          %v2267 = vshrl.u32 %v2266, 7
          %v2268 = vsub.s32 %v2265, %v2267
          %v2269 = vrot.slane %v2241, %v2268
          %v2270 = vcombine.high %v2248, %v2248
          %v2271 = vcombine.high %v2255, %v2255
          %v2272 = vcombine.high %v2262, %v2262
          %v2273 = vcombine.high %v2269, %v2269
          %v2274 = vcombine.high %v2164, %v2164
          %v2276 = vunpack.c.l.s4 1966171168
          %v2277 = vunpack.c.0.s8 %v2276
          %v2278 = vlaneseq
          %v2279 = vshrl.u32 %v2278, 7
          %v2280 = vsub.s32 %v2277, %v2279
          %v2281 = vrot.slane %v2164, %v2280
          %v2283 = vunpack.c.l.s4 1966171168
          %v2284 = vunpack.c.0.s8 %v2283
          %v2285 = vlaneseq
          %v2286 = vshrl.u32 %v2285, 7
          %v2287 = vsub.s32 %v2284, %v2286
          %v2288 = vrot.slane %v2274, %v2287
          %v2289 = vcombine.high %v2281, %v2281
          %v2290 = vcombine.high %v2288, %v2288
          %v2292 = vunpack.c.l.s4 1966171168
          %v2293 = vunpack.c.0.s8 %v2292
          %v2294 = vlaneseq
          %v2295 = vshrl.u32 %v2294, 7
          %v2296 = vsub.s32 %v2293, %v2295
          %v2297 = vrot.slane %v2281, %v2296
          %v2299 = vunpack.c.l.s4 1966171168
          %v2300 = vunpack.c.0.s8 %v2299
          %v2301 = vlaneseq
          %v2302 = vshrl.u32 %v2301, 7
          %v2303 = vsub.s32 %v2300, %v2302
          %v2304 = vrot.slane %v2288, %v2303
          %v2306 = vunpack.c.l.s4 1966171168
          %v2307 = vunpack.c.0.s8 %v2306
          %v2308 = vlaneseq
          %v2309 = vshrl.u32 %v2308, 7
          %v2310 = vsub.s32 %v2307, %v2309
          %v2311 = vrot.slane %v2289, %v2310
          %v2313 = vunpack.c.l.s4 1966171168
          %v2314 = vunpack.c.0.s8 %v2313
          %v2315 = vlaneseq
          %v2316 = vshrl.u32 %v2315, 7
          %v2317 = vsub.s32 %v2314, %v2316
          %v2318 = vrot.slane %v2290, %v2317
          %v2319 = vcombine.high %v2297, %v2297
          %v2320 = vcombine.high %v2304, %v2304
          %v2321 = vcombine.high %v2311, %v2311
          %v2322 = vcombine.high %v2318, %v2318
          %v2323 = vcombine.high %v2165, %v2165
          %v2325 = vunpack.c.l.s4 1966171168
          %v2326 = vunpack.c.0.s8 %v2325
          %v2327 = vlaneseq
          %v2328 = vshrl.u32 %v2327, 7
          %v2329 = vsub.s32 %v2326, %v2328
          %v2330 = vrot.slane %v2165, %v2329
          %v2332 = vunpack.c.l.s4 1966171168
          %v2333 = vunpack.c.0.s8 %v2332
          %v2334 = vlaneseq
          %v2335 = vshrl.u32 %v2334, 7
          %v2336 = vsub.s32 %v2333, %v2335
          %v2337 = vrot.slane %v2323, %v2336
          %v2338 = vcombine.high %v2330, %v2330
          %v2339 = vcombine.high %v2337, %v2337
          %v2341 = vunpack.c.l.s4 1966171168
          %v2342 = vunpack.c.0.s8 %v2341
          %v2343 = vlaneseq
          %v2344 = vshrl.u32 %v2343, 7
          %v2345 = vsub.s32 %v2342, %v2344
          %v2346 = vrot.slane %v2330, %v2345
          %v2348 = vunpack.c.l.s4 1966171168
          %v2349 = vunpack.c.0.s8 %v2348
          %v2350 = vlaneseq
          %v2351 = vshrl.u32 %v2350, 7
          %v2352 = vsub.s32 %v2349, %v2351
          %v2353 = vrot.slane %v2337, %v2352
          %v2355 = vunpack.c.l.s4 1966171168
          %v2356 = vunpack.c.0.s8 %v2355
          %v2357 = vlaneseq
          %v2358 = vshrl.u32 %v2357, 7
          %v2359 = vsub.s32 %v2356, %v2358
          %v2360 = vrot.slane %v2338, %v2359
          %v2362 = vunpack.c.l.s4 1966171168
          %v2363 = vunpack.c.0.s8 %v2362
          %v2364 = vlaneseq
          %v2365 = vshrl.u32 %v2364, 7
          %v2366 = vsub.s32 %v2363, %v2365
          %v2367 = vrot.slane %v2339, %v2366
          %v2368 = vcombine.high %v2346, %v2346
          %v2369 = vcombine.high %v2353, %v2353
          %v2370 = vcombine.high %v2360, %v2360
          %v2371 = vcombine.high %v2367, %v2367
          %v2372 = vcombine.high %v2166, %v2166
          %v2374 = vunpack.c.l.s4 1966171168
          %v2375 = vunpack.c.0.s8 %v2374
          %v2376 = vlaneseq
          %v2377 = vshrl.u32 %v2376, 7
          %v2378 = vsub.s32 %v2375, %v2377
          %v2379 = vrot.slane %v2166, %v2378
          %v2381 = vunpack.c.l.s4 1966171168
          %v2382 = vunpack.c.0.s8 %v2381
          %v2383 = vlaneseq
          %v2384 = vshrl.u32 %v2383, 7
          %v2385 = vsub.s32 %v2382, %v2384
          %v2386 = vrot.slane %v2372, %v2385
          %v2387 = vcombine.high %v2379, %v2379
          %v2388 = vcombine.high %v2386, %v2386
          %v2390 = vunpack.c.l.s4 1966171168
          %v2391 = vunpack.c.0.s8 %v2390
          %v2392 = vlaneseq
          %v2393 = vshrl.u32 %v2392, 7
          %v2394 = vsub.s32 %v2391, %v2393
          %v2395 = vrot.slane %v2379, %v2394
          %v2397 = vunpack.c.l.s4 1966171168
          %v2398 = vunpack.c.0.s8 %v2397
          %v2399 = vlaneseq
          %v2400 = vshrl.u32 %v2399, 7
          %v2401 = vsub.s32 %v2398, %v2400
          %v2402 = vrot.slane %v2386, %v2401
          %v2404 = vunpack.c.l.s4 1966171168
          %v2405 = vunpack.c.0.s8 %v2404
          %v2406 = vlaneseq
          %v2407 = vshrl.u32 %v2406, 7
          %v2408 = vsub.s32 %v2405, %v2407
          %v2409 = vrot.slane %v2387, %v2408
          %v2411 = vunpack.c.l.s4 1966171168
          %v2412 = vunpack.c.0.s8 %v2411
          %v2413 = vlaneseq
          %v2414 = vshrl.u32 %v2413, 7
          %v2415 = vsub.s32 %v2412, %v2414
          %v2416 = vrot.slane %v2388, %v2415
          %v2417 = vcombine.high %v2395, %v2395
          %v2418 = vcombine.high %v2402, %v2402
          %v2419 = vcombine.high %v2409, %v2409
          %v2420 = vcombine.high %v2416, %v2416
          %v2421 = vcombine.high %v2167, %v2167
          %v2423 = vunpack.c.l.s4 1966171168
          %v2424 = vunpack.c.0.s8 %v2423
          %v2425 = vlaneseq
          %v2426 = vshrl.u32 %v2425, 7
          %v2427 = vsub.s32 %v2424, %v2426
          %v2428 = vrot.slane %v2167, %v2427
          %v2430 = vunpack.c.l.s4 1966171168
          %v2431 = vunpack.c.0.s8 %v2430
          %v2432 = vlaneseq
          %v2433 = vshrl.u32 %v2432, 7
          %v2434 = vsub.s32 %v2431, %v2433
          %v2435 = vrot.slane %v2421, %v2434
          %v2436 = vcombine.high %v2428, %v2428
          %v2437 = vcombine.high %v2435, %v2435
          %v2439 = vunpack.c.l.s4 1966171168
          %v2440 = vunpack.c.0.s8 %v2439
          %v2441 = vlaneseq
          %v2442 = vshrl.u32 %v2441, 7
          %v2443 = vsub.s32 %v2440, %v2442
          %v2444 = vrot.slane %v2428, %v2443
          %v2446 = vunpack.c.l.s4 1966171168
          %v2447 = vunpack.c.0.s8 %v2446
          %v2448 = vlaneseq
          %v2449 = vshrl.u32 %v2448, 7
          %v2450 = vsub.s32 %v2447, %v2449
          %v2451 = vrot.slane %v2435, %v2450
          %v2453 = vunpack.c.l.s4 1966171168
          %v2454 = vunpack.c.0.s8 %v2453
          %v2455 = vlaneseq
          %v2456 = vshrl.u32 %v2455, 7
          %v2457 = vsub.s32 %v2454, %v2456
          %v2458 = vrot.slane %v2436, %v2457
          %v2460 = vunpack.c.l.s4 1966171168
          %v2461 = vunpack.c.0.s8 %v2460
          %v2462 = vlaneseq
          %v2463 = vshrl.u32 %v2462, 7
          %v2464 = vsub.s32 %v2461, %v2463
          %v2465 = vrot.slane %v2437, %v2464
          %v2466 = vcombine.high %v2444, %v2444
          %v2467 = vcombine.high %v2451, %v2451
          %v2468 = vcombine.high %v2458, %v2458
          %v2469 = vcombine.high %v2465, %v2465
          %v2470 = vcombine.high %v2168, %v2168
          %v2472 = vunpack.c.l.s4 1966171168
          %v2473 = vunpack.c.0.s8 %v2472
          %v2474 = vlaneseq
          %v2475 = vshrl.u32 %v2474, 7
          %v2476 = vsub.s32 %v2473, %v2475
          %v2477 = vrot.slane %v2168, %v2476
          %v2479 = vunpack.c.l.s4 1966171168
          %v2480 = vunpack.c.0.s8 %v2479
          %v2481 = vlaneseq
          %v2482 = vshrl.u32 %v2481, 7
          %v2483 = vsub.s32 %v2480, %v2482
          %v2484 = vrot.slane %v2470, %v2483
          %v2485 = vcombine.high %v2477, %v2477
          %v2486 = vcombine.high %v2484, %v2484
          %v2488 = vunpack.c.l.s4 1966171168
          %v2489 = vunpack.c.0.s8 %v2488
          %v2490 = vlaneseq
          %v2491 = vshrl.u32 %v2490, 7
          %v2492 = vsub.s32 %v2489, %v2491
          %v2493 = vrot.slane %v2477, %v2492
          %v2495 = vunpack.c.l.s4 1966171168
          %v2496 = vunpack.c.0.s8 %v2495
          %v2497 = vlaneseq
          %v2498 = vshrl.u32 %v2497, 7
          %v2499 = vsub.s32 %v2496, %v2498
          %v2500 = vrot.slane %v2484, %v2499
          %v2502 = vunpack.c.l.s4 1966171168
          %v2503 = vunpack.c.0.s8 %v2502
          %v2504 = vlaneseq
          %v2505 = vshrl.u32 %v2504, 7
          %v2506 = vsub.s32 %v2503, %v2505
          %v2507 = vrot.slane %v2485, %v2506
          %v2509 = vunpack.c.l.s4 1966171168
          %v2510 = vunpack.c.0.s8 %v2509
          %v2511 = vlaneseq
          %v2512 = vshrl.u32 %v2511, 7
          %v2513 = vsub.s32 %v2510, %v2512
          %v2514 = vrot.slane %v2486, %v2513
          %v2515 = vcombine.high %v2493, %v2493
          %v2516 = vcombine.high %v2500, %v2500
          %v2517 = vcombine.high %v2507, %v2507
          %v2518 = vcombine.high %v2514, %v2514
          %v2519 = vlaneseq
          %v2520 = vshrl.u32 %v2519, 7
          %v2521 = vsub.s32 0, %v2520
          %v2522 = vrot.slane %v2199, %v2521
          %v2523 = vlaneseq
          %v2524 = vshrl.u32 %v2523, 7
          %v2525 = vsub.s32 0, %v2524
          %v2526 = vrot.slane %v2213, %v2525
          %v2527 = vlaneseq
          %v2528 = vshrl.u32 %v2527, 7
          %v2529 = vsub.s32 0, %v2528
          %v2530 = vrot.slane %v2221, %v2529
          %v2531 = vlaneseq
          %v2532 = vshrl.u32 %v2531, 7
          %v2533 = vsub.s32 0, %v2532
          %v2534 = vrot.slane %v2223, %v2533
          %v2535 = vlaneseq
          %v2536 = vshrl.u32 %v2535, 7
          %v2537 = vsub.s32 0, %v2536
          %v2538 = vrot.slane %v2206, %v2537
          %v2539 = vlaneseq
          %v2540 = vshrl.u32 %v2539, 7
          %v2541 = vsub.s32 0, %v2540
          %v2542 = vrot.slane %v2220, %v2541
          %v2543 = vlaneseq
          %v2544 = vshrl.u32 %v2543, 7
          %v2545 = vsub.s32 0, %v2544
          %v2546 = vrot.slane %v2222, %v2545
          %v2547 = vlaneseq
          %v2548 = vshrl.u32 %v2547, 7
          %v2549 = vsub.s32 0, %v2548
          %v2550 = vrot.slane %v2224, %v2549
          %v2551 = vlaneseq
          %v2552 = vshrl.u32 %v2551, 7
          %v2553 = vsub.s32 0, %v2552
          %v2554 = vrot.slane %v2248, %v2553
          %v2555 = vlaneseq
          %v2556 = vshrl.u32 %v2555, 7
          %v2557 = vsub.s32 0, %v2556
          %v2558 = vrot.slane %v2262, %v2557
          %v2559 = vlaneseq
          %v2560 = vshrl.u32 %v2559, 7
          %v2561 = vsub.s32 0, %v2560
          %v2562 = vrot.slane %v2270, %v2561
          %v2563 = vlaneseq
          %v2564 = vshrl.u32 %v2563, 7
          %v2565 = vsub.s32 0, %v2564
          %v2566 = vrot.slane %v2272, %v2565
          %v2567 = vlaneseq
          %v2568 = vshrl.u32 %v2567, 7
          %v2569 = vsub.s32 0, %v2568
          %v2570 = vrot.slane %v2255, %v2569
          %v2571 = vlaneseq
          %v2572 = vshrl.u32 %v2571, 7
          %v2573 = vsub.s32 0, %v2572
          %v2574 = vrot.slane %v2269, %v2573
          %v2575 = vlaneseq
          %v2576 = vshrl.u32 %v2575, 7
          %v2577 = vsub.s32 0, %v2576
          %v2578 = vrot.slane %v2271, %v2577
          %v2579 = vlaneseq
          %v2580 = vshrl.u32 %v2579, 7
          %v2581 = vsub.s32 0, %v2580
          %v2582 = vrot.slane %v2273, %v2581
          %v2583 = vlaneseq
          %v2584 = vshrl.u32 %v2583, 7
          %v2585 = vsub.s32 0, %v2584
          %v2586 = vrot.slane %v2297, %v2585
          %v2587 = vlaneseq
          %v2588 = vshrl.u32 %v2587, 7
          %v2589 = vsub.s32 0, %v2588
          %v2590 = vrot.slane %v2311, %v2589
          %v2591 = vlaneseq
          %v2592 = vshrl.u32 %v2591, 7
          %v2593 = vsub.s32 0, %v2592
          %v2594 = vrot.slane %v2319, %v2593
          %v2595 = vlaneseq
          %v2596 = vshrl.u32 %v2595, 7
          %v2597 = vsub.s32 0, %v2596
          %v2598 = vrot.slane %v2321, %v2597
          %v2599 = vlaneseq
          %v2600 = vshrl.u32 %v2599, 7
          %v2601 = vsub.s32 0, %v2600
          %v2602 = vrot.slane %v2304, %v2601
          %v2603 = vlaneseq
          %v2604 = vshrl.u32 %v2603, 7
          %v2605 = vsub.s32 0, %v2604
          %v2606 = vrot.slane %v2318, %v2605
          %v2607 = vlaneseq
          %v2608 = vshrl.u32 %v2607, 7
          %v2609 = vsub.s32 0, %v2608
          %v2610 = vrot.slane %v2320, %v2609
          %v2611 = vlaneseq
          %v2612 = vshrl.u32 %v2611, 7
          %v2613 = vsub.s32 0, %v2612
          %v2614 = vrot.slane %v2322, %v2613
          %v2615 = vlaneseq
          %v2616 = vshrl.u32 %v2615, 7
          %v2617 = vsub.s32 0, %v2616
          %v2618 = vrot.slane %v2346, %v2617
          %v2619 = vlaneseq
          %v2620 = vshrl.u32 %v2619, 7
          %v2621 = vsub.s32 0, %v2620
          %v2622 = vrot.slane %v2360, %v2621
          %v2623 = vlaneseq
          %v2624 = vshrl.u32 %v2623, 7
          %v2625 = vsub.s32 0, %v2624
          %v2626 = vrot.slane %v2368, %v2625
          %v2627 = vlaneseq
          %v2628 = vshrl.u32 %v2627, 7
          %v2629 = vsub.s32 0, %v2628
          %v2630 = vrot.slane %v2370, %v2629
          %v2631 = vlaneseq
          %v2632 = vshrl.u32 %v2631, 7
          %v2633 = vsub.s32 0, %v2632
          %v2634 = vrot.slane %v2353, %v2633
          %v2635 = vlaneseq
          %v2636 = vshrl.u32 %v2635, 7
          %v2637 = vsub.s32 0, %v2636
          %v2638 = vrot.slane %v2367, %v2637
          %v2639 = vlaneseq
          %v2640 = vshrl.u32 %v2639, 7
          %v2641 = vsub.s32 0, %v2640
          %v2642 = vrot.slane %v2369, %v2641
          %v2643 = vlaneseq
          %v2644 = vshrl.u32 %v2643, 7
          %v2645 = vsub.s32 0, %v2644
          %v2646 = vrot.slane %v2371, %v2645
          %v2647 = vlaneseq
          %v2648 = vshrl.u32 %v2647, 7
          %v2649 = vsub.s32 0, %v2648
          %v2650 = vrot.slane %v2395, %v2649
          %v2651 = vlaneseq
          %v2652 = vshrl.u32 %v2651, 7
          %v2653 = vsub.s32 0, %v2652
          %v2654 = vrot.slane %v2409, %v2653
          %v2655 = vlaneseq
          %v2656 = vshrl.u32 %v2655, 7
          %v2657 = vsub.s32 0, %v2656
          %v2658 = vrot.slane %v2417, %v2657
          %v2659 = vlaneseq
          %v2660 = vshrl.u32 %v2659, 7
          %v2661 = vsub.s32 0, %v2660
          %v2662 = vrot.slane %v2419, %v2661
          %v2663 = vlaneseq
          %v2664 = vshrl.u32 %v2663, 7
          %v2665 = vsub.s32 0, %v2664
          %v2666 = vrot.slane %v2402, %v2665
          %v2667 = vlaneseq
          %v2668 = vshrl.u32 %v2667, 7
          %v2669 = vsub.s32 0, %v2668
          %v2670 = vrot.slane %v2416, %v2669
          %v2671 = vlaneseq
          %v2672 = vshrl.u32 %v2671, 7
          %v2673 = vsub.s32 0, %v2672
          %v2674 = vrot.slane %v2418, %v2673
          %v2675 = vlaneseq
          %v2676 = vshrl.u32 %v2675, 7
          %v2677 = vsub.s32 0, %v2676
          %v2678 = vrot.slane %v2420, %v2677
          %v2679 = vlaneseq
          %v2680 = vshrl.u32 %v2679, 7
          %v2681 = vsub.s32 0, %v2680
          %v2682 = vrot.slane %v2444, %v2681
          %v2683 = vlaneseq
          %v2684 = vshrl.u32 %v2683, 7
          %v2685 = vsub.s32 0, %v2684
          %v2686 = vrot.slane %v2458, %v2685
          %v2687 = vlaneseq
          %v2688 = vshrl.u32 %v2687, 7
          %v2689 = vsub.s32 0, %v2688
          %v2690 = vrot.slane %v2466, %v2689
          %v2691 = vlaneseq
          %v2692 = vshrl.u32 %v2691, 7
          %v2693 = vsub.s32 0, %v2692
          %v2694 = vrot.slane %v2468, %v2693
          %v2695 = vlaneseq
          %v2696 = vshrl.u32 %v2695, 7
          %v2697 = vsub.s32 0, %v2696
          %v2698 = vrot.slane %v2451, %v2697
          %v2699 = vlaneseq
          %v2700 = vshrl.u32 %v2699, 7
          %v2701 = vsub.s32 0, %v2700
          %v2702 = vrot.slane %v2465, %v2701
          %v2703 = vlaneseq
          %v2704 = vshrl.u32 %v2703, 7
          %v2705 = vsub.s32 0, %v2704
          %v2706 = vrot.slane %v2467, %v2705
          %v2707 = vlaneseq
          %v2708 = vshrl.u32 %v2707, 7
          %v2709 = vsub.s32 0, %v2708
          %v2710 = vrot.slane %v2469, %v2709
          %v2711 = vlaneseq
          %v2712 = vshrl.u32 %v2711, 7
          %v2713 = vsub.s32 0, %v2712
          %v2714 = vrot.slane %v2493, %v2713
          %v2715 = vlaneseq
          %v2716 = vshrl.u32 %v2715, 7
          %v2717 = vsub.s32 0, %v2716
          %v2718 = vrot.slane %v2507, %v2717
          %v2719 = vlaneseq
          %v2720 = vshrl.u32 %v2719, 7
          %v2721 = vsub.s32 0, %v2720
          %v2722 = vrot.slane %v2515, %v2721
          %v2723 = vlaneseq
          %v2724 = vshrl.u32 %v2723, 7
          %v2725 = vsub.s32 0, %v2724
          %v2726 = vrot.slane %v2517, %v2725
          %v2727 = vlaneseq
          %v2728 = vshrl.u32 %v2727, 7
          %v2729 = vsub.s32 0, %v2728
          %v2730 = vrot.slane %v2500, %v2729
          %v2731 = vlaneseq
          %v2732 = vshrl.u32 %v2731, 7
          %v2733 = vsub.s32 0, %v2732
          %v2734 = vrot.slane %v2514, %v2733
          %v2735 = vlaneseq
          %v2736 = vshrl.u32 %v2735, 7
          %v2737 = vsub.s32 0, %v2736
          %v2738 = vrot.slane %v2516, %v2737
          %v2739 = vlaneseq
          %v2740 = vshrl.u32 %v2739, 7
          %v2741 = vsub.s32 0, %v2740
          %v2742 = vrot.slane %v2518, %v2741
          %2743 = vrot.lane.b32.xlu0 %v2522, 121
          %v2744 = vpop.permute.xlu0 %2743
          %2745 = vrot.lane.b32.xlu0 %v2526, 121
          %v2746 = vpop.permute.xlu0 %2745
          %2747 = vrot.lane.b32.xlu0 %v2530, 121
          %v2748 = vpop.permute.xlu0 %2747
          %2749 = vrot.lane.b32.xlu0 %v2534, 121
          %v2750 = vpop.permute.xlu0 %2749
          %2751 = vrot.lane.b32.xlu0 %v2538, 121
          %v2752 = vpop.permute.xlu0 %2751
          %2753 = vrot.lane.b32.xlu0 %v2542, 121
          %v2754 = vpop.permute.xlu0 %2753
          %2755 = vrot.lane.b32.xlu0 %v2546, 121
          %v2756 = vpop.permute.xlu0 %2755
          %2757 = vrot.lane.b32.xlu0 %v2550, 121
          %v2758 = vpop.permute.xlu0 %2757
          %2759 = vrot.lane.b32.xlu0 %v2554, 121
          %v2760 = vpop.permute.xlu0 %2759
          %2761 = vrot.lane.b32.xlu0 %v2558, 121
          %v2762 = vpop.permute.xlu0 %2761
          %2763 = vrot.lane.b32.xlu0 %v2562, 121
          %v2764 = vpop.permute.xlu0 %2763
          %2765 = vrot.lane.b32.xlu0 %v2566, 121
          %v2766 = vpop.permute.xlu0 %2765
          %2767 = vrot.lane.b32.xlu0 %v2570, 121
          %v2768 = vpop.permute.xlu0 %2767
          %2769 = vrot.lane.b32.xlu0 %v2574, 121
          %v2770 = vpop.permute.xlu0 %2769
          %2771 = vrot.lane.b32.xlu0 %v2578, 121
          %v2772 = vpop.permute.xlu0 %2771
          %2773 = vrot.lane.b32.xlu0 %v2582, 121
          %v2774 = vpop.permute.xlu0 %2773
          %2775 = vrot.lane.b32.xlu0 %v2586, 121
          %v2776 = vpop.permute.xlu0 %2775
          %2777 = vrot.lane.b32.xlu0 %v2590, 121
          %v2778 = vpop.permute.xlu0 %2777
          %2779 = vrot.lane.b32.xlu0 %v2594, 121
          %v2780 = vpop.permute.xlu0 %2779
          %2781 = vrot.lane.b32.xlu0 %v2598, 121
          %v2782 = vpop.permute.xlu0 %2781
          %2783 = vrot.lane.b32.xlu0 %v2602, 121
          %v2784 = vpop.permute.xlu0 %2783
          %2785 = vrot.lane.b32.xlu0 %v2606, 121
          %v2786 = vpop.permute.xlu0 %2785
          %2787 = vrot.lane.b32.xlu0 %v2610, 121
          %v2788 = vpop.permute.xlu0 %2787
          %2789 = vrot.lane.b32.xlu0 %v2614, 121
          %v2790 = vpop.permute.xlu0 %2789
          %2791 = vrot.lane.b32.xlu0 %v2618, 121
          %v2792 = vpop.permute.xlu0 %2791
          %2793 = vrot.lane.b32.xlu0 %v2622, 121
          %v2794 = vpop.permute.xlu0 %2793
          %2795 = vrot.lane.b32.xlu0 %v2626, 121
          %v2796 = vpop.permute.xlu0 %2795
          %2797 = vrot.lane.b32.xlu0 %v2630, 121
          %v2798 = vpop.permute.xlu0 %2797
          %2799 = vrot.lane.b32.xlu0 %v2634, 121
          %v2800 = vpop.permute.xlu0 %2799
          %2801 = vrot.lane.b32.xlu0 %v2638, 121
          %v2802 = vpop.permute.xlu0 %2801
          %2803 = vrot.lane.b32.xlu0 %v2642, 121
          %v2804 = vpop.permute.xlu0 %2803
          %2805 = vrot.lane.b32.xlu0 %v2646, 121
          %v2806 = vpop.permute.xlu0 %2805
          %2807 = vrot.lane.b32.xlu0 %v2650, 121
          %v2808 = vpop.permute.xlu0 %2807
          %2809 = vrot.lane.b32.xlu0 %v2654, 121
          %v2810 = vpop.permute.xlu0 %2809
          %2811 = vrot.lane.b32.xlu0 %v2658, 121
          %v2812 = vpop.permute.xlu0 %2811
          %2813 = vrot.lane.b32.xlu0 %v2662, 121
          %v2814 = vpop.permute.xlu0 %2813
          %2815 = vrot.lane.b32.xlu0 %v2666, 121
          %v2816 = vpop.permute.xlu0 %2815
          %2817 = vrot.lane.b32.xlu0 %v2670, 121
          %v2818 = vpop.permute.xlu0 %2817
          %2819 = vrot.lane.b32.xlu0 %v2674, 121
          %v2820 = vpop.permute.xlu0 %2819
          %2821 = vrot.lane.b32.xlu0 %v2678, 121
          %v2822 = vpop.permute.xlu0 %2821
          %2823 = vrot.lane.b32.xlu0 %v2682, 121
          %v2824 = vpop.permute.xlu0 %2823
          %2825 = vrot.lane.b32.xlu0 %v2686, 121
          %v2826 = vpop.permute.xlu0 %2825
          %2827 = vrot.lane.b32.xlu0 %v2690, 121
          %v2828 = vpop.permute.xlu0 %2827
          %2829 = vrot.lane.b32.xlu0 %v2694, 121
          %v2830 = vpop.permute.xlu0 %2829
          %2831 = vrot.lane.b32.xlu0 %v2698, 121
          %v2832 = vpop.permute.xlu0 %2831
          %2833 = vrot.lane.b32.xlu0 %v2702, 121
          %v2834 = vpop.permute.xlu0 %2833
          %2835 = vrot.lane.b32.xlu0 %v2706, 121
          %v2836 = vpop.permute.xlu0 %2835
          %2837 = vrot.lane.b32.xlu0 %v2710, 121
          %v2838 = vpop.permute.xlu0 %2837
          %2839 = vrot.lane.b32.xlu0 %v2714, 121
          %v2840 = vpop.permute.xlu0 %2839
          %2841 = vrot.lane.b32.xlu0 %v2718, 121
          %v2842 = vpop.permute.xlu0 %2841
          %2843 = vrot.lane.b32.xlu0 %v2722, 121
          %v2844 = vpop.permute.xlu0 %2843
          %2845 = vrot.lane.b32.xlu0 %v2726, 121
          %v2846 = vpop.permute.xlu0 %2845
          %2847 = vrot.lane.b32.xlu0 %v2730, 121
          %v2848 = vpop.permute.xlu0 %2847
          %2849 = vrot.lane.b32.xlu0 %v2734, 121
          %v2850 = vpop.permute.xlu0 %2849
          %2851 = vrot.lane.b32.xlu0 %v2738, 121
          %v2852 = vpop.permute.xlu0 %2851
          %2853 = vrot.lane.b32.xlu0 %v2742, 121
          %v2854 = vpop.permute.xlu0 %2853
          %2911 = vst.msk [vmem:[#allocation3 + $0x7] sm:$0x1] %vm1300, %v2744
          %2912 = vst.msk [vmem:[#allocation3 + $0x17] sm:$0x1] %vm1300, %v2746
          %2913 = vst.msk [vmem:[#allocation3 + $0x27] sm:$0x1] %vm1300, %v2748
          %2914 = vst.msk [vmem:[#allocation3 + $0x37] sm:$0x1] %vm1300, %v2750
          %2915 = vst.msk [vmem:[#allocation3 + $0x47] sm:$0x1] %vm1300, %v2752
          %2916 = vst.msk [vmem:[#allocation3 + $0x57] sm:$0x1] %vm1300, %v2754
          %2917 = vst.msk [vmem:[#allocation3 + $0x67] sm:$0x1] %vm1300, %v2756
          %2918 = vst.msk [vmem:[#allocation3 + $0x77] sm:$0x1] %vm1300, %v2758
          %2919 = vst.msk [vmem:[#allocation3 + $0x87] sm:$0x1] %vm1300, %v2760
          %2920 = vst.msk [vmem:[#allocation3 + $0x97] sm:$0x1] %vm1300, %v2762
          %2921 = vst.msk [vmem:[#allocation3 + $0xa7] sm:$0x1] %vm1300, %v2764
          %2922 = vst.msk [vmem:[#allocation3 + $0xb7] sm:$0x1] %vm1300, %v2766
          %2923 = vst.msk [vmem:[#allocation3 + $0xc7] sm:$0x1] %vm1300, %v2768
          %2924 = vst.msk [vmem:[#allocation3 + $0xd7] sm:$0x1] %vm1300, %v2770
          %2925 = vst.msk [vmem:[#allocation3 + $0xe7] sm:$0x1] %vm1300, %v2772
          %2926 = vst.msk [vmem:[#allocation3 + $0xf7] sm:$0x1] %vm1300, %v2774
          %2927 = vst.msk [vmem:[#allocation3 + $0x107] sm:$0x1] %vm1300, %v2776
          %2928 = vst.msk [vmem:[#allocation3 + $0x117] sm:$0x1] %vm1300, %v2778
          %2929 = vst.msk [vmem:[#allocation3 + $0x127] sm:$0x1] %vm1300, %v2780
          %2930 = vst.msk [vmem:[#allocation3 + $0x137] sm:$0x1] %vm1300, %v2782
          %2931 = vst.msk [vmem:[#allocation3 + $0x147] sm:$0x1] %vm1300, %v2784
          %2932 = vst.msk [vmem:[#allocation3 + $0x157] sm:$0x1] %vm1300, %v2786
          %2933 = vst.msk [vmem:[#allocation3 + $0x167] sm:$0x1] %vm1300, %v2788
          %2934 = vst.msk [vmem:[#allocation3 + $0x177] sm:$0x1] %vm1300, %v2790
          %2935 = vst.msk [vmem:[#allocation3 + $0x187] sm:$0x1] %vm1300, %v2792
          %2936 = vst.msk [vmem:[#allocation3 + $0x197] sm:$0x1] %vm1300, %v2794
          %2937 = vst.msk [vmem:[#allocation3 + $0x1a7] sm:$0x1] %vm1300, %v2796
          %2938 = vst.msk [vmem:[#allocation3 + $0x1b7] sm:$0x1] %vm1300, %v2798
          %2939 = vst.msk [vmem:[#allocation3 + $0x1c7] sm:$0x1] %vm1300, %v2800
          %2940 = vst.msk [vmem:[#allocation3 + $0x1d7] sm:$0x1] %vm1300, %v2802
          %2941 = vst.msk [vmem:[#allocation3 + $0x1e7] sm:$0x1] %vm1300, %v2804
          %2942 = vst.msk [vmem:[#allocation3 + $0x1f7] sm:$0x1] %vm1300, %v2806
          %2943 = vst.msk [vmem:[#allocation3 + $0x207] sm:$0x1] %vm1300, %v2808
          %2944 = vst.msk [vmem:[#allocation3 + $0x217] sm:$0x1] %vm1300, %v2810
          %2945 = vst.msk [vmem:[#allocation3 + $0x227] sm:$0x1] %vm1300, %v2812
          %2946 = vst.msk [vmem:[#allocation3 + $0x237] sm:$0x1] %vm1300, %v2814
          %2947 = vst.msk [vmem:[#allocation3 + $0x247] sm:$0x1] %vm1300, %v2816
          %2948 = vst.msk [vmem:[#allocation3 + $0x257] sm:$0x1] %vm1300, %v2818
          %2949 = vst.msk [vmem:[#allocation3 + $0x267] sm:$0x1] %vm1300, %v2820
          %2950 = vst.msk [vmem:[#allocation3 + $0x277] sm:$0x1] %vm1300, %v2822
          %2951 = vst.msk [vmem:[#allocation3 + $0x287] sm:$0x1] %vm1300, %v2824
          %2952 = vst.msk [vmem:[#allocation3 + $0x297] sm:$0x1] %vm1300, %v2826
          %2953 = vst.msk [vmem:[#allocation3 + $0x2a7] sm:$0x1] %vm1300, %v2828
          %2954 = vst.msk [vmem:[#allocation3 + $0x2b7] sm:$0x1] %vm1300, %v2830
          %2955 = vst.msk [vmem:[#allocation3 + $0x2c7] sm:$0x1] %vm1300, %v2832
          %2956 = vst.msk [vmem:[#allocation3 + $0x2d7] sm:$0x1] %vm1300, %v2834
          %2957 = vst.msk [vmem:[#allocation3 + $0x2e7] sm:$0x1] %vm1300, %v2836
          %2958 = vst.msk [vmem:[#allocation3 + $0x2f7] sm:$0x1] %vm1300, %v2838
          %2959 = vst.msk [vmem:[#allocation3 + $0x307] sm:$0x1] %vm1300, %v2840
          %2960 = vst.msk [vmem:[#allocation3 + $0x317] sm:$0x1] %vm1300, %v2842
          %2961 = vst.msk [vmem:[#allocation3 + $0x327] sm:$0x1] %vm1300, %v2844
          %2962 = vst.msk [vmem:[#allocation3 + $0x337] sm:$0x1] %vm1300, %v2846
          %2963 = vst.msk [vmem:[#allocation3 + $0x347] sm:$0x1] %vm1300, %v2848
          %2964 = vst.msk [vmem:[#allocation3 + $0x357] sm:$0x1] %vm1300, %v2850
          %2965 = vst.msk [vmem:[#allocation3 + $0x367] sm:$0x1] %vm1300, %v2852
          %2966 = vst.msk [vmem:[#allocation3 + $0x377] sm:$0x1] %vm1300, %v2854
          %v2967 = vld [vmem:[#allocation2] sm:$0xff]
          %v2968 = vld [vmem:[#allocation2 + $0x8] sm:$0xff]
          %v2969 = vld [vmem:[#allocation2 + $0x10] sm:$0xff]
          %v2970 = vld [vmem:[#allocation2 + $0x18] sm:$0xff]
          %v2971 = vld [vmem:[#allocation2 + $0x20] sm:$0xff]
          %v2972 = vld [vmem:[#allocation2 + $0x28] sm:$0xff]
          %v2973 = vld [vmem:[#allocation2 + $0x30] sm:$0xff]
          %v2981 = vcombine.high %v2967, %v2967
          %v2983 = vunpack.c.l.s4 1966171168
          %v2984 = vunpack.c.0.s8 %v2983
          %v2985 = vlaneseq
          %v2986 = vshrl.u32 %v2985, 7
          %v2987 = vsub.s32 %v2984, %v2986
          %v2988 = vrot.slane %v2967, %v2987
          %v2990 = vunpack.c.l.s4 1966171168
          %v2991 = vunpack.c.0.s8 %v2990
          %v2992 = vlaneseq
          %v2993 = vshrl.u32 %v2992, 7
          %v2994 = vsub.s32 %v2991, %v2993
          %v2995 = vrot.slane %v2981, %v2994
          %v2996 = vcombine.high %v2988, %v2988
          %v2997 = vcombine.high %v2995, %v2995
          %v2999 = vunpack.c.l.s4 1966171168
          %v3000 = vunpack.c.0.s8 %v2999
          %v3001 = vlaneseq
          %v3002 = vshrl.u32 %v3001, 7
          %v3003 = vsub.s32 %v3000, %v3002
          %v3004 = vrot.slane %v2988, %v3003
          %v3006 = vunpack.c.l.s4 1966171168
          %v3007 = vunpack.c.0.s8 %v3006
          %v3008 = vlaneseq
          %v3009 = vshrl.u32 %v3008, 7
          %v3010 = vsub.s32 %v3007, %v3009
          %v3011 = vrot.slane %v2995, %v3010
          %v3013 = vunpack.c.l.s4 1966171168
          %v3014 = vunpack.c.0.s8 %v3013
          %v3015 = vlaneseq
          %v3016 = vshrl.u32 %v3015, 7
          %v3017 = vsub.s32 %v3014, %v3016
          %v3018 = vrot.slane %v2996, %v3017
          %v3020 = vunpack.c.l.s4 1966171168
          %v3021 = vunpack.c.0.s8 %v3020
          %v3022 = vlaneseq
          %v3023 = vshrl.u32 %v3022, 7
          %v3024 = vsub.s32 %v3021, %v3023
          %v3025 = vrot.slane %v2997, %v3024
          %v3026 = vcombine.high %v3004, %v3004
          %v3027 = vcombine.high %v3011, %v3011
          %v3028 = vcombine.high %v3018, %v3018
          %v3029 = vcombine.high %v3025, %v3025
          %v3030 = vcombine.high %v2968, %v2968
          %v3032 = vunpack.c.l.s4 1966171168
          %v3033 = vunpack.c.0.s8 %v3032
          %v3034 = vlaneseq
          %v3035 = vshrl.u32 %v3034, 7
          %v3036 = vsub.s32 %v3033, %v3035
          %v3037 = vrot.slane %v2968, %v3036
          %v3039 = vunpack.c.l.s4 1966171168
          %v3040 = vunpack.c.0.s8 %v3039
          %v3041 = vlaneseq
          %v3042 = vshrl.u32 %v3041, 7
          %v3043 = vsub.s32 %v3040, %v3042
          %v3044 = vrot.slane %v3030, %v3043
          %v3045 = vcombine.high %v3037, %v3037
          %v3046 = vcombine.high %v3044, %v3044
          %v3048 = vunpack.c.l.s4 1966171168
          %v3049 = vunpack.c.0.s8 %v3048
          %v3050 = vlaneseq
          %v3051 = vshrl.u32 %v3050, 7
          %v3052 = vsub.s32 %v3049, %v3051
          %v3053 = vrot.slane %v3037, %v3052
          %v3055 = vunpack.c.l.s4 1966171168
          %v3056 = vunpack.c.0.s8 %v3055
          %v3057 = vlaneseq
          %v3058 = vshrl.u32 %v3057, 7
          %v3059 = vsub.s32 %v3056, %v3058
          %v3060 = vrot.slane %v3044, %v3059
          %v3062 = vunpack.c.l.s4 1966171168
          %v3063 = vunpack.c.0.s8 %v3062
          %v3064 = vlaneseq
          %v3065 = vshrl.u32 %v3064, 7
          %v3066 = vsub.s32 %v3063, %v3065
          %v3067 = vrot.slane %v3045, %v3066
          %v3069 = vunpack.c.l.s4 1966171168
          %v3070 = vunpack.c.0.s8 %v3069
          %v3071 = vlaneseq
          %v3072 = vshrl.u32 %v3071, 7
          %v3073 = vsub.s32 %v3070, %v3072
          %v3074 = vrot.slane %v3046, %v3073
          %v3075 = vcombine.high %v3053, %v3053
          %v3076 = vcombine.high %v3060, %v3060
          %v3077 = vcombine.high %v3067, %v3067
          %v3078 = vcombine.high %v3074, %v3074
          %v3079 = vcombine.high %v2969, %v2969
          %v3081 = vunpack.c.l.s4 1966171168
          %v3082 = vunpack.c.0.s8 %v3081
          %v3083 = vlaneseq
          %v3084 = vshrl.u32 %v3083, 7
          %v3085 = vsub.s32 %v3082, %v3084
          %v3086 = vrot.slane %v2969, %v3085
          %v3088 = vunpack.c.l.s4 1966171168
          %v3089 = vunpack.c.0.s8 %v3088
          %v3090 = vlaneseq
          %v3091 = vshrl.u32 %v3090, 7
          %v3092 = vsub.s32 %v3089, %v3091
          %v3093 = vrot.slane %v3079, %v3092
          %v3094 = vcombine.high %v3086, %v3086
          %v3095 = vcombine.high %v3093, %v3093
          %v3097 = vunpack.c.l.s4 1966171168
          %v3098 = vunpack.c.0.s8 %v3097
          %v3099 = vlaneseq
          %v3100 = vshrl.u32 %v3099, 7
          %v3101 = vsub.s32 %v3098, %v3100
          %v3102 = vrot.slane %v3086, %v3101
          %v3104 = vunpack.c.l.s4 1966171168
          %v3105 = vunpack.c.0.s8 %v3104
          %v3106 = vlaneseq
          %v3107 = vshrl.u32 %v3106, 7
          %v3108 = vsub.s32 %v3105, %v3107
          %v3109 = vrot.slane %v3093, %v3108
          %v3111 = vunpack.c.l.s4 1966171168
          %v3112 = vunpack.c.0.s8 %v3111
          %v3113 = vlaneseq
          %v3114 = vshrl.u32 %v3113, 7
          %v3115 = vsub.s32 %v3112, %v3114
          %v3116 = vrot.slane %v3094, %v3115
          %v3118 = vunpack.c.l.s4 1966171168
          %v3119 = vunpack.c.0.s8 %v3118
          %v3120 = vlaneseq
          %v3121 = vshrl.u32 %v3120, 7
          %v3122 = vsub.s32 %v3119, %v3121
          %v3123 = vrot.slane %v3095, %v3122
          %v3124 = vcombine.high %v3102, %v3102
          %v3125 = vcombine.high %v3109, %v3109
          %v3126 = vcombine.high %v3116, %v3116
          %v3127 = vcombine.high %v3123, %v3123
          %v3128 = vcombine.high %v2970, %v2970
          %v3130 = vunpack.c.l.s4 1966171168
          %v3131 = vunpack.c.0.s8 %v3130
          %v3132 = vlaneseq
          %v3133 = vshrl.u32 %v3132, 7
          %v3134 = vsub.s32 %v3131, %v3133
          %v3135 = vrot.slane %v2970, %v3134
          %v3137 = vunpack.c.l.s4 1966171168
          %v3138 = vunpack.c.0.s8 %v3137
          %v3139 = vlaneseq
          %v3140 = vshrl.u32 %v3139, 7
          %v3141 = vsub.s32 %v3138, %v3140
          %v3142 = vrot.slane %v3128, %v3141
          %v3143 = vcombine.high %v3135, %v3135
          %v3144 = vcombine.high %v3142, %v3142
          %v3146 = vunpack.c.l.s4 1966171168
          %v3147 = vunpack.c.0.s8 %v3146
          %v3148 = vlaneseq
          %v3149 = vshrl.u32 %v3148, 7
          %v3150 = vsub.s32 %v3147, %v3149
          %v3151 = vrot.slane %v3135, %v3150
          %v3153 = vunpack.c.l.s4 1966171168
          %v3154 = vunpack.c.0.s8 %v3153
          %v3155 = vlaneseq
          %v3156 = vshrl.u32 %v3155, 7
          %v3157 = vsub.s32 %v3154, %v3156
          %v3158 = vrot.slane %v3142, %v3157
          %v3160 = vunpack.c.l.s4 1966171168
          %v3161 = vunpack.c.0.s8 %v3160
          %v3162 = vlaneseq
          %v3163 = vshrl.u32 %v3162, 7
          %v3164 = vsub.s32 %v3161, %v3163
          %v3165 = vrot.slane %v3143, %v3164
          %v3167 = vunpack.c.l.s4 1966171168
          %v3168 = vunpack.c.0.s8 %v3167
          %v3169 = vlaneseq
          %v3170 = vshrl.u32 %v3169, 7
          %v3171 = vsub.s32 %v3168, %v3170
          %v3172 = vrot.slane %v3144, %v3171
          %v3173 = vcombine.high %v3151, %v3151
          %v3174 = vcombine.high %v3158, %v3158
          %v3175 = vcombine.high %v3165, %v3165
          %v3176 = vcombine.high %v3172, %v3172
          %v3177 = vcombine.high %v2971, %v2971
          %v3179 = vunpack.c.l.s4 1966171168
          %v3180 = vunpack.c.0.s8 %v3179
          %v3181 = vlaneseq
          %v3182 = vshrl.u32 %v3181, 7
          %v3183 = vsub.s32 %v3180, %v3182
          %v3184 = vrot.slane %v2971, %v3183
          %v3186 = vunpack.c.l.s4 1966171168
          %v3187 = vunpack.c.0.s8 %v3186
          %v3188 = vlaneseq
          %v3189 = vshrl.u32 %v3188, 7
          %v3190 = vsub.s32 %v3187, %v3189
          %v3191 = vrot.slane %v3177, %v3190
          %v3192 = vcombine.high %v3184, %v3184
          %v3193 = vcombine.high %v3191, %v3191
          %v3195 = vunpack.c.l.s4 1966171168
          %v3196 = vunpack.c.0.s8 %v3195
          %v3197 = vlaneseq
          %v3198 = vshrl.u32 %v3197, 7
          %v3199 = vsub.s32 %v3196, %v3198
          %v3200 = vrot.slane %v3184, %v3199
          %v3202 = vunpack.c.l.s4 1966171168
          %v3203 = vunpack.c.0.s8 %v3202
          %v3204 = vlaneseq
          %v3205 = vshrl.u32 %v3204, 7
          %v3206 = vsub.s32 %v3203, %v3205
          %v3207 = vrot.slane %v3191, %v3206
          %v3209 = vunpack.c.l.s4 1966171168
          %v3210 = vunpack.c.0.s8 %v3209
          %v3211 = vlaneseq
          %v3212 = vshrl.u32 %v3211, 7
          %v3213 = vsub.s32 %v3210, %v3212
          %v3214 = vrot.slane %v3192, %v3213
          %v3216 = vunpack.c.l.s4 1966171168
          %v3217 = vunpack.c.0.s8 %v3216
          %v3218 = vlaneseq
          %v3219 = vshrl.u32 %v3218, 7
          %v3220 = vsub.s32 %v3217, %v3219
          %v3221 = vrot.slane %v3193, %v3220
          %v3222 = vcombine.high %v3200, %v3200
          %v3223 = vcombine.high %v3207, %v3207
          %v3224 = vcombine.high %v3214, %v3214
          %v3225 = vcombine.high %v3221, %v3221
          %v3226 = vcombine.high %v2972, %v2972
          %v3228 = vunpack.c.l.s4 1966171168
          %v3229 = vunpack.c.0.s8 %v3228
          %v3230 = vlaneseq
          %v3231 = vshrl.u32 %v3230, 7
          %v3232 = vsub.s32 %v3229, %v3231
          %v3233 = vrot.slane %v2972, %v3232
          %v3235 = vunpack.c.l.s4 1966171168
          %v3236 = vunpack.c.0.s8 %v3235
          %v3237 = vlaneseq
          %v3238 = vshrl.u32 %v3237, 7
          %v3239 = vsub.s32 %v3236, %v3238
          %v3240 = vrot.slane %v3226, %v3239
          %v3241 = vcombine.high %v3233, %v3233
          %v3242 = vcombine.high %v3240, %v3240
          %v3244 = vunpack.c.l.s4 1966171168
          %v3245 = vunpack.c.0.s8 %v3244
          %v3246 = vlaneseq
          %v3247 = vshrl.u32 %v3246, 7
          %v3248 = vsub.s32 %v3245, %v3247
          %v3249 = vrot.slane %v3233, %v3248
          %v3251 = vunpack.c.l.s4 1966171168
          %v3252 = vunpack.c.0.s8 %v3251
          %v3253 = vlaneseq
          %v3254 = vshrl.u32 %v3253, 7
          %v3255 = vsub.s32 %v3252, %v3254
          %v3256 = vrot.slane %v3240, %v3255
          %v3258 = vunpack.c.l.s4 1966171168
          %v3259 = vunpack.c.0.s8 %v3258
          %v3260 = vlaneseq
          %v3261 = vshrl.u32 %v3260, 7
          %v3262 = vsub.s32 %v3259, %v3261
          %v3263 = vrot.slane %v3241, %v3262
          %v3265 = vunpack.c.l.s4 1966171168
          %v3266 = vunpack.c.0.s8 %v3265
          %v3267 = vlaneseq
          %v3268 = vshrl.u32 %v3267, 7
          %v3269 = vsub.s32 %v3266, %v3268
          %v3270 = vrot.slane %v3242, %v3269
          %v3271 = vcombine.high %v3249, %v3249
          %v3272 = vcombine.high %v3256, %v3256
          %v3273 = vcombine.high %v3263, %v3263
          %v3274 = vcombine.high %v3270, %v3270
          %v3275 = vcombine.high %v2973, %v2973
          %v3277 = vunpack.c.l.s4 1966171168
          %v3278 = vunpack.c.0.s8 %v3277
          %v3279 = vlaneseq
          %v3280 = vshrl.u32 %v3279, 7
          %v3281 = vsub.s32 %v3278, %v3280
          %v3282 = vrot.slane %v2973, %v3281
          %v3284 = vunpack.c.l.s4 1966171168
          %v3285 = vunpack.c.0.s8 %v3284
          %v3286 = vlaneseq
          %v3287 = vshrl.u32 %v3286, 7
          %v3288 = vsub.s32 %v3285, %v3287
          %v3289 = vrot.slane %v3275, %v3288
          %v3290 = vcombine.high %v3282, %v3282
          %v3291 = vcombine.high %v3289, %v3289
          %v3293 = vunpack.c.l.s4 1966171168
          %v3294 = vunpack.c.0.s8 %v3293
          %v3295 = vlaneseq
          %v3296 = vshrl.u32 %v3295, 7
          %v3297 = vsub.s32 %v3294, %v3296
          %v3298 = vrot.slane %v3282, %v3297
          %v3300 = vunpack.c.l.s4 1966171168
          %v3301 = vunpack.c.0.s8 %v3300
          %v3302 = vlaneseq
          %v3303 = vshrl.u32 %v3302, 7
          %v3304 = vsub.s32 %v3301, %v3303
          %v3305 = vrot.slane %v3289, %v3304
          %v3307 = vunpack.c.l.s4 1966171168
          %v3308 = vunpack.c.0.s8 %v3307
          %v3309 = vlaneseq
          %v3310 = vshrl.u32 %v3309, 7
          %v3311 = vsub.s32 %v3308, %v3310
          %v3312 = vrot.slane %v3290, %v3311
          %v3314 = vunpack.c.l.s4 1966171168
          %v3315 = vunpack.c.0.s8 %v3314
          %v3316 = vlaneseq
          %v3317 = vshrl.u32 %v3316, 7
          %v3318 = vsub.s32 %v3315, %v3317
          %v3319 = vrot.slane %v3291, %v3318
          %v3320 = vcombine.high %v3298, %v3298
          %v3321 = vcombine.high %v3305, %v3305
          %v3322 = vcombine.high %v3312, %v3312
          %v3323 = vcombine.high %v3319, %v3319
          %v3324 = vlaneseq
          %v3325 = vshrl.u32 %v3324, 7
          %v3326 = vsub.s32 0, %v3325
          %v3327 = vrot.slane %v3004, %v3326
          %v3328 = vlaneseq
          %v3329 = vshrl.u32 %v3328, 7
          %v3330 = vsub.s32 0, %v3329
          %v3331 = vrot.slane %v3018, %v3330
          %v3332 = vlaneseq
          %v3333 = vshrl.u32 %v3332, 7
          %v3334 = vsub.s32 0, %v3333
          %v3335 = vrot.slane %v3026, %v3334
          %v3336 = vlaneseq
          %v3337 = vshrl.u32 %v3336, 7
          %v3338 = vsub.s32 0, %v3337
          %v3339 = vrot.slane %v3028, %v3338
          %v3340 = vlaneseq
          %v3341 = vshrl.u32 %v3340, 7
          %v3342 = vsub.s32 0, %v3341
          %v3343 = vrot.slane %v3011, %v3342
          %v3344 = vlaneseq
          %v3345 = vshrl.u32 %v3344, 7
          %v3346 = vsub.s32 0, %v3345
          %v3347 = vrot.slane %v3025, %v3346
          %v3348 = vlaneseq
          %v3349 = vshrl.u32 %v3348, 7
          %v3350 = vsub.s32 0, %v3349
          %v3351 = vrot.slane %v3027, %v3350
          %v3352 = vlaneseq
          %v3353 = vshrl.u32 %v3352, 7
          %v3354 = vsub.s32 0, %v3353
          %v3355 = vrot.slane %v3029, %v3354
          %v3356 = vlaneseq
          %v3357 = vshrl.u32 %v3356, 7
          %v3358 = vsub.s32 0, %v3357
          %v3359 = vrot.slane %v3053, %v3358
          %v3360 = vlaneseq
          %v3361 = vshrl.u32 %v3360, 7
          %v3362 = vsub.s32 0, %v3361
          %v3363 = vrot.slane %v3067, %v3362
          %v3364 = vlaneseq
          %v3365 = vshrl.u32 %v3364, 7
          %v3366 = vsub.s32 0, %v3365
          %v3367 = vrot.slane %v3075, %v3366
          %v3368 = vlaneseq
          %v3369 = vshrl.u32 %v3368, 7
          %v3370 = vsub.s32 0, %v3369
          %v3371 = vrot.slane %v3077, %v3370
          %v3372 = vlaneseq
          %v3373 = vshrl.u32 %v3372, 7
          %v3374 = vsub.s32 0, %v3373
          %v3375 = vrot.slane %v3060, %v3374
          %v3376 = vlaneseq
          %v3377 = vshrl.u32 %v3376, 7
          %v3378 = vsub.s32 0, %v3377
          %v3379 = vrot.slane %v3074, %v3378
          %v3380 = vlaneseq
          %v3381 = vshrl.u32 %v3380, 7
          %v3382 = vsub.s32 0, %v3381
          %v3383 = vrot.slane %v3076, %v3382
          %v3384 = vlaneseq
          %v3385 = vshrl.u32 %v3384, 7
          %v3386 = vsub.s32 0, %v3385
          %v3387 = vrot.slane %v3078, %v3386
          %v3388 = vlaneseq
          %v3389 = vshrl.u32 %v3388, 7
          %v3390 = vsub.s32 0, %v3389
          %v3391 = vrot.slane %v3102, %v3390
          %v3392 = vlaneseq
          %v3393 = vshrl.u32 %v3392, 7
          %v3394 = vsub.s32 0, %v3393
          %v3395 = vrot.slane %v3116, %v3394
          %v3396 = vlaneseq
          %v3397 = vshrl.u32 %v3396, 7
          %v3398 = vsub.s32 0, %v3397
          %v3399 = vrot.slane %v3124, %v3398
          %v3400 = vlaneseq
          %v3401 = vshrl.u32 %v3400, 7
          %v3402 = vsub.s32 0, %v3401
          %v3403 = vrot.slane %v3126, %v3402
          %v3404 = vlaneseq
          %v3405 = vshrl.u32 %v3404, 7
          %v3406 = vsub.s32 0, %v3405
          %v3407 = vrot.slane %v3109, %v3406
          %v3408 = vlaneseq
          %v3409 = vshrl.u32 %v3408, 7
          %v3410 = vsub.s32 0, %v3409
          %v3411 = vrot.slane %v3123, %v3410
          %v3412 = vlaneseq
          %v3413 = vshrl.u32 %v3412, 7
          %v3414 = vsub.s32 0, %v3413
          %v3415 = vrot.slane %v3125, %v3414
          %v3416 = vlaneseq
          %v3417 = vshrl.u32 %v3416, 7
          %v3418 = vsub.s32 0, %v3417
          %v3419 = vrot.slane %v3127, %v3418
          %v3420 = vlaneseq
          %v3421 = vshrl.u32 %v3420, 7
          %v3422 = vsub.s32 0, %v3421
          %v3423 = vrot.slane %v3151, %v3422
          %v3424 = vlaneseq
          %v3425 = vshrl.u32 %v3424, 7
          %v3426 = vsub.s32 0, %v3425
          %v3427 = vrot.slane %v3165, %v3426
          %v3428 = vlaneseq
          %v3429 = vshrl.u32 %v3428, 7
          %v3430 = vsub.s32 0, %v3429
          %v3431 = vrot.slane %v3173, %v3430
          %v3432 = vlaneseq
          %v3433 = vshrl.u32 %v3432, 7
          %v3434 = vsub.s32 0, %v3433
          %v3435 = vrot.slane %v3175, %v3434
          %v3436 = vlaneseq
          %v3437 = vshrl.u32 %v3436, 7
          %v3438 = vsub.s32 0, %v3437
          %v3439 = vrot.slane %v3158, %v3438
          %v3440 = vlaneseq
          %v3441 = vshrl.u32 %v3440, 7
          %v3442 = vsub.s32 0, %v3441
          %v3443 = vrot.slane %v3172, %v3442
          %v3444 = vlaneseq
          %v3445 = vshrl.u32 %v3444, 7
          %v3446 = vsub.s32 0, %v3445
          %v3447 = vrot.slane %v3174, %v3446
          %v3448 = vlaneseq
          %v3449 = vshrl.u32 %v3448, 7
          %v3450 = vsub.s32 0, %v3449
          %v3451 = vrot.slane %v3176, %v3450
          %v3452 = vlaneseq
          %v3453 = vshrl.u32 %v3452, 7
          %v3454 = vsub.s32 0, %v3453
          %v3455 = vrot.slane %v3200, %v3454
          %v3456 = vlaneseq
          %v3457 = vshrl.u32 %v3456, 7
          %v3458 = vsub.s32 0, %v3457
          %v3459 = vrot.slane %v3214, %v3458
          %v3460 = vlaneseq
          %v3461 = vshrl.u32 %v3460, 7
          %v3462 = vsub.s32 0, %v3461
          %v3463 = vrot.slane %v3222, %v3462
          %v3464 = vlaneseq
          %v3465 = vshrl.u32 %v3464, 7
          %v3466 = vsub.s32 0, %v3465
          %v3467 = vrot.slane %v3224, %v3466
          %v3468 = vlaneseq
          %v3469 = vshrl.u32 %v3468, 7
          %v3470 = vsub.s32 0, %v3469
          %v3471 = vrot.slane %v3207, %v3470
          %v3472 = vlaneseq
          %v3473 = vshrl.u32 %v3472, 7
          %v3474 = vsub.s32 0, %v3473
          %v3475 = vrot.slane %v3221, %v3474
          %v3476 = vlaneseq
          %v3477 = vshrl.u32 %v3476, 7
          %v3478 = vsub.s32 0, %v3477
          %v3479 = vrot.slane %v3223, %v3478
          %v3480 = vlaneseq
          %v3481 = vshrl.u32 %v3480, 7
          %v3482 = vsub.s32 0, %v3481
          %v3483 = vrot.slane %v3225, %v3482
          %v3484 = vlaneseq
          %v3485 = vshrl.u32 %v3484, 7
          %v3486 = vsub.s32 0, %v3485
          %v3487 = vrot.slane %v3249, %v3486
          %v3488 = vlaneseq
          %v3489 = vshrl.u32 %v3488, 7
          %v3490 = vsub.s32 0, %v3489
          %v3491 = vrot.slane %v3263, %v3490
          %v3492 = vlaneseq
          %v3493 = vshrl.u32 %v3492, 7
          %v3494 = vsub.s32 0, %v3493
          %v3495 = vrot.slane %v3271, %v3494
          %v3496 = vlaneseq
          %v3497 = vshrl.u32 %v3496, 7
          %v3498 = vsub.s32 0, %v3497
          %v3499 = vrot.slane %v3273, %v3498
          %v3500 = vlaneseq
          %v3501 = vshrl.u32 %v3500, 7
          %v3502 = vsub.s32 0, %v3501
          %v3503 = vrot.slane %v3256, %v3502
          %v3504 = vlaneseq
          %v3505 = vshrl.u32 %v3504, 7
          %v3506 = vsub.s32 0, %v3505
          %v3507 = vrot.slane %v3270, %v3506
          %v3508 = vlaneseq
          %v3509 = vshrl.u32 %v3508, 7
          %v3510 = vsub.s32 0, %v3509
          %v3511 = vrot.slane %v3272, %v3510
          %v3512 = vlaneseq
          %v3513 = vshrl.u32 %v3512, 7
          %v3514 = vsub.s32 0, %v3513
          %v3515 = vrot.slane %v3274, %v3514
          %v3516 = vlaneseq
          %v3517 = vshrl.u32 %v3516, 7
          %v3518 = vsub.s32 0, %v3517
          %v3519 = vrot.slane %v3298, %v3518
          %v3520 = vlaneseq
          %v3521 = vshrl.u32 %v3520, 7
          %v3522 = vsub.s32 0, %v3521
          %v3523 = vrot.slane %v3312, %v3522
          %v3524 = vlaneseq
          %v3525 = vshrl.u32 %v3524, 7
          %v3526 = vsub.s32 0, %v3525
          %v3527 = vrot.slane %v3320, %v3526
          %v3528 = vlaneseq
          %v3529 = vshrl.u32 %v3528, 7
          %v3530 = vsub.s32 0, %v3529
          %v3531 = vrot.slane %v3322, %v3530
          %v3532 = vlaneseq
          %v3533 = vshrl.u32 %v3532, 7
          %v3534 = vsub.s32 0, %v3533
          %v3535 = vrot.slane %v3305, %v3534
          %v3536 = vlaneseq
          %v3537 = vshrl.u32 %v3536, 7
          %v3538 = vsub.s32 0, %v3537
          %v3539 = vrot.slane %v3319, %v3538
          %v3540 = vlaneseq
          %v3541 = vshrl.u32 %v3540, 7
          %v3542 = vsub.s32 0, %v3541
          %v3543 = vrot.slane %v3321, %v3542
          %v3544 = vlaneseq
          %v3545 = vshrl.u32 %v3544, 7
          %v3546 = vsub.s32 0, %v3545
          %v3547 = vrot.slane %v3323, %v3546
          %3548 = vrot.lane.b32.xlu0 %v3327, 115
          %v3549 = vpop.permute.xlu0 %3548
          %3550 = vrot.lane.b32.xlu0 %v3331, 115
          %v3551 = vpop.permute.xlu0 %3550
          %3552 = vrot.lane.b32.xlu0 %v3335, 115
          %v3553 = vpop.permute.xlu0 %3552
          %3554 = vrot.lane.b32.xlu0 %v3339, 115
          %v3555 = vpop.permute.xlu0 %3554
          %3556 = vrot.lane.b32.xlu0 %v3343, 115
          %v3557 = vpop.permute.xlu0 %3556
          %3558 = vrot.lane.b32.xlu0 %v3347, 115
          %v3559 = vpop.permute.xlu0 %3558
          %3560 = vrot.lane.b32.xlu0 %v3351, 115
          %v3561 = vpop.permute.xlu0 %3560
          %3562 = vrot.lane.b32.xlu0 %v3355, 115
          %v3563 = vpop.permute.xlu0 %3562
          %3564 = vrot.lane.b32.xlu0 %v3359, 115
          %v3565 = vpop.permute.xlu0 %3564
          %3566 = vrot.lane.b32.xlu0 %v3363, 115
          %v3567 = vpop.permute.xlu0 %3566
          %3568 = vrot.lane.b32.xlu0 %v3367, 115
          %v3569 = vpop.permute.xlu0 %3568
          %3570 = vrot.lane.b32.xlu0 %v3371, 115
          %v3571 = vpop.permute.xlu0 %3570
          %3572 = vrot.lane.b32.xlu0 %v3375, 115
          %v3573 = vpop.permute.xlu0 %3572
          %3574 = vrot.lane.b32.xlu0 %v3379, 115
          %v3575 = vpop.permute.xlu0 %3574
          %3576 = vrot.lane.b32.xlu0 %v3383, 115
          %v3577 = vpop.permute.xlu0 %3576
          %3578 = vrot.lane.b32.xlu0 %v3387, 115
          %v3579 = vpop.permute.xlu0 %3578
          %3580 = vrot.lane.b32.xlu0 %v3391, 115
          %v3581 = vpop.permute.xlu0 %3580
          %3582 = vrot.lane.b32.xlu0 %v3395, 115
          %v3583 = vpop.permute.xlu0 %3582
          %3584 = vrot.lane.b32.xlu0 %v3399, 115
          %v3585 = vpop.permute.xlu0 %3584
          %3586 = vrot.lane.b32.xlu0 %v3403, 115
          %v3587 = vpop.permute.xlu0 %3586
          %3588 = vrot.lane.b32.xlu0 %v3407, 115
          %v3589 = vpop.permute.xlu0 %3588
          %3590 = vrot.lane.b32.xlu0 %v3411, 115
          %v3591 = vpop.permute.xlu0 %3590
          %3592 = vrot.lane.b32.xlu0 %v3415, 115
          %v3593 = vpop.permute.xlu0 %3592
          %3594 = vrot.lane.b32.xlu0 %v3419, 115
          %v3595 = vpop.permute.xlu0 %3594
          %3596 = vrot.lane.b32.xlu0 %v3423, 115
          %v3597 = vpop.permute.xlu0 %3596
          %3598 = vrot.lane.b32.xlu0 %v3427, 115
          %v3599 = vpop.permute.xlu0 %3598
          %3600 = vrot.lane.b32.xlu0 %v3431, 115
          %v3601 = vpop.permute.xlu0 %3600
          %3602 = vrot.lane.b32.xlu0 %v3435, 115
          %v3603 = vpop.permute.xlu0 %3602
          %3604 = vrot.lane.b32.xlu0 %v3439, 115
          %v3605 = vpop.permute.xlu0 %3604
          %3606 = vrot.lane.b32.xlu0 %v3443, 115
          %v3607 = vpop.permute.xlu0 %3606
          %3608 = vrot.lane.b32.xlu0 %v3447, 115
          %v3609 = vpop.permute.xlu0 %3608
          %3610 = vrot.lane.b32.xlu0 %v3451, 115
          %v3611 = vpop.permute.xlu0 %3610
          %3612 = vrot.lane.b32.xlu0 %v3455, 115
          %v3613 = vpop.permute.xlu0 %3612
          %3614 = vrot.lane.b32.xlu0 %v3459, 115
          %v3615 = vpop.permute.xlu0 %3614
          %3616 = vrot.lane.b32.xlu0 %v3463, 115
          %v3617 = vpop.permute.xlu0 %3616
          %3618 = vrot.lane.b32.xlu0 %v3467, 115
          %v3619 = vpop.permute.xlu0 %3618
          %3620 = vrot.lane.b32.xlu0 %v3471, 115
          %v3621 = vpop.permute.xlu0 %3620
          %3622 = vrot.lane.b32.xlu0 %v3475, 115
          %v3623 = vpop.permute.xlu0 %3622
          %3624 = vrot.lane.b32.xlu0 %v3479, 115
          %v3625 = vpop.permute.xlu0 %3624
          %3626 = vrot.lane.b32.xlu0 %v3483, 115
          %v3627 = vpop.permute.xlu0 %3626
          %3628 = vrot.lane.b32.xlu0 %v3487, 115
          %v3629 = vpop.permute.xlu0 %3628
          %3630 = vrot.lane.b32.xlu0 %v3491, 115
          %v3631 = vpop.permute.xlu0 %3630
          %3632 = vrot.lane.b32.xlu0 %v3495, 115
          %v3633 = vpop.permute.xlu0 %3632
          %3634 = vrot.lane.b32.xlu0 %v3499, 115
          %v3635 = vpop.permute.xlu0 %3634
          %3636 = vrot.lane.b32.xlu0 %v3503, 115
          %v3637 = vpop.permute.xlu0 %3636
          %3638 = vrot.lane.b32.xlu0 %v3507, 115
          %v3639 = vpop.permute.xlu0 %3638
          %3640 = vrot.lane.b32.xlu0 %v3511, 115
          %v3641 = vpop.permute.xlu0 %3640
          %3642 = vrot.lane.b32.xlu0 %v3515, 115
          %v3643 = vpop.permute.xlu0 %3642
          %3644 = vrot.lane.b32.xlu0 %v3519, 115
          %v3645 = vpop.permute.xlu0 %3644
          %3646 = vrot.lane.b32.xlu0 %v3523, 115
          %v3647 = vpop.permute.xlu0 %3646
          %3648 = vrot.lane.b32.xlu0 %v3527, 115
          %v3649 = vpop.permute.xlu0 %3648
          %3650 = vrot.lane.b32.xlu0 %v3531, 115
          %v3651 = vpop.permute.xlu0 %3650
          %3652 = vrot.lane.b32.xlu0 %v3535, 115
          %v3653 = vpop.permute.xlu0 %3652
          %3654 = vrot.lane.b32.xlu0 %v3539, 115
          %v3655 = vpop.permute.xlu0 %3654
          %3656 = vrot.lane.b32.xlu0 %v3543, 115
          %v3657 = vpop.permute.xlu0 %3656
          %3658 = vrot.lane.b32.xlu0 %v3547, 115
          %v3659 = vpop.permute.xlu0 %3658
          %3716 = vst.msk [vmem:[#allocation3 + $0x8] sm:$0x1] %vm1300, %v3549
          %3717 = vst.msk [vmem:[#allocation3 + $0x18] sm:$0x1] %vm1300, %v3551
          %3718 = vst.msk [vmem:[#allocation3 + $0x28] sm:$0x1] %vm1300, %v3553
          %3719 = vst.msk [vmem:[#allocation3 + $0x38] sm:$0x1] %vm1300, %v3555
          %3720 = vst.msk [vmem:[#allocation3 + $0x48] sm:$0x1] %vm1300, %v3557
          %3721 = vst.msk [vmem:[#allocation3 + $0x58] sm:$0x1] %vm1300, %v3559
          %3722 = vst.msk [vmem:[#allocation3 + $0x68] sm:$0x1] %vm1300, %v3561
          %3723 = vst.msk [vmem:[#allocation3 + $0x78] sm:$0x1] %vm1300, %v3563
          %3724 = vst.msk [vmem:[#allocation3 + $0x88] sm:$0x1] %vm1300, %v3565
          %3725 = vst.msk [vmem:[#allocation3 + $0x98] sm:$0x1] %vm1300, %v3567
          %3726 = vst.msk [vmem:[#allocation3 + $0xa8] sm:$0x1] %vm1300, %v3569
          %3727 = vst.msk [vmem:[#allocation3 + $0xb8] sm:$0x1] %vm1300, %v3571
          %3728 = vst.msk [vmem:[#allocation3 + $0xc8] sm:$0x1] %vm1300, %v3573
          %3729 = vst.msk [vmem:[#allocation3 + $0xd8] sm:$0x1] %vm1300, %v3575
          %3730 = vst.msk [vmem:[#allocation3 + $0xe8] sm:$0x1] %vm1300, %v3577
          %3731 = vst.msk [vmem:[#allocation3 + $0xf8] sm:$0x1] %vm1300, %v3579
          %3732 = vst.msk [vmem:[#allocation3 + $0x108] sm:$0x1] %vm1300, %v3581
          %3733 = vst.msk [vmem:[#allocation3 + $0x118] sm:$0x1] %vm1300, %v3583
          %3734 = vst.msk [vmem:[#allocation3 + $0x128] sm:$0x1] %vm1300, %v3585
          %3735 = vst.msk [vmem:[#allocation3 + $0x138] sm:$0x1] %vm1300, %v3587
          %3736 = vst.msk [vmem:[#allocation3 + $0x148] sm:$0x1] %vm1300, %v3589
          %3737 = vst.msk [vmem:[#allocation3 + $0x158] sm:$0x1] %vm1300, %v3591
          %3738 = vst.msk [vmem:[#allocation3 + $0x168] sm:$0x1] %vm1300, %v3593
          %3739 = vst.msk [vmem:[#allocation3 + $0x178] sm:$0x1] %vm1300, %v3595
          %3740 = vst.msk [vmem:[#allocation3 + $0x188] sm:$0x1] %vm1300, %v3597
          %3741 = vst.msk [vmem:[#allocation3 + $0x198] sm:$0x1] %vm1300, %v3599
          %3742 = vst.msk [vmem:[#allocation3 + $0x1a8] sm:$0x1] %vm1300, %v3601
          %3743 = vst.msk [vmem:[#allocation3 + $0x1b8] sm:$0x1] %vm1300, %v3603
          %3744 = vst.msk [vmem:[#allocation3 + $0x1c8] sm:$0x1] %vm1300, %v3605
          %3745 = vst.msk [vmem:[#allocation3 + $0x1d8] sm:$0x1] %vm1300, %v3607
          %3746 = vst.msk [vmem:[#allocation3 + $0x1e8] sm:$0x1] %vm1300, %v3609
          %3747 = vst.msk [vmem:[#allocation3 + $0x1f8] sm:$0x1] %vm1300, %v3611
          %3748 = vst.msk [vmem:[#allocation3 + $0x208] sm:$0x1] %vm1300, %v3613
          %3749 = vst.msk [vmem:[#allocation3 + $0x218] sm:$0x1] %vm1300, %v3615
          %3750 = vst.msk [vmem:[#allocation3 + $0x228] sm:$0x1] %vm1300, %v3617
          %3751 = vst.msk [vmem:[#allocation3 + $0x238] sm:$0x1] %vm1300, %v3619
          %3752 = vst.msk [vmem:[#allocation3 + $0x248] sm:$0x1] %vm1300, %v3621
          %3753 = vst.msk [vmem:[#allocation3 + $0x258] sm:$0x1] %vm1300, %v3623
          %3754 = vst.msk [vmem:[#allocation3 + $0x268] sm:$0x1] %vm1300, %v3625
          %3755 = vst.msk [vmem:[#allocation3 + $0x278] sm:$0x1] %vm1300, %v3627
          %3756 = vst.msk [vmem:[#allocation3 + $0x288] sm:$0x1] %vm1300, %v3629
          %3757 = vst.msk [vmem:[#allocation3 + $0x298] sm:$0x1] %vm1300, %v3631
          %3758 = vst.msk [vmem:[#allocation3 + $0x2a8] sm:$0x1] %vm1300, %v3633
          %3759 = vst.msk [vmem:[#allocation3 + $0x2b8] sm:$0x1] %vm1300, %v3635
          %3760 = vst.msk [vmem:[#allocation3 + $0x2c8] sm:$0x1] %vm1300, %v3637
          %3761 = vst.msk [vmem:[#allocation3 + $0x2d8] sm:$0x1] %vm1300, %v3639
          %3762 = vst.msk [vmem:[#allocation3 + $0x2e8] sm:$0x1] %vm1300, %v3641
          %3763 = vst.msk [vmem:[#allocation3 + $0x2f8] sm:$0x1] %vm1300, %v3643
          %3764 = vst.msk [vmem:[#allocation3 + $0x308] sm:$0x1] %vm1300, %v3645
          %3765 = vst.msk [vmem:[#allocation3 + $0x318] sm:$0x1] %vm1300, %v3647
          %3766 = vst.msk [vmem:[#allocation3 + $0x328] sm:$0x1] %vm1300, %v3649
          %3767 = vst.msk [vmem:[#allocation3 + $0x338] sm:$0x1] %vm1300, %v3651
          %3768 = vst.msk [vmem:[#allocation3 + $0x348] sm:$0x1] %vm1300, %v3653
          %3769 = vst.msk [vmem:[#allocation3 + $0x358] sm:$0x1] %vm1300, %v3655
          %3770 = vst.msk [vmem:[#allocation3 + $0x368] sm:$0x1] %vm1300, %v3657
          %3771 = vst.msk [vmem:[#allocation3 + $0x378] sm:$0x1] %vm1300, %v3659
          %v3772 = vld [vmem:[#allocation3 + $0x6] sm:$0xff]
          %s3773 = scalar_lea.vmem [#allocation3], 16
          %v3774 = vld [vmem:[%s3773 + $0x6] sm:$0xff]
          %3776 = vrot.lane.b32.xlu0 %v3774, 1
          %v3777 = vpop.permute.xlu0 %3776
          %v3779 = vadd.f32 %v3772, %v3777
          %s3780 = scalar_lea.vmem [#allocation3], 32
          %v3781 = vld [vmem:[%s3780 + $0x6] sm:$0xff]
          %3783 = vrot.lane.b32.xlu0 %v3781, 2
          %v3784 = vpop.permute.xlu0 %3783
          %v3786 = vadd.f32 %v3779, %v3784
          %s3787 = scalar_lea.vmem [#allocation3], 48
          %v3788 = vld [vmem:[%s3787 + $0x6] sm:$0xff]
          %3790 = vrot.lane.b32.xlu0 %v3788, 3
          %v3791 = vpop.permute.xlu0 %3790
          %v3793 = vadd.f32 %v3786, %v3791
          %s3794 = scalar_lea.vmem [#allocation3], 64
          %v3795 = vld [vmem:[%s3794 + $0x6] sm:$0xff]
          %3797 = vrot.lane.b32.xlu0 %v3795, 4
          %v3798 = vpop.permute.xlu0 %3797
          %v3800 = vadd.f32 %v3793, %v3798
          %s3801 = scalar_lea.vmem [#allocation3], 80
          %v3802 = vld [vmem:[%s3801 + $0x6] sm:$0xff]
          %3804 = vrot.lane.b32.xlu0 %v3802, 5
          %v3805 = vpop.permute.xlu0 %3804
          %v3807 = vadd.f32 %v3800, %v3805
          %s3808 = scalar_lea.vmem [#allocation3], 96
          %v3809 = vld [vmem:[%s3808 + $0x6] sm:$0xff]
          %3811 = vrot.lane.b32.xlu0 %v3809, 6
          %v3812 = vpop.permute.xlu0 %3811
          %v3814 = vadd.f32 %v3807, %v3812
          %s3815 = scalar_lea.vmem [#allocation3], 112
          %v3816 = vld [vmem:[%s3815 + $0x5] sm:$0xff]
          %s3817 = scalar_lea.vmem [#allocation3], 128
          %v3818 = vld [vmem:[%s3817 + $0x5] sm:$0xff]
          %3820 = vrot.lane.b32.xlu0 %v3818, 1
          %v3821 = vpop.permute.xlu0 %3820
          %v3823 = vadd.f32 %v3816, %v3821
          %s3824 = scalar_lea.vmem [#allocation3], 144
          %v3825 = vld [vmem:[%s3824 + $0x5] sm:$0xff]
          %3827 = vrot.lane.b32.xlu0 %v3825, 2
          %v3828 = vpop.permute.xlu0 %3827
          %v3830 = vadd.f32 %v3823, %v3828
          %s3831 = scalar_lea.vmem [#allocation3], 160
          %v3832 = vld [vmem:[%s3831 + $0x5] sm:$0xff]
          %3834 = vrot.lane.b32.xlu0 %v3832, 3
          %v3835 = vpop.permute.xlu0 %3834
          %v3837 = vadd.f32 %v3830, %v3835
          %s3838 = scalar_lea.vmem [#allocation3], 176
          %v3839 = vld [vmem:[%s3838 + $0x5] sm:$0xff]
          %3841 = vrot.lane.b32.xlu0 %v3839, 4
          %v3842 = vpop.permute.xlu0 %3841
          %v3844 = vadd.f32 %v3837, %v3842
          %s3845 = scalar_lea.vmem [#allocation3], 192
          %v3846 = vld [vmem:[%s3845 + $0x5] sm:$0xff]
          %3848 = vrot.lane.b32.xlu0 %v3846, 5
          %v3849 = vpop.permute.xlu0 %3848
          %v3851 = vadd.f32 %v3844, %v3849
          %s3852 = scalar_lea.vmem [#allocation3], 208
          %v3853 = vld [vmem:[%s3852 + $0x5] sm:$0xff]
          %3855 = vrot.lane.b32.xlu0 %v3853, 6
          %v3856 = vpop.permute.xlu0 %3855
          %v3858 = vadd.f32 %v3851, %v3856
          %s3859 = scalar_lea.vmem [#allocation3], 224
          %v3860 = vld [vmem:[%s3859 + $0x4] sm:$0xff]
          %s3861 = scalar_lea.vmem [#allocation3], 240
          %v3862 = vld [vmem:[%s3861 + $0x4] sm:$0xff]
          %3864 = vrot.lane.b32.xlu0 %v3862, 1
          %v3865 = vpop.permute.xlu0 %3864
          %v3867 = vadd.f32 %v3860, %v3865
          %s3868 = scalar_lea.vmem [#allocation3], 256
          %v3869 = vld [vmem:[%s3868 + $0x4] sm:$0xff]
          %3871 = vrot.lane.b32.xlu0 %v3869, 2
          %v3872 = vpop.permute.xlu0 %3871
          %v3874 = vadd.f32 %v3867, %v3872
          %s3875 = scalar_lea.vmem [#allocation3], 272
          %v3876 = vld [vmem:[%s3875 + $0x4] sm:$0xff]
          %3878 = vrot.lane.b32.xlu0 %v3876, 3
          %v3879 = vpop.permute.xlu0 %3878
          %v3881 = vadd.f32 %v3874, %v3879
          %s3882 = scalar_lea.vmem [#allocation3], 288
          %v3883 = vld [vmem:[%s3882 + $0x4] sm:$0xff]
          %3885 = vrot.lane.b32.xlu0 %v3883, 4
          %v3886 = vpop.permute.xlu0 %3885
          %v3888 = vadd.f32 %v3881, %v3886
          %s3889 = scalar_lea.vmem [#allocation3], 304
          %v3890 = vld [vmem:[%s3889 + $0x4] sm:$0xff]
          %3892 = vrot.lane.b32.xlu0 %v3890, 5
          %v3893 = vpop.permute.xlu0 %3892
          %v3895 = vadd.f32 %v3888, %v3893
          %s3896 = scalar_lea.vmem [#allocation3], 320
          %v3897 = vld [vmem:[%s3896 + $0x4] sm:$0xff]
          %3899 = vrot.lane.b32.xlu0 %v3897, 6
          %v3900 = vpop.permute.xlu0 %3899
          %v3902 = vadd.f32 %v3895, %v3900
          %s3903 = scalar_lea.vmem [#allocation3], 336
          %v3904 = vld [vmem:[%s3903 + $0x3] sm:$0xff]
          %s3905 = scalar_lea.vmem [#allocation3], 352
          %v3906 = vld [vmem:[%s3905 + $0x3] sm:$0xff]
          %3908 = vrot.lane.b32.xlu0 %v3906, 1
          %v3909 = vpop.permute.xlu0 %3908
          %v3911 = vadd.f32 %v3904, %v3909
          %s3912 = scalar_lea.vmem [#allocation3], 368
          %v3913 = vld [vmem:[%s3912 + $0x3] sm:$0xff]
          %3915 = vrot.lane.b32.xlu0 %v3913, 2
          %v3916 = vpop.permute.xlu0 %3915
          %v3918 = vadd.f32 %v3911, %v3916
          %s3919 = scalar_lea.vmem [#allocation3], 384
          %v3920 = vld [vmem:[%s3919 + $0x3] sm:$0xff]
          %3922 = vrot.lane.b32.xlu0 %v3920, 3
          %v3923 = vpop.permute.xlu0 %3922
          %v3925 = vadd.f32 %v3918, %v3923
          %s3926 = scalar_lea.vmem [#allocation3], 400
          %v3927 = vld [vmem:[%s3926 + $0x3] sm:$0xff]
          %3929 = vrot.lane.b32.xlu0 %v3927, 4
          %v3930 = vpop.permute.xlu0 %3929
          %v3932 = vadd.f32 %v3925, %v3930
          %s3933 = scalar_lea.vmem [#allocation3], 416
          %v3934 = vld [vmem:[%s3933 + $0x3] sm:$0xff]
          %3936 = vrot.lane.b32.xlu0 %v3934, 5
          %v3937 = vpop.permute.xlu0 %3936
          %v3939 = vadd.f32 %v3932, %v3937
          %s3940 = scalar_lea.vmem [#allocation3], 432
          %v3941 = vld [vmem:[%s3940 + $0x3] sm:$0xff]
          %3943 = vrot.lane.b32.xlu0 %v3941, 6
          %v3944 = vpop.permute.xlu0 %3943
          %v3946 = vadd.f32 %v3939, %v3944
          %s3947 = scalar_lea.vmem [#allocation3], 448
          %v3948 = vld [vmem:[%s3947 + $0x2] sm:$0xff]
          %s3949 = scalar_lea.vmem [#allocation3], 464
          %v3950 = vld [vmem:[%s3949 + $0x2] sm:$0xff]
          %3952 = vrot.lane.b32.xlu0 %v3950, 1
          %v3953 = vpop.permute.xlu0 %3952
          %v3955 = vadd.f32 %v3948, %v3953
          %s3956 = scalar_lea.vmem [#allocation3], 480
          %v3957 = vld [vmem:[%s3956 + $0x2] sm:$0xff]
          %3959 = vrot.lane.b32.xlu0 %v3957, 2
          %v3960 = vpop.permute.xlu0 %3959
          %v3962 = vadd.f32 %v3955, %v3960
          %s3963 = scalar_lea.vmem [#allocation3], 496
          %v3964 = vld [vmem:[%s3963 + $0x2] sm:$0xff]
          %3966 = vrot.lane.b32.xlu0 %v3964, 3
          %v3967 = vpop.permute.xlu0 %3966
          %v3969 = vadd.f32 %v3962, %v3967
          %s3970 = scalar_lea.vmem [#allocation3], 512
          %v3971 = vld [vmem:[%s3970 + $0x2] sm:$0xff]
          %3973 = vrot.lane.b32.xlu0 %v3971, 4
          %v3974 = vpop.permute.xlu0 %3973
          %v3976 = vadd.f32 %v3969, %v3974
          %s3977 = scalar_lea.vmem [#allocation3], 528
          %v3978 = vld [vmem:[%s3977 + $0x2] sm:$0xff]
          %3980 = vrot.lane.b32.xlu0 %v3978, 5
          %v3981 = vpop.permute.xlu0 %3980
          %v3983 = vadd.f32 %v3976, %v3981
          %s3984 = scalar_lea.vmem [#allocation3], 544
          %v3985 = vld [vmem:[%s3984 + $0x2] sm:$0xff]
          %3987 = vrot.lane.b32.xlu0 %v3985, 6
          %v3988 = vpop.permute.xlu0 %3987
          %v3990 = vadd.f32 %v3983, %v3988
          %s3991 = scalar_lea.vmem [#allocation3], 560
          %v3992 = vld [vmem:[%s3991 + $0x1] sm:$0xff]
          %s3993 = scalar_lea.vmem [#allocation3], 576
          %v3994 = vld [vmem:[%s3993 + $0x1] sm:$0xff]
          %3996 = vrot.lane.b32.xlu0 %v3994, 1
          %v3997 = vpop.permute.xlu0 %3996
          %v3999 = vadd.f32 %v3992, %v3997
          %s4000 = scalar_lea.vmem [#allocation3], 592
          %v4001 = vld [vmem:[%s4000 + $0x1] sm:$0xff]
          %4003 = vrot.lane.b32.xlu0 %v4001, 2
          %v4004 = vpop.permute.xlu0 %4003
          %v4006 = vadd.f32 %v3999, %v4004
          %s4007 = scalar_lea.vmem [#allocation3], 608
          %v4008 = vld [vmem:[%s4007 + $0x1] sm:$0xff]
          %4010 = vrot.lane.b32.xlu0 %v4008, 3
          %v4011 = vpop.permute.xlu0 %4010
          %v4013 = vadd.f32 %v4006, %v4011
          %s4014 = scalar_lea.vmem [#allocation3], 624
          %v4015 = vld [vmem:[%s4014 + $0x1] sm:$0xff]
          %4017 = vrot.lane.b32.xlu0 %v4015, 4
          %v4018 = vpop.permute.xlu0 %4017
          %v4020 = vadd.f32 %v4013, %v4018
          %s4021 = scalar_lea.vmem [#allocation3], 640
          %v4022 = vld [vmem:[%s4021 + $0x1] sm:$0xff]
          %4024 = vrot.lane.b32.xlu0 %v4022, 5
          %v4025 = vpop.permute.xlu0 %4024
          %v4027 = vadd.f32 %v4020, %v4025
          %s4028 = scalar_lea.vmem [#allocation3], 656
          %v4029 = vld [vmem:[%s4028 + $0x1] sm:$0xff]
          %4031 = vrot.lane.b32.xlu0 %v4029, 6
          %v4032 = vpop.permute.xlu0 %4031
          %v4034 = vadd.f32 %v4027, %v4032
          %s4035 = scalar_lea.vmem [#allocation3], 672
          %v4036 = vld [vmem:[%s4035] sm:$0xff]
          %s4037 = scalar_lea.vmem [#allocation3], 688
          %v4038 = vld [vmem:[%s4037] sm:$0xff]
          %4040 = vrot.lane.b32.xlu0 %v4038, 1
          %v4041 = vpop.permute.xlu0 %4040
          %v4043 = vadd.f32 %v4036, %v4041
          %s4044 = scalar_lea.vmem [#allocation3], 704
          %v4045 = vld [vmem:[%s4044] sm:$0xff]
          %4047 = vrot.lane.b32.xlu0 %v4045, 2
          %v4048 = vpop.permute.xlu0 %4047
          %v4050 = vadd.f32 %v4043, %v4048
          %s4051 = scalar_lea.vmem [#allocation3], 720
          %v4052 = vld [vmem:[%s4051] sm:$0xff]
          %4054 = vrot.lane.b32.xlu0 %v4052, 3
          %v4055 = vpop.permute.xlu0 %4054
          %v4057 = vadd.f32 %v4050, %v4055
          %s4058 = scalar_lea.vmem [#allocation3], 736
          %v4059 = vld [vmem:[%s4058] sm:$0xff]
          %4061 = vrot.lane.b32.xlu0 %v4059, 4
          %v4062 = vpop.permute.xlu0 %4061
          %v4064 = vadd.f32 %v4057, %v4062
          %s4065 = scalar_lea.vmem [#allocation3], 752
          %v4066 = vld [vmem:[%s4065] sm:$0xff]
          %4068 = vrot.lane.b32.xlu0 %v4066, 5
          %v4069 = vpop.permute.xlu0 %4068
          %v4071 = vadd.f32 %v4064, %v4069
          %s4072 = scalar_lea.vmem [#allocation3], 768
          %v4073 = vld [vmem:[%s4072] sm:$0xff]
          %4075 = vrot.lane.b32.xlu0 %v4073, 6
          %v4076 = vpop.permute.xlu0 %4075
          %v4078 = vadd.f32 %v4071, %v4076
          %v4079 = vadd.f32 %v3814, %v3858
          %v4080 = vadd.f32 %v3902, %v3946
          %v4081 = vadd.f32 %v3990, %v4034
          %v4082 = vadd.f32 %v4079, %v4080
          %v4083 = vadd.f32 %v4081, %v4078
          %v4084 = vadd.f32 %v4082, %v4083
          %s4085 = sld [smem:[#allocation4]]
          %v4086 = vstv %s4085
          %v4087 = vadd.f32 %v4084, %v4086
          %v4088 = vsub.f32 0.0, %v4087
          %v4089 = vmul.f32 %v4088, 1.442695
          %v4090 = vpow.pop %v4089
          %v4091 = vadd.f32 %v4090, 1.0
          %v4092 = vrcp.pop %v4091
          %v4093 = vmul.f32 1.0, %v4092
          %v4094 = vmul.f32 %v4087, %v4093
          %4096 = vrot.lane.b32.xlu0 %v4094, 122
          %v4097 = vpop.permute.xlu0 %4096
          %vm4099 = vcmask 80896
          %4100 = vst.msk [vmem:[%s265] sm:$0xff] %vm4099, %v4097
        $region78: #{conv_transpose_silu.1} parent=65 // pred_fallthru
          _
        %s4101 = sand.u32 %s113, 1
        %s4102 = scalar_lea.sflag [#allocation7], %s4101
        %s4103 = sand.u32 %s113, 1
        %s4104 = smul.addr %s4103, 8
        %s4105 = scalar_lea.vmem [#allocation6], %s4104
        // Predicated region
        $region79: #{conv_transpose_silu.1} parent=65 // pred_check
          %p4106 = pneg %p123
        $region80: #{conv_transpose_silu.1} parent=65 // pred_check_branch
          %4108 = sbr.rel (%p4106) target = $region82
        $region81: #{conv_transpose_silu.1} parent=65 // pred_region
          %s4110 = ssub.s32 128, 128
          %4111 = vsyncadd %s4102, %s4110
          %s4112 = smul.addr %s22, 128
          %s4113 = scalar_lea.hbm %s3, %s4112
          %s4115 = sshll.u32 %s4105, 4
          %s4116 = int_to_ptr.vmem [resolvable:$true] %s4115
          %4118 = dma.vmem_to_hbm [thread:$0]  %s4116, 128, %s4113, %s4102
        $region82: #{conv_transpose_silu.1} parent=65 // pred_fallthru
          _
      $region66: #{conv_transpose_silu.1} parent=5 // pred_fallthru
        _
      %p4119 = scmp.le.s32.totalorder 2, %s13
      // Predicated region
      $region83: #{conv_transpose_silu.1} parent=5 // pred_check
        %p4120 = pneg %p4119
      $region84: #{conv_transpose_silu.1} parent=5 // pred_check_branch
        %4122 = sbr.rel (%p4120) target = $region86
      $region85: #{conv_transpose_silu.1} parent=5 // pred_region
        %s4123 = ssub.s32 %s13, 2
        // Predicated region
        $region87: #{conv_transpose_silu.1} parent=85 // pred_check
          %p4124 = pneg %p129
        $region88: #{conv_transpose_silu.1} parent=85 // pred_check_branch
          %4126 = sbr.rel (%p4124) target = $region90
        $region89: #{conv_transpose_silu.1} parent=85 // pred_region
          %s4127 = sand.u32 %s114, 1
          %s4128 = scalar_lea.sflag [#allocation7], %s4127
          %s4129 = sand.u32 %s114, 1
          %s4130 = smul.addr %s4129, 8
          %s4131 = scalar_lea.vmem [#allocation6], %s4130
          %4132 = dma.done %s4128, 128
        $region90: #{conv_transpose_silu.1} parent=85 // pred_fallthru
          _
      $region86: #{conv_transpose_silu.1} parent=5 // pred_fallthru
        _
    $region6: #{conv_transpose_silu.1} parent=1 // loop_footer
      %s17 = sadd.s32 1, %s13
    $region7: #{conv_transpose_silu.1} parent=1 // loop_footer_branch
      %12 = sbr.rel target = $region3
    $region8: #{conv_transpose_silu.1} parent=1 // loop_exit
      _
    %4133 = vsyncpa [#allocation7], 1
    %s4134 = scalar_lea.sflag [#allocation7], 1
    %4135 = vsyncpa %s4134, 1

</llo_original>
